<compile_context>
chip_gen: v6e
topology: v6e:2x2x1
jax: 0.10.0
libtpu: 0.0.40
codegen_flags: <defaults>
</compile_context>

<pallas_src>
import jax
import jax.numpy as jnp
from jax.experimental import pallas as pl
from jax.experimental.pallas import tpu as pltpu


# ----------------------------------------------------------------------------
# VMEM budgeting
# ----------------------------------------------------------------------------
def _vmem_limits():
    """Generation-aware scoped-VMEM limit (bytes) and tile-picking budget."""
    try:
        cap = int(pltpu.get_tpu_info().vmem_capacity_bytes)
    except Exception:
        cap = 64 * 1024 * 1024          # conservative: works on every generation
    limit = max(32 * 1024 * 1024, min(100 * 1024 * 1024, (cap * 3) // 4))
    budget = (limit * 4) // 5           # headroom under the scoped limit
    return limit, budget


def _pick_tn(n, d, *, stream_itemsize, budget, batch, weight_bufs=2):
    """Largest TPU-tileable node block Tn (Tn | N, Tn%8==0 or Tn==N) whose
    pipelined blocks + live f32 intermediates + weight buffers fit `budget`.
    Prefers a Tn that yields >= 2 grid programs (both v7x TensorCores busy)."""
    candidates = [t for t in range(1, n + 1)
                  if n % t == 0 and (t == n or t % 8 == 0)]
    weight_bytes = weight_bufs * (5 * d * d + 4 * d) * stream_itemsize

    def vmem_needed(t):
        rows = t * n
        # double-buffered pipelined blocks: x, msg, act_n, e, act_e (compute
        # dtype) + p, q (f32)
        io = 2 * d * ((3 * t + 2 * rows) * stream_itemsize + (t + n) * 4)
        # live f32 compute temporaries on the edge path (h2, h3, h2+h3, z, slack)
        interm = (5 * rows + 4 * t) * d * 4
        return io + interm + weight_bytes

    fitting = [t for t in sorted(candidates, reverse=True) if vmem_needed(t) <= budget]
    if not fitting:
        # TODO(synk): very large N*D would need a padded, masked last tile
        # (pl.cdiv grid) instead of falling back to the smallest divisor block.
        fitting = [min(candidates)]
    for t in fitting:                   # keep >= 2 grid programs when possible
        if batch * (n // t) >= 2:
            return t
    return fitting[0]


# ----------------------------------------------------------------------------
# Fused kernel: node branch + edge branch for one (batch, node_i-block) tile.
# ----------------------------------------------------------------------------
def _fused_kernel(x_ref, msg_ref, p_ref, q_ref, e_ref,
                  w0_ref, b0_ref, w1a_ref, w1b_ref, b1_ref,
                  w2_ref, b2_ref, w4_ref, b4_ref,
                  actn_ref, acte_ref):
    f32 = jnp.float32
    relu = lambda v: jnp.maximum(v, 0.0)

    x = x_ref[0]        # (Tn, D)    nodes of this node_i block (compute dtype)
    msg = msg_ref[0]    # (Tn, D)
    p = p_ref[0]        # (Tn, D)    f32: nodes_block @ W3a        (hoisted)
    q = q_ref[0]        # (N, D)     f32: all_nodes @ W3b + b3     (hoisted)
    e = e_ref[0]        # (Tn*N, D)  edge rows t*N + k for t in this block

    tn, d = p.shape
    n = q.shape[0]

    # ---- node branch: ReLU(cat([ReLU(x@W0+b0), msg]) @ W1 + b1) ------------
    # cat-then-Linear via split weights: cat([a,b]) @ W == a@Wa + b@Wb
    h0 = relu(jnp.dot(x, w0_ref[...], preferred_element_type=f32) + b0_ref[...])
    act_n = relu(jnp.dot(h0.astype(x.dtype), w1a_ref[...], preferred_element_type=f32)
                 + jnp.dot(msg, w1b_ref[...], preferred_element_type=f32)
                 + b1_ref[...])
    actn_ref[0] = act_n.astype(actn_ref.dtype)

    # ---- edge branch: ReLU((ReLU(e@W2+b2) + ReLU(P_i + Q_j)) @ W4 + b4) ----
    # h3[t*N + k] = ReLU(P[t] + Q[k])   (b3 already folded into Q)
    h3 = relu((p[:, None, :] + q[None, :, :]).reshape(tn * n, d))
    h2 = relu(jnp.dot(e, w2_ref[...], preferred_element_type=f32) + b2_ref[...])
    z = jnp.dot((h2 + h3).astype(e.dtype), w4_ref[...],
                preferred_element_type=f32) + b4_ref[...]
    acte_ref[0] = relu(z).astype(acte_ref.dtype)


# ----------------------------------------------------------------------------
# Wrapper
# ----------------------------------------------------------------------------
def mgc_combiner_forward(params, old_nodes, old_edges, messages_nodes, *,
                         tn=None, compute_dtype=None):
    """JAX/Pallas equivalent of MGC_Combiner.forward.

    old_nodes:      (B, N, D)
    old_edges:      (B, N*N, D)
    messages_nodes: (B, N, D)
    returns (activation_nodes (B,N,D), activation_edges (B,N*N,D))
    """
    B, N, D = old_nodes.shape
    assert old_edges.shape == (B, N * N, D)
    assert messages_nodes.shape == (B, N, D)

    f32 = jnp.float32
    cd = jnp.dtype(compute_dtype) if compute_dtype is not None else old_nodes.dtype

    # Hoisted node-pair projections of W3 (one wide (D, 2D) matmul per batch,
    # outside the kernel); b3 folded into Q.
    w3 = jnp.concatenate([params["W3a"], params["W3b"]], axis=1).astype(f32)
    pq = jnp.einsum("bnd,dk->bnk", old_nodes.astype(f32), w3)      # (B, N, 2D)
    p_all = pq[..., :D]                                            # nodes @ W3a
    q_all = pq[..., D:] + params["b3"].astype(f32)                 # nodes @ W3b + b3

    x = old_nodes.astype(cd)
    e = old_edges.astype(cd)
    msg = messages_nodes.astype(cd)
    wkeys = ("W0", "b0", "W1a", "W1b", "b1", "W2", "b2", "W4", "b4")
    wvals = [params[k].astype(cd) for k in wkeys]

    vmem_limit, vmem_budget = _vmem_limits()
    if tn is None:
        tn = _pick_tn(N, D, stream_itemsize=cd.itemsize, budget=vmem_budget, batch=B)
    assert N % tn == 0
    ni = N // tn                 # node_i blocks per batch element
    tm_e = tn * N                # edge rows per grid step

    node_blk = pl.BlockSpec((1, tn, D), lambda b, i: (b, i, 0))
    node_full = pl.BlockSpec((1, N, D), lambda b, i: (b, 0, 0))
    edge_blk = pl.BlockSpec((1, tm_e, D), lambda b, i: (b, i, 0))

    def _const_index_map(nd):
        def idx(b, i):
            return (0,) * nd
        return idx

    def _weight_specs(single_buffer):
        specs = []
        for v in wvals:
            idx = _const_index_map(v.ndim)
            if single_buffer:
                specs.append(pl.BlockSpec(v.shape, idx, pipeline_mode=pl.Buffered(1)))
            else:
                specs.append(pl.BlockSpec(v.shape, idx))
        return specs

    # Advisory cost estimate (resident weights counted once, not per grid step).
    itemsize = cd.itemsize
    flops = int(2 * D * D * (3 * B * N + 2 * B * N * N))
    bytes_accessed = int(itemsize * D * (3 * B * N + 2 * B * N * N)
                         + 4 * D * (2 * B * N)
                         + itemsize * (5 * D * D + 4 * D))
    cost = pl.CostEstimate(flops=flops, transcendentals=0,
                           bytes_accessed=bytes_accessed)

    def _run(single_buffer_weights):
        return pl.pallas_call(
            _fused_kernel,
            out_shape=(jax.ShapeDtypeStruct((B, N, D), cd),
                       jax.ShapeDtypeStruct((B, N * N, D), cd)),
            grid=(B, ni),
            in_specs=[node_blk, node_blk, node_blk, node_full, edge_blk]
                     + _weight_specs(single_buffer_weights),
            out_specs=(node_blk, edge_blk),
            compiler_params=pltpu.CompilerParams(
                dimension_semantics=("parallel", "parallel"),
                vmem_limit_bytes=vmem_limit),
            cost_estimate=cost,
        )(x, msg, p_all, q_all, e, *wvals)

    try:
        # Constant-index weight blocks never rotate: single-buffer them.
        return _run(True)
    except Exception:
        # This jax version rejects Buffered(1): fall back to default buffering.
        return _run(False)


# ----------------------------------------------------------------------------
# Parameters / reference
# ----------------------------------------------------------------------------
def init_params(key, state_dim):
    """Deterministic parameter init. Weights stored as (in, out)."""
    D = state_dim
    keys = jax.random.split(key, 12)
    w = lambda k, shape: 0.1 * jax.random.normal(k, shape, dtype=jnp.float32)
    return {
        "W0": w(keys[0], (D, D)), "b0": w(keys[1], (1, D)),
        # W1: Linear(2D, D) split (first half -> W0 output, second -> messages)
        "W1a": w(keys[2], (D, D)), "W1b": w(keys[3], (D, D)), "b1": w(keys[4], (1, D)),
        "W2": w(keys[5], (D, D)), "b2": w(keys[6], (1, D)),
        # W3: Linear(2D, D) split into node_i / node_j halves
        "W3a": w(keys[7], (D, D)), "W3b": w(keys[8], (D, D)), "b3": w(keys[9], (1, D)),
        "W4": w(keys[10], (D, D)), "b4": w(keys[11], (1, D)),
    }


def _reference_forward(params, old_nodes, old_edges, messages_nodes):
    """Pure-JAX reference matching the PyTorch semantics."""
    B, N, D = old_nodes.shape
    relu = lambda v: jnp.maximum(v, 0.0)
    h0 = relu(old_nodes @ params["W0"] + params["b0"])
    cat = jnp.concatenate([h0, messages_nodes], axis=-1)
    W1 = jnp.concatenate([params["W1a"], params["W1b"]], axis=0)
    act_nodes = relu(cat @ W1 + params["b1"])

    node_i = jnp.repeat(old_nodes, N, axis=1)
    node_j = jnp.tile(old_nodes, (1, N, 1))
    nn_cat = jnp.concatenate([node_i, node_j], axis=-1)
    W3 = jnp.concatenate([params["W3a"], params["W3b"]], axis=0)
    h2 = relu(old_edges @ params["W2"] + params["b2"])
    h3 = relu(nn_cat @ W3 + params["b3"])
    act_edges = relu((h2 + h3) @ params["W4"] + params["b4"])
    return act_nodes, act_edges


if __name__ == "__main__":
    B, N, D = 2, 8, 32   # batch, number of nodes, state_dim

    key = jax.random.PRNGKey(0)
    k_nodes, k_edges, k_msg, k_params = jax.random.split(key, 4)

    old_nodes = jax.random.normal(k_nodes, (B, N, D), dtype=jnp.float32)
    old_edges = jax.random.normal(k_edges, (B, N * N, D), dtype=jnp.float32)
    messages_nodes = jax.random.normal(k_msg, (B, N, D), dtype=jnp.float32)

    params = init_params(k_params, D)

    # ---- f32 path: tight check against the pure-JAX reference ----
    act_nodes, act_edges = mgc_combiner_forward(
        params, old_nodes, old_edges, messages_nodes)
    jax.block_until_ready((act_nodes, act_edges))

    ref_nodes, ref_edges = _reference_forward(
        params, old_nodes, old_edges, messages_nodes)

    assert act_nodes.shape == (B, N, D)
    assert act_edges.shape == (B, N * N, D)
    assert jnp.allclose(act_nodes, ref_nodes, atol=1e-5, rtol=1e-5)
    assert jnp.allclose(act_edges, ref_edges, atol=1e-5, rtol=1e-5)

    # ---- bf16 path: halves the dominant (B, N*N, D) HBM edge stream; ----
    # ---- f32 MXU accumulation is kept in-kernel (loose tolerance).   ----
    actn16, acte16 = mgc_combiner_forward(
        params, old_nodes, old_edges, messages_nodes, compute_dtype=jnp.bfloat16)
    jax.block_until_ready((actn16, acte16))
    assert actn16.dtype == jnp.bfloat16 and acte16.dtype == jnp.bfloat16
    assert jnp.allclose(actn16.astype(jnp.float32), ref_nodes, atol=0.1, rtol=0.1)
    assert jnp.allclose(acte16.astype(jnp.float32), ref_edges, atol=0.1, rtol=0.1)

    print("KERNEL_OK")
</pallas_src>

<mosaic_0001>
module attributes {stable_mosaic.version = 11 : i64} {
  func.func @_fused_kernel(%arg0: i32, %arg1: i32, %arg2: memref<1x8x32xf32, #tpu.memory_space<vmem>>, %arg3: memref<1x8x32xf32, #tpu.memory_space<vmem>>, %arg4: memref<1x8x32xf32, #tpu.memory_space<vmem>>, %arg5: memref<1x8x32xf32, #tpu.memory_space<vmem>>, %arg6: memref<1x64x32xf32, #tpu.memory_space<vmem>>, %arg7: memref<32x32xf32, #tpu.memory_space<vmem>>, %arg8: memref<1x32xf32, #tpu.memory_space<vmem>>, %arg9: memref<32x32xf32, #tpu.memory_space<vmem>>, %arg10: memref<32x32xf32, #tpu.memory_space<vmem>>, %arg11: memref<1x32xf32, #tpu.memory_space<vmem>>, %arg12: memref<32x32xf32, #tpu.memory_space<vmem>>, %arg13: memref<1x32xf32, #tpu.memory_space<vmem>>, %arg14: memref<32x32xf32, #tpu.memory_space<vmem>>, %arg15: memref<1x32xf32, #tpu.memory_space<vmem>>, %arg16: memref<1x8x32xf32, #tpu.memory_space<vmem>>, %arg17: memref<1x64x32xf32, #tpu.memory_space<vmem>>) attributes {dimension_semantics = [#tpu.dimension_semantics<parallel>, #tpu.dimension_semantics<parallel>], iteration_bounds = array<i64: 2, 1>, scalar_prefetch = 0 : i64, scratch_operands = 0 : i64, tpu.core_type = #tpu.core_type<tc>, window_params = [{transform_indices = @transform_0, window_bounds = array<i64: 1, 8, 32>}, {transform_indices = @transform_1, window_bounds = array<i64: 1, 8, 32>}, {transform_indices = @transform_2, window_bounds = array<i64: 1, 8, 32>}, {transform_indices = @transform_3, window_bounds = array<i64: 1, 8, 32>}, {transform_indices = @transform_4, window_bounds = array<i64: 1, 64, 32>}, {pipeline_mode = #tpu.pipeline_mode<synchronous>, transform_indices = @transform_5, window_bounds = array<i64: 32, 32>}, {pipeline_mode = #tpu.pipeline_mode<synchronous>, transform_indices = @transform_6, window_bounds = array<i64: 1, 32>}, {pipeline_mode = #tpu.pipeline_mode<synchronous>, transform_indices = @transform_7, window_bounds = array<i64: 32, 32>}, {pipeline_mode = #tpu.pipeline_mode<synchronous>, transform_indices = @transform_8, window_bounds = array<i64: 32, 32>}, {pipeline_mode = #tpu.pipeline_mode<synchronous>, transform_indices = @transform_9, window_bounds = array<i64: 1, 32>}, {pipeline_mode = #tpu.pipeline_mode<synchronous>, transform_indices = @transform_10, window_bounds = array<i64: 32, 32>}, {pipeline_mode = #tpu.pipeline_mode<synchronous>, transform_indices = @transform_11, window_bounds = array<i64: 1, 32>}, {pipeline_mode = #tpu.pipeline_mode<synchronous>, transform_indices = @transform_12, window_bounds = array<i64: 32, 32>}, {pipeline_mode = #tpu.pipeline_mode<synchronous>, transform_indices = @transform_13, window_bounds = array<i64: 1, 32>}, {transform_indices = @transform_14, window_bounds = array<i64: 1, 8, 32>}, {transform_indices = @transform_15, window_bounds = array<i64: 1, 64, 32>}]} {
    %c0 = arith.constant 0 : index
    %c0_0 = arith.constant 0 : index
    %c0_1 = arith.constant 0 : index
    %0 = vector.load %arg2[%c0, %c0_0, %c0_1] : memref<1x8x32xf32, #tpu.memory_space<vmem>>, vector<1x8x32xf32>
    %1 = vector.shape_cast %0 : vector<1x8x32xf32> to vector<8x32xf32>
    %c0_2 = arith.constant 0 : index
    %c0_3 = arith.constant 0 : index
    %c0_4 = arith.constant 0 : index
    %2 = vector.load %arg3[%c0_2, %c0_3, %c0_4] : memref<1x8x32xf32, #tpu.memory_space<vmem>>, vector<1x8x32xf32>
    %3 = vector.shape_cast %2 : vector<1x8x32xf32> to vector<8x32xf32>
    %c0_5 = arith.constant 0 : index
    %c0_6 = arith.constant 0 : index
    %c0_7 = arith.constant 0 : index
    %4 = vector.load %arg4[%c0_5, %c0_6, %c0_7] : memref<1x8x32xf32, #tpu.memory_space<vmem>>, vector<1x8x32xf32>
    %5 = vector.shape_cast %4 : vector<1x8x32xf32> to vector<8x32xf32>
    %c0_8 = arith.constant 0 : index
    %c0_9 = arith.constant 0 : index
    %c0_10 = arith.constant 0 : index
    %6 = vector.load %arg5[%c0_8, %c0_9, %c0_10] : memref<1x8x32xf32, #tpu.memory_space<vmem>>, vector<1x8x32xf32>
    %7 = vector.shape_cast %6 : vector<1x8x32xf32> to vector<8x32xf32>
    %c0_11 = arith.constant 0 : index
    %c0_12 = arith.constant 0 : index
    %c0_13 = arith.constant 0 : index
    %8 = vector.load %arg6[%c0_11, %c0_12, %c0_13] : memref<1x64x32xf32, #tpu.memory_space<vmem>>, vector<1x64x32xf32>
    %9 = vector.shape_cast %8 : vector<1x64x32xf32> to vector<64x32xf32>
    %c0_14 = arith.constant 0 : index
    %c0_15 = arith.constant 0 : index
    %10 = vector.load %arg7[%c0_14, %c0_15] : memref<32x32xf32, #tpu.memory_space<vmem>>, vector<32x32xf32>
    %cst = arith.constant dense<0.000000e+00> : vector<8x32xf32>
    %11 = tpu.matmul %1, %10, %cst {dimension_numbers = #tpu.dot_dimension_numbers<[1], [0], [0], [1], [0, 0, 1, 1], [], []>} : vector<8x32xf32>, vector<32x32xf32>, vector<8x32xf32> -> vector<8x32xf32>
    %c0_16 = arith.constant 0 : index
    %c0_17 = arith.constant 0 : index
    %12 = vector.load %arg8[%c0_16, %c0_17] : memref<1x32xf32, #tpu.memory_space<vmem>>, vector<1x32xf32>
    %13 = vector.broadcast %12 : vector<1x32xf32> to vector<8x32xf32>
    %14 = arith.addf %11, %13 : vector<8x32xf32>
    %cst_18 = arith.constant 0.000000e+00 : f32
    %15 = vector.broadcast %cst_18 : f32 to vector<8x32xf32>
    %16 = arith.maximumf %14, %15 : vector<8x32xf32>
    %c0_19 = arith.constant 0 : index
    %c0_20 = arith.constant 0 : index
    %17 = vector.load %arg9[%c0_19, %c0_20] : memref<32x32xf32, #tpu.memory_space<vmem>>, vector<32x32xf32>
    %cst_21 = arith.constant dense<0.000000e+00> : vector<8x32xf32>
    %18 = tpu.matmul %16, %17, %cst_21 {dimension_numbers = #tpu.dot_dimension_numbers<[1], [0], [0], [1], [0, 0, 1, 1], [], []>} : vector<8x32xf32>, vector<32x32xf32>, vector<8x32xf32> -> vector<8x32xf32>
    %c0_22 = arith.constant 0 : index
    %c0_23 = arith.constant 0 : index
    %19 = vector.load %arg10[%c0_22, %c0_23] : memref<32x32xf32, #tpu.memory_space<vmem>>, vector<32x32xf32>
    %cst_24 = arith.constant dense<0.000000e+00> : vector<8x32xf32>
    %20 = tpu.matmul %3, %19, %cst_24 {dimension_numbers = #tpu.dot_dimension_numbers<[1], [0], [0], [1], [0, 0, 1, 1], [], []>} : vector<8x32xf32>, vector<32x32xf32>, vector<8x32xf32> -> vector<8x32xf32>
    %21 = arith.addf %18, %20 : vector<8x32xf32>
    %c0_25 = arith.constant 0 : index
    %c0_26 = arith.constant 0 : index
    %22 = vector.load %arg11[%c0_25, %c0_26] : memref<1x32xf32, #tpu.memory_space<vmem>>, vector<1x32xf32>
    %23 = vector.broadcast %22 : vector<1x32xf32> to vector<8x32xf32>
    %24 = arith.addf %21, %23 : vector<8x32xf32>
    %cst_27 = arith.constant 0.000000e+00 : f32
    %25 = vector.broadcast %cst_27 : f32 to vector<8x32xf32>
    %26 = arith.maximumf %24, %25 : vector<8x32xf32>
    %c0_28 = arith.constant 0 : index
    %c0_29 = arith.constant 0 : index
    %c0_30 = arith.constant 0 : index
    %27 = vector.load %arg16[%c0_28, %c0_29, %c0_30] : memref<1x8x32xf32, #tpu.memory_space<vmem>>, vector<1x8x32xf32>
    %28 = vector.shape_cast %27 : vector<1x8x32xf32> to vector<8x32xf32>
    %29 = vector.shape_cast %26 : vector<8x32xf32> to vector<1x8x32xf32>
    tpu.vector_store %arg16[%c0_28, %c0_29, %c0_30], %29 {strides = array<i32>} : memref<1x8x32xf32, #tpu.memory_space<vmem>>, vector<1x8x32xf32>,
    %30 = vector.shape_cast %5 : vector<8x32xf32> to vector<8x1x32xf32>
    %31 = vector.shape_cast %7 : vector<8x32xf32> to vector<1x8x32xf32>
    %32 = vector.broadcast %30 : vector<8x1x32xf32> to vector<8x8x32xf32>
    %33 = vector.broadcast %31 : vector<1x8x32xf32> to vector<8x8x32xf32>
    %34 = arith.addf %32, %33 : vector<8x8x32xf32>
    %35 = vector.shape_cast %34 : vector<8x8x32xf32> to vector<64x32xf32>
    %cst_31 = arith.constant 0.000000e+00 : f32
    %36 = vector.broadcast %cst_31 : f32 to vector<64x32xf32>
    %37 = arith.maximumf %35, %36 : vector<64x32xf32>
    %c0_32 = arith.constant 0 : index
    %c0_33 = arith.constant 0 : index
    %38 = vector.load %arg12[%c0_32, %c0_33] : memref<32x32xf32, #tpu.memory_space<vmem>>, vector<32x32xf32>
    %cst_34 = arith.constant dense<0.000000e+00> : vector<64x32xf32>
    %39 = tpu.matmul %9, %38, %cst_34 {dimension_numbers = #tpu.dot_dimension_numbers<[1], [0], [0], [1], [0, 0, 1, 1], [], []>} : vector<64x32xf32>, vector<32x32xf32>, vector<64x32xf32> -> vector<64x32xf32>
    %c0_35 = arith.constant 0 : index
    %c0_36 = arith.constant 0 : index
    %40 = vector.load %arg13[%c0_35, %c0_36] : memref<1x32xf32, #tpu.memory_space<vmem>>, vector<1x32xf32>
    %41 = vector.broadcast %40 : vector<1x32xf32> to vector<64x32xf32>
    %42 = arith.addf %39, %41 : vector<64x32xf32>
    %cst_37 = arith.constant 0.000000e+00 : f32
    %43 = vector.broadcast %cst_37 : f32 to vector<64x32xf32>
    %44 = arith.maximumf %42, %43 : vector<64x32xf32>
    %45 = arith.addf %44, %37 : vector<64x32xf32>
    %c0_38 = arith.constant 0 : index
    %c0_39 = arith.constant 0 : index
    %46 = vector.load %arg14[%c0_38, %c0_39] : memref<32x32xf32, #tpu.memory_space<vmem>>, vector<32x32xf32>
    %cst_40 = arith.constant dense<0.000000e+00> : vector<64x32xf32>
    %47 = tpu.matmul %45, %46, %cst_40 {dimension_numbers = #tpu.dot_dimension_numbers<[1], [0], [0], [1], [0, 0, 1, 1], [], []>} : vector<64x32xf32>, vector<32x32xf32>, vector<64x32xf32> -> vector<64x32xf32>
    %c0_41 = arith.constant 0 : index
    %c0_42 = arith.constant 0 : index
    %48 = vector.load %arg15[%c0_41, %c0_42] : memref<1x32xf32, #tpu.memory_space<vmem>>, vector<1x32xf32>
    %49 = vector.broadcast %48 : vector<1x32xf32> to vector<64x32xf32>
    %50 = arith.addf %47, %49 : vector<64x32xf32>
    %cst_43 = arith.constant 0.000000e+00 : f32
    %51 = vector.broadcast %cst_43 : f32 to vector<64x32xf32>
    %52 = arith.maximumf %50, %51 : vector<64x32xf32>
    %c0_44 = arith.constant 0 : index
    %c0_45 = arith.constant 0 : index
    %c0_46 = arith.constant 0 : index
    %53 = vector.load %arg17[%c0_44, %c0_45, %c0_46] : memref<1x64x32xf32, #tpu.memory_space<vmem>>, vector<1x64x32xf32>
    %54 = vector.shape_cast %53 : vector<1x64x32xf32> to vector<64x32xf32>
    %55 = vector.shape_cast %52 : vector<64x32xf32> to vector<1x64x32xf32>
    tpu.vector_store %arg17[%c0_44, %c0_45, %c0_46], %55 {strides = array<i32>} : memref<1x64x32xf32, #tpu.memory_space<vmem>>, vector<1x64x32xf32>,
    return
  }
  func.func @transform_0(%arg0: i32, %arg1: i32) -> (i32, i32, i32) {
    %c0_i32 = arith.constant 0 : i32
    %c0_i32_0 = arith.constant 0 : i32
    return %arg0, %arg1, %c0_i32 : i32, i32, i32
  }
  func.func @transform_1(%arg0: i32, %arg1: i32) -> (i32, i32, i32) {
    %c0_i32 = arith.constant 0 : i32
    %c0_i32_0 = arith.constant 0 : i32
    return %arg0, %arg1, %c0_i32 : i32, i32, i32
  }
  func.func @transform_2(%arg0: i32, %arg1: i32) -> (i32, i32, i32) {
    %c0_i32 = arith.constant 0 : i32
    %c0_i32_0 = arith.constant 0 : i32
    return %arg0, %arg1, %c0_i32 : i32, i32, i32
  }
  func.func @transform_3(%arg0: i32, %arg1: i32) -> (i32, i32, i32) {
    %c0_i32 = arith.constant 0 : i32
    %c0_i32_0 = arith.constant 0 : i32
    %c0_i32_1 = arith.constant 0 : i32
    return %arg0, %c0_i32, %c0_i32_0 : i32, i32, i32
  }
  func.func @transform_4(%arg0: i32, %arg1: i32) -> (i32, i32, i32) {
    %c0_i32 = arith.constant 0 : i32
    %c0_i32_0 = arith.constant 0 : i32
    return %arg0, %arg1, %c0_i32 : i32, i32, i32
  }
  func.func @transform_5(%arg0: i32, %arg1: i32) -> (i32, i32) {
    %c0_i32 = arith.constant 0 : i32
    %c0_i32_0 = arith.constant 0 : i32
    %c0_i32_1 = arith.constant 0 : i32
    return %c0_i32, %c0_i32_0 : i32, i32
  }
  func.func @transform_6(%arg0: i32, %arg1: i32) -> (i32, i32) {
    %c0_i32 = arith.constant 0 : i32
    %c0_i32_0 = arith.constant 0 : i32
    %c0_i32_1 = arith.constant 0 : i32
    return %c0_i32, %c0_i32_0 : i32, i32
  }
  func.func @transform_7(%arg0: i32, %arg1: i32) -> (i32, i32) {
    %c0_i32 = arith.constant 0 : i32
    %c0_i32_0 = arith.constant 0 : i32
    %c0_i32_1 = arith.constant 0 : i32
    return %c0_i32, %c0_i32_0 : i32, i32
  }
  func.func @transform_8(%arg0: i32, %arg1: i32) -> (i32, i32) {
    %c0_i32 = arith.constant 0 : i32
    %c0_i32_0 = arith.constant 0 : i32
    %c0_i32_1 = arith.constant 0 : i32
    return %c0_i32, %c0_i32_0 : i32, i32
  }
  func.func @transform_9(%arg0: i32, %arg1: i32) -> (i32, i32) {
    %c0_i32 = arith.constant 0 : i32
    %c0_i32_0 = arith.constant 0 : i32
    %c0_i32_1 = arith.constant 0 : i32
    return %c0_i32, %c0_i32_0 : i32, i32
  }
  func.func @transform_10(%arg0: i32, %arg1: i32) -> (i32, i32) {
    %c0_i32 = arith.constant 0 : i32
    %c0_i32_0 = arith.constant 0 : i32
    %c0_i32_1 = arith.constant 0 : i32
    return %c0_i32, %c0_i32_0 : i32, i32
  }
  func.func @transform_11(%arg0: i32, %arg1: i32) -> (i32, i32) {
    %c0_i32 = arith.constant 0 : i32
    %c0_i32_0 = arith.constant 0 : i32
    %c0_i32_1 = arith.constant 0 : i32
    return %c0_i32, %c0_i32_0 : i32, i32
  }
  func.func @transform_12(%arg0: i32, %arg1: i32) -> (i32, i32) {
    %c0_i32 = arith.constant 0 : i32
    %c0_i32_0 = arith.constant 0 : i32
    %c0_i32_1 = arith.constant 0 : i32
    return %c0_i32, %c0_i32_0 : i32, i32
  }
  func.func @transform_13(%arg0: i32, %arg1: i32) -> (i32, i32) {
    %c0_i32 = arith.constant 0 : i32
    %c0_i32_0 = arith.constant 0 : i32
    %c0_i32_1 = arith.constant 0 : i32
    return %c0_i32, %c0_i32_0 : i32, i32
  }
  func.func @transform_14(%arg0: i32, %arg1: i32) -> (i32, i32, i32) {
    %c0_i32 = arith.constant 0 : i32
    %c0_i32_0 = arith.constant 0 : i32
    return %arg0, %arg1, %c0_i32 : i32, i32, i32
  }
  func.func @transform_15(%arg0: i32, %arg1: i32) -> (i32, i32, i32) {
    %c0_i32 = arith.constant 0 : i32
    %c0_i32_0 = arith.constant 0 : i32
    return %arg0, %arg1, %c0_i32 : i32, i32, i32
  }
}

module attributes {stable_mosaic.version = 11 : i64} {
  func.func @_fused_kernel(%arg0: i32, %arg1: i32, %arg2: memref<1x8x32xf32, #tpu.memory_space<vmem>>, %arg3: memref<1x8x32xf32, #tpu.memory_space<vmem>>, %arg4: memref<1x8x32xf32, #tpu.memory_space<vmem>>, %arg5: memref<1x8x32xf32, #tpu.memory_space<vmem>>, %arg6: memref<1x64x32xf32, #tpu.memory_space<vmem>>, %arg7: memref<32x32xf32, #tpu.memory_space<vmem>>, %arg8: memref<1x32xf32, #tpu.memory_space<vmem>>, %arg9: memref<32x32xf32, #tpu.memory_space<vmem>>, %arg10: memref<32x32xf32, #tpu.memory_space<vmem>>, %arg11: memref<1x32xf32, #tpu.memory_space<vmem>>, %arg12: memref<32x32xf32, #tpu.memory_space<vmem>>, %arg13: memref<1x32xf32, #tpu.memory_space<vmem>>, %arg14: memref<32x32xf32, #tpu.memory_space<vmem>>, %arg15: memref<1x32xf32, #tpu.memory_space<vmem>>, %arg16: memref<1x8x32xf32, #tpu.memory_space<vmem>>, %arg17: memref<1x64x32xf32, #tpu.memory_space<vmem>>) attributes {dimension_semantics = [#tpu.dimension_semantics<parallel>, #tpu.dimension_semantics<parallel>], iteration_bounds = array<i64: 2, 1>, scalar_prefetch = 0 : i64, scratch_operands = 0 : i64, tpu.core_type = #tpu.core_type<tc>, window_params = [{transform_indices = @transform_0, window_bounds = array<i64: 1, 8, 32>}, {transform_indices = @transform_1, window_bounds = array<i64: 1, 8, 32>}, {transform_indices = @transform_2, window_bounds = array<i64: 1, 8, 32>}, {transform_indices = @transform_3, window_bounds = array<i64: 1, 8, 32>}, {transform_indices = @transform_4, window_bounds = array<i64: 1, 64, 32>}, {pipeline_mode = #tpu.pipeline_mode<synchronous>, transform_indices = @transform_5, window_bounds = array<i64: 32, 32>}, {pipeline_mode = #tpu.pipeline_mode<synchronous>, transform_indices = @transform_6, window_bounds = array<i64: 1, 32>}, {pipeline_mode = #tpu.pipeline_mode<synchronous>, transform_indices = @transform_7, window_bounds = array<i64: 32, 32>}, {pipeline_mode = #tpu.pipeline_mode<synchronous>, transform_indices = @transform_8, window_bounds = array<i64: 32, 32>}, {pipeline_mode = #tpu.pipeline_mode<synchronous>, transform_indices = @transform_9, window_bounds = array<i64: 1, 32>}, {pipeline_mode = #tpu.pipeline_mode<synchronous>, transform_indices = @transform_10, window_bounds = array<i64: 32, 32>}, {pipeline_mode = #tpu.pipeline_mode<synchronous>, transform_indices = @transform_11, window_bounds = array<i64: 1, 32>}, {pipeline_mode = #tpu.pipeline_mode<synchronous>, transform_indices = @transform_12, window_bounds = array<i64: 32, 32>}, {pipeline_mode = #tpu.pipeline_mode<synchronous>, transform_indices = @transform_13, window_bounds = array<i64: 1, 32>}, {transform_indices = @transform_14, window_bounds = array<i64: 1, 8, 32>}, {transform_indices = @transform_15, window_bounds = array<i64: 1, 64, 32>}]} {
    %c0 = arith.constant 0 : index
    %c0_0 = arith.constant 0 : index
    %c0_1 = arith.constant 0 : index
    %0 = vector.load %arg2[%c0, %c0_0, %c0_1] : memref<1x8x32xf32, #tpu.memory_space<vmem>>, vector<1x8x32xf32>
    %1 = vector.shape_cast %0 : vector<1x8x32xf32> to vector<8x32xf32>
    %c0_2 = arith.constant 0 : index
    %c0_3 = arith.constant 0 : index
    %c0_4 = arith.constant 0 : index
    %2 = vector.load %arg3[%c0_2, %c0_3, %c0_4] : memref<1x8x32xf32, #tpu.memory_space<vmem>>, vector<1x8x32xf32>
    %3 = vector.shape_cast %2 : vector<1x8x32xf32> to vector<8x32xf32>
    %c0_5 = arith.constant 0 : index
    %c0_6 = arith.constant 0 : index
    %c0_7 = arith.constant 0 : index
    %4 = vector.load %arg4[%c0_5, %c0_6, %c0_7] : memref<1x8x32xf32, #tpu.memory_space<vmem>>, vector<1x8x32xf32>
    %5 = vector.shape_cast %4 : vector<1x8x32xf32> to vector<8x32xf32>
    %c0_8 = arith.constant 0 : index
    %c0_9 = arith.constant 0 : index
    %c0_10 = arith.constant 0 : index
    %6 = vector.load %arg5[%c0_8, %c0_9, %c0_10] : memref<1x8x32xf32, #tpu.memory_space<vmem>>, vector<1x8x32xf32>
    %7 = vector.shape_cast %6 : vector<1x8x32xf32> to vector<8x32xf32>
    %c0_11 = arith.constant 0 : index
    %c0_12 = arith.constant 0 : index
    %c0_13 = arith.constant 0 : index
    %8 = vector.load %arg6[%c0_11, %c0_12, %c0_13] : memref<1x64x32xf32, #tpu.memory_space<vmem>>, vector<1x64x32xf32>
    %9 = vector.shape_cast %8 : vector<1x64x32xf32> to vector<64x32xf32>
    %c0_14 = arith.constant 0 : index
    %c0_15 = arith.constant 0 : index
    %10 = vector.load %arg7[%c0_14, %c0_15] : memref<32x32xf32, #tpu.memory_space<vmem>>, vector<32x32xf32>
    %cst = arith.constant dense<0.000000e+00> : vector<8x32xf32>
    %11 = tpu.matmul %1, %10, %cst {dimension_numbers = #tpu.dot_dimension_numbers<[1], [0], [0], [1], [0, 0, 1, 1], [], []>} : vector<8x32xf32>, vector<32x32xf32>, vector<8x32xf32> -> vector<8x32xf32>
    %c0_16 = arith.constant 0 : index
    %c0_17 = arith.constant 0 : index
    %12 = vector.load %arg8[%c0_16, %c0_17] : memref<1x32xf32, #tpu.memory_space<vmem>>, vector<1x32xf32>
    %13 = vector.broadcast %12 : vector<1x32xf32> to vector<8x32xf32>
    %14 = arith.addf %11, %13 : vector<8x32xf32>
    %cst_18 = arith.constant 0.000000e+00 : f32
    %15 = vector.broadcast %cst_18 : f32 to vector<8x32xf32>
    %16 = arith.maximumf %14, %15 : vector<8x32xf32>
    %c0_19 = arith.constant 0 : index
    %c0_20 = arith.constant 0 : index
    %17 = vector.load %arg9[%c0_19, %c0_20] : memref<32x32xf32, #tpu.memory_space<vmem>>, vector<32x32xf32>
    %cst_21 = arith.constant dense<0.000000e+00> : vector<8x32xf32>
    %18 = tpu.matmul %16, %17, %cst_21 {dimension_numbers = #tpu.dot_dimension_numbers<[1], [0], [0], [1], [0, 0, 1, 1], [], []>} : vector<8x32xf32>, vector<32x32xf32>, vector<8x32xf32> -> vector<8x32xf32>
    %c0_22 = arith.constant 0 : index
    %c0_23 = arith.constant 0 : index
    %19 = vector.load %arg10[%c0_22, %c0_23] : memref<32x32xf32, #tpu.memory_space<vmem>>, vector<32x32xf32>
    %cst_24 = arith.constant dense<0.000000e+00> : vector<8x32xf32>
    %20 = tpu.matmul %3, %19, %cst_24 {dimension_numbers = #tpu.dot_dimension_numbers<[1], [0], [0], [1], [0, 0, 1, 1], [], []>} : vector<8x32xf32>, vector<32x32xf32>, vector<8x32xf32> -> vector<8x32xf32>
    %21 = arith.addf %18, %20 : vector<8x32xf32>
    %c0_25 = arith.constant 0 : index
    %c0_26 = arith.constant 0 : index
    %22 = vector.load %arg11[%c0_25, %c0_26] : memref<1x32xf32, #tpu.memory_space<vmem>>, vector<1x32xf32>
    %23 = vector.broadcast %22 : vector<1x32xf32> to vector<8x32xf32>
    %24 = arith.addf %21, %23 : vector<8x32xf32>
    %cst_27 = arith.constant 0.000000e+00 : f32
    %25 = vector.broadcast %cst_27 : f32 to vector<8x32xf32>
    %26 = arith.maximumf %24, %25 : vector<8x32xf32>
    %c0_28 = arith.constant 0 : index
    %c0_29 = arith.constant 0 : index
    %c0_30 = arith.constant 0 : index
    %27 = vector.load %arg16[%c0_28, %c0_29, %c0_30] : memref<1x8x32xf32, #tpu.memory_space<vmem>>, vector<1x8x32xf32>
    %28 = vector.shape_cast %27 : vector<1x8x32xf32> to vector<8x32xf32>
    %29 = vector.shape_cast %26 : vector<8x32xf32> to vector<1x8x32xf32>
    tpu.vector_store %arg16[%c0_28, %c0_29, %c0_30], %29 {strides = array<i32>} : memref<1x8x32xf32, #tpu.memory_space<vmem>>, vector<1x8x32xf32>,
    %30 = vector.shape_cast %5 : vector<8x32xf32> to vector<8x1x32xf32>
    %31 = vector.shape_cast %7 : vector<8x32xf32> to vector<1x8x32xf32>
    %32 = vector.broadcast %30 : vector<8x1x32xf32> to vector<8x8x32xf32>
    %33 = vector.broadcast %31 : vector<1x8x32xf32> to vector<8x8x32xf32>
    %34 = arith.addf %32, %33 : vector<8x8x32xf32>
    %35 = vector.shape_cast %34 : vector<8x8x32xf32> to vector<64x32xf32>
    %cst_31 = arith.constant 0.000000e+00 : f32
    %36 = vector.broadcast %cst_31 : f32 to vector<64x32xf32>
    %37 = arith.maximumf %35, %36 : vector<64x32xf32>
    %c0_32 = arith.constant 0 : index
    %c0_33 = arith.constant 0 : index
    %38 = vector.load %arg12[%c0_32, %c0_33] : memref<32x32xf32, #tpu.memory_space<vmem>>, vector<32x32xf32>
    %cst_34 = arith.constant dense<0.000000e+00> : vector<64x32xf32>
    %39 = tpu.matmul %9, %38, %cst_34 {dimension_numbers = #tpu.dot_dimension_numbers<[1], [0], [0], [1], [0, 0, 1, 1], [], []>} : vector<64x32xf32>, vector<32x32xf32>, vector<64x32xf32> -> vector<64x32xf32>
    %c0_35 = arith.constant 0 : index
    %c0_36 = arith.constant 0 : index
    %40 = vector.load %arg13[%c0_35, %c0_36] : memref<1x32xf32, #tpu.memory_space<vmem>>, vector<1x32xf32>
    %41 = vector.broadcast %40 : vector<1x32xf32> to vector<64x32xf32>
    %42 = arith.addf %39, %41 : vector<64x32xf32>
    %cst_37 = arith.constant 0.000000e+00 : f32
    %43 = vector.broadcast %cst_37 : f32 to vector<64x32xf32>
    %44 = arith.maximumf %42, %43 : vector<64x32xf32>
    %45 = arith.addf %44, %37 : vector<64x32xf32>
    %c0_38 = arith.constant 0 : index
    %c0_39 = arith.constant 0 : index
    %46 = vector.load %arg14[%c0_38, %c0_39] : memref<32x32xf32, #tpu.memory_space<vmem>>, vector<32x32xf32>
    %cst_40 = arith.constant dense<0.000000e+00> : vector<64x32xf32>
    %47 = tpu.matmul %45, %46, %cst_40 {dimension_numbers = #tpu.dot_dimension_numbers<[1], [0], [0], [1], [0, 0, 1, 1], [], []>} : vector<64x32xf32>, vector<32x32xf32>, vector<64x32xf32> -> vector<64x32xf32>
    %c0_41 = arith.constant 0 : index
    %c0_42 = arith.constant 0 : index
    %48 = vector.load %arg15[%c0_41, %c0_42] : memref<1x32xf32, #tpu.memory_space<vmem>>, vector<1x32xf32>
    %49 = vector.broadcast %48 : vector<1x32xf32> to vector<64x32xf32>
    %50 = arith.addf %47, %49 : vector<64x32xf32>
    %cst_43 = arith.constant 0.000000e+00 : f32
    %51 = vector.broadcast %cst_43 : f32 to vector<64x32xf32>
    %52 = arith.maximumf %50, %51 : vector<64x32xf32>
    %c0_44 = arith.constant 0 : index
    %c0_45 = arith.constant 0 : index
    %c0_46 = arith.constant 0 : index
    %53 = vector.load %arg17[%c0_44, %c0_45, %c0_46] : memref<1x64x32xf32, #tpu.memory_space<vmem>>, vector<1x64x32xf32>
    %54 = vector.shape_cast %53 : vector<1x64x32xf32> to vector<64x32xf32>
    %55 = vector.shape_cast %52 : vector<64x32xf32> to vector<1x64x32xf32>
    tpu.vector_store %arg17[%c0_44, %c0_45, %c0_46], %55 {strides = array<i32>} : memref<1x64x32xf32, #tpu.memory_space<vmem>>, vector<1x64x32xf32>,
    return
  }
  func.func @transform_0(%arg0: i32, %arg1: i32) -> (i32, i32, i32) {
    %c0_i32 = arith.constant 0 : i32
    %c0_i32_0 = arith.constant 0 : i32
    return %arg0, %arg1, %c0_i32 : i32, i32, i32
  }
  func.func @transform_1(%arg0: i32, %arg1: i32) -> (i32, i32, i32) {
    %c0_i32 = arith.constant 0 : i32
    %c0_i32_0 = arith.constant 0 : i32
    return %arg0, %arg1, %c0_i32 : i32, i32, i32
  }
  func.func @transform_2(%arg0: i32, %arg1: i32) -> (i32, i32, i32) {
    %c0_i32 = arith.constant 0 : i32
    %c0_i32_0 = arith.constant 0 : i32
    return %arg0, %arg1, %c0_i32 : i32, i32, i32
  }
  func.func @transform_3(%arg0: i32, %arg1: i32) -> (i32, i32, i32) {
    %c0_i32 = arith.constant 0 : i32
    %c0_i32_0 = arith.constant 0 : i32
    %c0_i32_1 = arith.constant 0 : i32
    return %arg0, %c0_i32, %c0_i32_0 : i32, i32, i32
  }
  func.func @transform_4(%arg0: i32, %arg1: i32) -> (i32, i32, i32) {
    %c0_i32 = arith.constant 0 : i32
    %c0_i32_0 = arith.constant 0 : i32
    return %arg0, %arg1, %c0_i32 : i32, i32, i32
  }
  func.func @transform_5(%arg0: i32, %arg1: i32) -> (i32, i32) {
    %c0_i32 = arith.constant 0 : i32
    %c0_i32_0 = arith.constant 0 : i32
    %c0_i32_1 = arith.constant 0 : i32
    return %c0_i32, %c0_i32_0 : i32, i32
  }
  func.func @transform_6(%arg0: i32, %arg1: i32) -> (i32, i32) {
    %c0_i32 = arith.constant 0 : i32
    %c0_i32_0 = arith.constant 0 : i32
    %c0_i32_1 = arith.constant 0 : i32
    return %c0_i32, %c0_i32_0 : i32, i32
  }
  func.func @transform_7(%arg0: i32, %arg1: i32) -> (i32, i32) {
    %c0_i32 = arith.constant 0 : i32
    %c0_i32_0 = arith.constant 0 : i32
    %c0_i32_1 = arith.constant 0 : i32
    return %c0_i32, %c0_i32_0 : i32, i32
  }
  func.func @transform_8(%arg0: i32, %arg1: i32) -> (i32, i32) {
    %c0_i32 = arith.constant 0 : i32
    %c0_i32_0 = arith.constant 0 : i32
    %c0_i32_1 = arith.constant 0 : i32
    return %c0_i32, %c0_i32_0 : i32, i32
  }
  func.func @transform_9(%arg0: i32, %arg1: i32) -> (i32, i32) {
    %c0_i32 = arith.constant 0 : i32
    %c0_i32_0 = arith.constant 0 : i32
    %c0_i32_1 = arith.constant 0 : i32
    return %c0_i32, %c0_i32_0 : i32, i32
  }
  func.func @transform_10(%arg0: i32, %arg1: i32) -> (i32, i32) {
    %c0_i32 = arith.constant 0 : i32
    %c0_i32_0 = arith.constant 0 : i32
    %c0_i32_1 = arith.constant 0 : i32
    return %c0_i32, %c0_i32_0 : i32, i32
  }
  func.func @transform_11(%arg0: i32, %arg1: i32) -> (i32, i32) {
    %c0_i32 = arith.constant 0 : i32
    %c0_i32_0 = arith.constant 0 : i32
    %c0_i32_1 = arith.constant 0 : i32
    return %c0_i32, %c0_i32_0 : i32, i32
  }
  func.func @transform_12(%arg0: i32, %arg1: i32) -> (i32, i32) {
    %c0_i32 = arith.constant 0 : i32
    %c0_i32_0 = arith.constant 0 : i32
    %c0_i32_1 = arith.constant 0 : i32
    return %c0_i32, %c0_i32_0 : i32, i32
  }
  func.func @transform_13(%arg0: i32, %arg1: i32) -> (i32, i32) {
    %c0_i32 = arith.constant 0 : i32
    %c0_i32_0 = arith.constant 0 : i32
    %c0_i32_1 = arith.constant 0 : i32
    return %c0_i32, %c0_i32_0 : i32, i32
  }
  func.func @transform_14(%arg0: i32, %arg1: i32) -> (i32, i32, i32) {
    %c0_i32 = arith.constant 0 : i32
    %c0_i32_0 = arith.constant 0 : i32
    return %arg0, %arg1, %c0_i32 : i32, i32, i32
  }
  func.func @transform_15(%arg0: i32, %arg1: i32) -> (i32, i32, i32) {
    %c0_i32 = arith.constant 0 : i32
    %c0_i32_0 = arith.constant 0 : i32
    return %arg0, %arg1, %c0_i32 : i32, i32, i32
  }
}

</mosaic_0001>

<llo_original>
// kernel: tpu_custom_call.1
$region0: #{tpu_custom_call.1}
  #allocation0 [shape = 'u32[]', space=smem, size = 0x4, offset = 0x4, fixed_abs, tag = 'smem constant byte address 0x4 - core index']
  #allocation1 [shape = 'u32[144,128]{1,0:T(1,128)}', space=vmem, size = 0x12000, scoped, tag = 'internal scratch']
  %s0 = inlined_call_operand.vmem [shape: f32[2,8,32], index: 0, kind: input, shape index: {}]
  %s1 = inlined_call_operand.vmem [shape: f32[2,8,32], index: 1, kind: input, shape index: {}]
  %s2 = inlined_call_operand.hbm [shape: f32[2,8,32], index: 2, kind: input, shape index: {}]
  %s3 = inlined_call_operand.hbm [shape: f32[2,8,32], index: 3, kind: input, shape index: {}]
  %s4 = inlined_call_operand.vmem [shape: f32[2,64,32], index: 4, kind: input, shape index: {}]
  %s5 = inlined_call_operand.vmem [shape: f32[32,32], index: 5, kind: input, shape index: {}]
  %s6 = inlined_call_operand.vmem [shape: f32[1,32], index: 6, kind: input, shape index: {}]
  %s7 = inlined_call_operand.vmem [shape: f32[32,32], index: 7, kind: input, shape index: {}]
  %s8 = inlined_call_operand.vmem [shape: f32[32,32], index: 8, kind: input, shape index: {}]
  %s9 = inlined_call_operand.vmem [shape: f32[1,32], index: 9, kind: input, shape index: {}]
  %s10 = inlined_call_operand.vmem [shape: f32[32,32], index: 10, kind: input, shape index: {}]
  %s11 = inlined_call_operand.vmem [shape: f32[1,32], index: 11, kind: input, shape index: {}]
  %s12 = inlined_call_operand.vmem [shape: f32[32,32], index: 12, kind: input, shape index: {}]
  %s13 = inlined_call_operand.vmem [shape: f32[1,32], index: 13, kind: input, shape index: {}]
  %s14 = inlined_call_operand.hbm [shape: f32[2,8,32], index: 14, kind: output, shape index: {0}]
  %s15 = inlined_call_operand.vmem [shape: f32[2,64,32], index: 15, kind: output, shape index: {1}]
  %16 = xla_tuple %s14, %s15
  %s17 = sld [smem:[#allocation0]]
  $region105: #{tpu_custom_call.1} parent=0
    _
  %s19 = ssub.s32 1, %s17
  %s20 = scalar_select 0, %s19, %s17
  $region1: #{tpu_custom_call.1} parent=0
    #allocation2 [shape = 'u8[8192]{0}', space=vmem, size = 0x2000, scoped, tag = 'input window, operand 2']
    #allocation3 [shape = 's32[2]{0}', space=sflag, size = 0x8, scoped, tag = 'scoped memory for tpu_custom_call.1']
    #allocation4 [shape = 's32[2]{0}', space=sflag, size = 0x8, scoped, tag = 'scoped memory for tpu_custom_call.1']
    #allocation5 [shape = 'u8[8192]{0}', space=vmem, size = 0x2000, scoped, tag = 'input window, operand 3']
    #allocation6 [shape = 's32[2]{0}', space=sflag, size = 0x8, scoped, tag = 'scoped memory for tpu_custom_call.1']
    #allocation7 [shape = 'u8[8192]{0}', space=vmem, size = 0x2000, scoped, tag = 'output window, operand 0']
    %21 = vsyncpa [#allocation3], 0
    %s22 = scalar_lea.sflag [#allocation3], 1
    %23 = vsyncpa %s22, 0
    %24 = vsyncpa [#allocation6], 0
    %s25 = scalar_lea.sflag [#allocation6], 1
    %26 = vsyncpa %s25, 0
    %27 = vsyncpa [#allocation4], 0
    %s28 = scalar_lea.sflag [#allocation4], 1
    %29 = vsyncpa %s28, 0
    loop: start=0, step=1, limit=4
    $region2: #{tpu_custom_call.1} parent=1 // loop_pre_header
      _
    $region3: #{tpu_custom_call.1} parent=1 // loop_header
      %s31 = sphi 0, %s35
      %p32 = scmp.ge.s32.totalorder %s31, 4
      %s38 = sphi 0, %s50
      %s39 = sphi 0, %s46
      %s40 = sphi 0, %s38
      %s41 = sphi 0, %s39
      %s42 = sphi 0, %s40
      %s43 = sphi 0, %s41
      %s55 = sphi 0, %s57
      %s58 = sphi 0, %s55
      %s59 = sphi 0, %s58
      %s75 = sphi 0, %s59
      %s83 = sphi 0, %s85
      %s86 = sphi 0, %s83
      %s87 = sphi 0, %s86
      %s103 = sphi 0, %s87
      %s111 = sphi 0, %s113
      %s114 = sphi 0, %s111
      %s115 = sphi 0, %s114
      %s131 = sphi 0, %s115
      %s137 = sphi 0, %s139
      %s140 = sphi 0, %s137
      %s141 = sphi 0, %s140
      %s157 = sphi 0, %s141
      %s165 = sphi 0, %s167
      %s168 = sphi 0, %s165
      %s169 = sphi 0, %s168
      %s185 = sphi 0, %s169
      %s189 = sphi 0, %s189
      %s191 = sphi 0, %s189
      %s192 = sphi 0, %s191
      %s206 = sphi 0, %s192
      %s210 = sphi 0, %s210
      %s212 = sphi 0, %s210
      %s213 = sphi 0, %s212
      %s227 = sphi 0, %s213
      %s231 = sphi 0, %s231
      %s233 = sphi 0, %s231
      %s234 = sphi 0, %s233
      %s248 = sphi 0, %s234
      %s252 = sphi 0, %s252
      %s254 = sphi 0, %s252
      %s255 = sphi 0, %s254
      %s269 = sphi 0, %s255
      %s273 = sphi 0, %s273
      %s275 = sphi 0, %s273
      %s276 = sphi 0, %s275
      %s290 = sphi 0, %s276
      %s294 = sphi 0, %s294
      %s296 = sphi 0, %s294
      %s297 = sphi 0, %s296
      %s311 = sphi 0, %s297
      %s315 = sphi 0, %s315
      %s317 = sphi 0, %s315
      %s318 = sphi 0, %s317
      %s332 = sphi 0, %s318
      %s336 = sphi 0, %s336
      %s338 = sphi 0, %s336
      %s339 = sphi 0, %s338
      %s353 = sphi 0, %s339
      %s357 = sphi 0, %s357
      %s359 = sphi 0, %s357
      %s360 = sphi 0, %s359
      %s374 = sphi 0, %s360
      %s382 = sphi 0, %s384
      %s385 = sphi 0, %s382
      %s386 = sphi 0, %s385
      %s402 = sphi 0, %s386
      %s410 = sphi 0, %s412
      %s413 = sphi 0, %s410
      %s414 = sphi 0, %s413
      %s430 = sphi 0, %s414
    $region4: #{tpu_custom_call.1} parent=1 // loop_header_branch
      %34 = sbr.rel (%p32) target = $region8
    $region5: #{tpu_custom_call.1} parent=1 // loop_body
      %s36 = ssub.s32 %s31, 1
      %s37 = ssub.s32 %s31, 2
      %s44 = sadd.s32 1, %s39
      %p45 = scmp.ge.s32.totalorder %s44, 1
      %s46 = scalar_select %p45, 0, %s44
      %s47 = sadd.s32 1, %s38
      %s48 = scalar_select %p45, %s47, %s38
      %p49 = scmp.ge.s32.totalorder %s48, 2
      %s50 = scalar_select %p49, 0, %s48
      %s51 = ssub.s32 %s38, %s50
      %s52 = ssub.s32 %s39, %s46
      %s53 = sor.u32 %s51, %s52
      %p54 = scmp.eq.s32.totalorder %s53, 0
      %s56 = sadd.s32 %s55, 1
      %s57 = scalar_select %p54, %s55, %s56
      %p60 = pneg %p54
      %p61 = scmp.eq.s32.totalorder %s31, 1
      %p62 = por %p60, %p61
      %p63 = scmp.ne.s32.totalorder %s55, %s58
      %p64 = scmp.eq.s32.totalorder %s31, 0
      %p65 = por %p63, %p64
      %p66 = scmp.ne.s32.totalorder %s55, %s58
      %p67 = scmp.eq.s32.totalorder %s36, 1
      %p68 = por %p66, %p67
      %p69 = scmp.ne.s32.totalorder %s58, %s59
      %p70 = scmp.eq.s32.totalorder %s36, 0
      %p71 = por %p69, %p70
      %p72 = scmp.ne.s32.totalorder %s58, %s59
      %p73 = scmp.eq.s32.totalorder %s37, 1
      %p74 = por %p72, %p73
      %p76 = scmp.ne.s32.totalorder %s59, %s75
      %p77 = scmp.eq.s32.totalorder %s37, 0
      %p78 = por %p76, %p77
      %s79 = ssub.s32 %s38, %s50
      %s80 = ssub.s32 %s39, %s46
      %s81 = sor.u32 %s79, %s80
      %p82 = scmp.eq.s32.totalorder %s81, 0
      %s84 = sadd.s32 %s83, 1
      %s85 = scalar_select %p82, %s83, %s84
      %p88 = pneg %p82
      %p89 = scmp.eq.s32.totalorder %s31, 1
      %p90 = por %p88, %p89
      %p91 = scmp.ne.s32.totalorder %s83, %s86
      %p92 = scmp.eq.s32.totalorder %s31, 0
      %p93 = por %p91, %p92
      %p94 = scmp.ne.s32.totalorder %s83, %s86
      %p95 = scmp.eq.s32.totalorder %s36, 1
      %p96 = por %p94, %p95
      %p97 = scmp.ne.s32.totalorder %s86, %s87
      %p98 = scmp.eq.s32.totalorder %s36, 0
      %p99 = por %p97, %p98
      %p100 = scmp.ne.s32.totalorder %s86, %s87
      %p101 = scmp.eq.s32.totalorder %s37, 1
      %p102 = por %p100, %p101
      %p104 = scmp.ne.s32.totalorder %s87, %s103
      %p105 = scmp.eq.s32.totalorder %s37, 0
      %p106 = por %p104, %p105
      %s107 = ssub.s32 %s38, %s50
      %s108 = ssub.s32 %s39, %s46
      %s109 = sor.u32 %s107, %s108
      %p110 = scmp.eq.s32.totalorder %s109, 0
      %s112 = sadd.s32 %s111, 1
      %s113 = scalar_select %p110, %s111, %s112
      %p116 = pneg %p110
      %p117 = scmp.eq.s32.totalorder %s31, 1
      %p118 = por %p116, %p117
      %p119 = scmp.ne.s32.totalorder %s111, %s114
      %p120 = scmp.eq.s32.totalorder %s31, 0
      %p121 = por %p119, %p120
      %p122 = scmp.ne.s32.totalorder %s111, %s114
      %p123 = scmp.eq.s32.totalorder %s36, 1
      %p124 = por %p122, %p123
      %p125 = scmp.ne.s32.totalorder %s114, %s115
      %p126 = scmp.eq.s32.totalorder %s36, 0
      %p127 = por %p125, %p126
      %p128 = scmp.ne.s32.totalorder %s114, %s115
      %p129 = scmp.eq.s32.totalorder %s37, 1
      %p130 = por %p128, %p129
      %p132 = scmp.ne.s32.totalorder %s115, %s131
      %p133 = scmp.eq.s32.totalorder %s37, 0
      %p134 = por %p132, %p133
      %s135 = ssub.s32 %s38, %s50
      %p136 = scmp.eq.s32.totalorder %s135, 0
      %s138 = sadd.s32 %s137, 1
      %s139 = scalar_select %p136, %s137, %s138
      %p142 = pneg %p136
      %p143 = scmp.eq.s32.totalorder %s31, 1
      %p144 = por %p142, %p143
      %p145 = scmp.ne.s32.totalorder %s137, %s140
      %p146 = scmp.eq.s32.totalorder %s31, 0
      %p147 = por %p145, %p146
      %p148 = scmp.ne.s32.totalorder %s137, %s140
      %p149 = scmp.eq.s32.totalorder %s36, 1
      %p150 = por %p148, %p149
      %p151 = scmp.ne.s32.totalorder %s140, %s141
      %p152 = scmp.eq.s32.totalorder %s36, 0
      %p153 = por %p151, %p152
      %p154 = scmp.ne.s32.totalorder %s140, %s141
      %p155 = scmp.eq.s32.totalorder %s37, 1
      %p156 = por %p154, %p155
      %p158 = scmp.ne.s32.totalorder %s141, %s157
      %p159 = scmp.eq.s32.totalorder %s37, 0
      %p160 = por %p158, %p159
      %s161 = ssub.s32 %s38, %s50
      %s162 = ssub.s32 %s39, %s46
      %s163 = sor.u32 %s161, %s162
      %p164 = scmp.eq.s32.totalorder %s163, 0
      %s166 = sadd.s32 %s165, 1
      %s167 = scalar_select %p164, %s165, %s166
      %p170 = pneg %p164
      %p171 = scmp.eq.s32.totalorder %s31, 1
      %p172 = por %p170, %p171
      %p173 = scmp.ne.s32.totalorder %s165, %s168
      %p174 = scmp.eq.s32.totalorder %s31, 0
      %p175 = por %p173, %p174
      %p176 = scmp.ne.s32.totalorder %s165, %s168
      %p177 = scmp.eq.s32.totalorder %s36, 1
      %p178 = por %p176, %p177
      %p179 = scmp.ne.s32.totalorder %s168, %s169
      %p180 = scmp.eq.s32.totalorder %s36, 0
      %p181 = por %p179, %p180
      %p182 = scmp.ne.s32.totalorder %s168, %s169
      %p183 = scmp.eq.s32.totalorder %s37, 1
      %p184 = por %p182, %p183
      %p186 = scmp.ne.s32.totalorder %s169, %s185
      %p187 = scmp.eq.s32.totalorder %s37, 0
      %p188 = por %p186, %p187
      %s190 = sadd.s32 %s189, 1
      %p193 = scmp.eq.s32.totalorder %s31, 1
      %p194 = scmp.ne.s32.totalorder %s189, %s191
      %p195 = scmp.eq.s32.totalorder %s31, 0
      %p196 = por %p194, %p195
      %p197 = scmp.ne.s32.totalorder %s189, %s191
      %p198 = scmp.eq.s32.totalorder %s36, 1
      %p199 = por %p197, %p198
      %p200 = scmp.ne.s32.totalorder %s191, %s192
      %p201 = scmp.eq.s32.totalorder %s36, 0
      %p202 = por %p200, %p201
      %p203 = scmp.ne.s32.totalorder %s191, %s192
      %p204 = scmp.eq.s32.totalorder %s37, 1
      %p205 = por %p203, %p204
      %p207 = scmp.ne.s32.totalorder %s192, %s206
      %p208 = scmp.eq.s32.totalorder %s37, 0
      %p209 = por %p207, %p208
      %s211 = sadd.s32 %s210, 1
      %p214 = scmp.eq.s32.totalorder %s31, 1
      %p215 = scmp.ne.s32.totalorder %s210, %s212
      %p216 = scmp.eq.s32.totalorder %s31, 0
      %p217 = por %p215, %p216
      %p218 = scmp.ne.s32.totalorder %s210, %s212
      %p219 = scmp.eq.s32.totalorder %s36, 1
      %p220 = por %p218, %p219
      %p221 = scmp.ne.s32.totalorder %s212, %s213
      %p222 = scmp.eq.s32.totalorder %s36, 0
      %p223 = por %p221, %p222
      %p224 = scmp.ne.s32.totalorder %s212, %s213
      %p225 = scmp.eq.s32.totalorder %s37, 1
      %p226 = por %p224, %p225
      %p228 = scmp.ne.s32.totalorder %s213, %s227
      %p229 = scmp.eq.s32.totalorder %s37, 0
      %p230 = por %p228, %p229
      %s232 = sadd.s32 %s231, 1
      %p235 = scmp.eq.s32.totalorder %s31, 1
      %p236 = scmp.ne.s32.totalorder %s231, %s233
      %p237 = scmp.eq.s32.totalorder %s31, 0
      %p238 = por %p236, %p237
      %p239 = scmp.ne.s32.totalorder %s231, %s233
      %p240 = scmp.eq.s32.totalorder %s36, 1
      %p241 = por %p239, %p240
      %p242 = scmp.ne.s32.totalorder %s233, %s234
      %p243 = scmp.eq.s32.totalorder %s36, 0
      %p244 = por %p242, %p243
      %p245 = scmp.ne.s32.totalorder %s233, %s234
      %p246 = scmp.eq.s32.totalorder %s37, 1
      %p247 = por %p245, %p246
      %p249 = scmp.ne.s32.totalorder %s234, %s248
      %p250 = scmp.eq.s32.totalorder %s37, 0
      %p251 = por %p249, %p250
      %s253 = sadd.s32 %s252, 1
      %p256 = scmp.eq.s32.totalorder %s31, 1
      %p257 = scmp.ne.s32.totalorder %s252, %s254
      %p258 = scmp.eq.s32.totalorder %s31, 0
      %p259 = por %p257, %p258
      %p260 = scmp.ne.s32.totalorder %s252, %s254
      %p261 = scmp.eq.s32.totalorder %s36, 1
      %p262 = por %p260, %p261
      %p263 = scmp.ne.s32.totalorder %s254, %s255
      %p264 = scmp.eq.s32.totalorder %s36, 0
      %p265 = por %p263, %p264
      %p266 = scmp.ne.s32.totalorder %s254, %s255
      %p267 = scmp.eq.s32.totalorder %s37, 1
      %p268 = por %p266, %p267
      %p270 = scmp.ne.s32.totalorder %s255, %s269
      %p271 = scmp.eq.s32.totalorder %s37, 0
      %p272 = por %p270, %p271
      %s274 = sadd.s32 %s273, 1
      %p277 = scmp.eq.s32.totalorder %s31, 1
      %p278 = scmp.ne.s32.totalorder %s273, %s275
      %p279 = scmp.eq.s32.totalorder %s31, 0
      %p280 = por %p278, %p279
      %p281 = scmp.ne.s32.totalorder %s273, %s275
      %p282 = scmp.eq.s32.totalorder %s36, 1
      %p283 = por %p281, %p282
      %p284 = scmp.ne.s32.totalorder %s275, %s276
      %p285 = scmp.eq.s32.totalorder %s36, 0
      %p286 = por %p284, %p285
      %p287 = scmp.ne.s32.totalorder %s275, %s276
      %p288 = scmp.eq.s32.totalorder %s37, 1
      %p289 = por %p287, %p288
      %p291 = scmp.ne.s32.totalorder %s276, %s290
      %p292 = scmp.eq.s32.totalorder %s37, 0
      %p293 = por %p291, %p292
      %s295 = sadd.s32 %s294, 1
      %p298 = scmp.eq.s32.totalorder %s31, 1
      %p299 = scmp.ne.s32.totalorder %s294, %s296
      %p300 = scmp.eq.s32.totalorder %s31, 0
      %p301 = por %p299, %p300
      %p302 = scmp.ne.s32.totalorder %s294, %s296
      %p303 = scmp.eq.s32.totalorder %s36, 1
      %p304 = por %p302, %p303
      %p305 = scmp.ne.s32.totalorder %s296, %s297
      %p306 = scmp.eq.s32.totalorder %s36, 0
      %p307 = por %p305, %p306
      %p308 = scmp.ne.s32.totalorder %s296, %s297
      %p309 = scmp.eq.s32.totalorder %s37, 1
      %p310 = por %p308, %p309
      %p312 = scmp.ne.s32.totalorder %s297, %s311
      %p313 = scmp.eq.s32.totalorder %s37, 0
      %p314 = por %p312, %p313
      %s316 = sadd.s32 %s315, 1
      %p319 = scmp.eq.s32.totalorder %s31, 1
      %p320 = scmp.ne.s32.totalorder %s315, %s317
      %p321 = scmp.eq.s32.totalorder %s31, 0
      %p322 = por %p320, %p321
      %p323 = scmp.ne.s32.totalorder %s315, %s317
      %p324 = scmp.eq.s32.totalorder %s36, 1
      %p325 = por %p323, %p324
      %p326 = scmp.ne.s32.totalorder %s317, %s318
      %p327 = scmp.eq.s32.totalorder %s36, 0
      %p328 = por %p326, %p327
      %p329 = scmp.ne.s32.totalorder %s317, %s318
      %p330 = scmp.eq.s32.totalorder %s37, 1
      %p331 = por %p329, %p330
      %p333 = scmp.ne.s32.totalorder %s318, %s332
      %p334 = scmp.eq.s32.totalorder %s37, 0
      %p335 = por %p333, %p334
      %s337 = sadd.s32 %s336, 1
      %p340 = scmp.eq.s32.totalorder %s31, 1
      %p341 = scmp.ne.s32.totalorder %s336, %s338
      %p342 = scmp.eq.s32.totalorder %s31, 0
      %p343 = por %p341, %p342
      %p344 = scmp.ne.s32.totalorder %s336, %s338
      %p345 = scmp.eq.s32.totalorder %s36, 1
      %p346 = por %p344, %p345
      %p347 = scmp.ne.s32.totalorder %s338, %s339
      %p348 = scmp.eq.s32.totalorder %s36, 0
      %p349 = por %p347, %p348
      %p350 = scmp.ne.s32.totalorder %s338, %s339
      %p351 = scmp.eq.s32.totalorder %s37, 1
      %p352 = por %p350, %p351
      %p354 = scmp.ne.s32.totalorder %s339, %s353
      %p355 = scmp.eq.s32.totalorder %s37, 0
      %p356 = por %p354, %p355
      %s358 = sadd.s32 %s357, 1
      %p361 = scmp.eq.s32.totalorder %s31, 1
      %p362 = scmp.ne.s32.totalorder %s357, %s359
      %p363 = scmp.eq.s32.totalorder %s31, 0
      %p364 = por %p362, %p363
      %p365 = scmp.ne.s32.totalorder %s357, %s359
      %p366 = scmp.eq.s32.totalorder %s36, 1
      %p367 = por %p365, %p366
      %p368 = scmp.ne.s32.totalorder %s359, %s360
      %p369 = scmp.eq.s32.totalorder %s36, 0
      %p370 = por %p368, %p369
      %p371 = scmp.ne.s32.totalorder %s359, %s360
      %p372 = scmp.eq.s32.totalorder %s37, 1
      %p373 = por %p371, %p372
      %p375 = scmp.ne.s32.totalorder %s360, %s374
      %p376 = scmp.eq.s32.totalorder %s37, 0
      %p377 = por %p375, %p376
      %s378 = ssub.s32 %s38, %s50
      %s379 = ssub.s32 %s39, %s46
      %s380 = sor.u32 %s378, %s379
      %p381 = scmp.eq.s32.totalorder %s380, 0
      %s383 = sadd.s32 %s382, 1
      %s384 = scalar_select %p381, %s382, %s383
      %p387 = pneg %p381
      %p388 = scmp.eq.s32.totalorder %s31, 1
      %p389 = por %p387, %p388
      %p390 = scmp.ne.s32.totalorder %s382, %s385
      %p391 = scmp.eq.s32.totalorder %s31, 0
      %p392 = por %p390, %p391
      %p393 = scmp.ne.s32.totalorder %s382, %s385
      %p394 = scmp.eq.s32.totalorder %s36, 1
      %p395 = por %p393, %p394
      %p396 = scmp.ne.s32.totalorder %s385, %s386
      %p397 = scmp.eq.s32.totalorder %s36, 0
      %p398 = por %p396, %p397
      %p399 = scmp.ne.s32.totalorder %s385, %s386
      %p400 = scmp.eq.s32.totalorder %s37, 1
      %p401 = por %p399, %p400
      %p403 = scmp.ne.s32.totalorder %s386, %s402
      %p404 = scmp.eq.s32.totalorder %s37, 0
      %p405 = por %p403, %p404
      %s406 = ssub.s32 %s38, %s50
      %s407 = ssub.s32 %s39, %s46
      %s408 = sor.u32 %s406, %s407
      %p409 = scmp.eq.s32.totalorder %s408, 0
      %s411 = sadd.s32 %s410, 1
      %s412 = scalar_select %p409, %s410, %s411
      %p415 = pneg %p409
      %p416 = scmp.eq.s32.totalorder %s31, 1
      %p417 = por %p415, %p416
      %p418 = scmp.ne.s32.totalorder %s410, %s413
      %p419 = scmp.eq.s32.totalorder %s31, 0
      %p420 = por %p418, %p419
      %p421 = scmp.ne.s32.totalorder %s410, %s413
      %p422 = scmp.eq.s32.totalorder %s36, 1
      %p423 = por %p421, %p422
      %p424 = scmp.ne.s32.totalorder %s413, %s414
      %p425 = scmp.eq.s32.totalorder %s36, 0
      %p426 = por %p424, %p425
      %p427 = scmp.ne.s32.totalorder %s413, %s414
      %p428 = scmp.eq.s32.totalorder %s37, 1
      %p429 = por %p427, %p428
      %p431 = scmp.ne.s32.totalorder %s414, %s430
      %p432 = scmp.eq.s32.totalorder %s37, 0
      %p433 = por %p431, %p432
      %p434 = scmp.le.s32.totalorder 1, %s31
      %p435 = scmp.lt.s32.totalorder %s31, 3
      %p436 = pnand %p434, %p435
      %p437 = pneg %p436
      // Predicated region
      $region9: #{tpu_custom_call.1} parent=5 // pred_check
        _
      $region10: #{tpu_custom_call.1} parent=5 // pred_check_branch
        %439 = sbr.rel (%p436) target = $region12
      $region11: #{tpu_custom_call.1} parent=5 // pred_region
        %s440 = ssub.s32 %s31, 1
        // Predicated region
        $region13: #{tpu_custom_call.1} parent=11 // pred_check
          %p441 = pneg %p202
        $region14: #{tpu_custom_call.1} parent=11 // pred_check_branch
          %443 = sbr.rel (%p441) target = $region16
        $region15: #{tpu_custom_call.1} parent=11 // pred_region
          _
        $region16: #{tpu_custom_call.1} parent=11 // pred_fallthru
          _
        // Predicated region
        $region17: #{tpu_custom_call.1} parent=11 // pred_check
          %p444 = pneg %p223
        $region18: #{tpu_custom_call.1} parent=11 // pred_check_branch
          %446 = sbr.rel (%p444) target = $region20
        $region19: #{tpu_custom_call.1} parent=11 // pred_region
          _
        $region20: #{tpu_custom_call.1} parent=11 // pred_fallthru
          _
        // Predicated region
        $region21: #{tpu_custom_call.1} parent=11 // pred_check
          %p447 = pneg %p244
        $region22: #{tpu_custom_call.1} parent=11 // pred_check_branch
          %449 = sbr.rel (%p447) target = $region24
        $region23: #{tpu_custom_call.1} parent=11 // pred_region
          _
        $region24: #{tpu_custom_call.1} parent=11 // pred_fallthru
          _
        // Predicated region
        $region25: #{tpu_custom_call.1} parent=11 // pred_check
          %p450 = pneg %p265
        $region26: #{tpu_custom_call.1} parent=11 // pred_check_branch
          %452 = sbr.rel (%p450) target = $region28
        $region27: #{tpu_custom_call.1} parent=11 // pred_region
          _
        $region28: #{tpu_custom_call.1} parent=11 // pred_fallthru
          _
        // Predicated region
        $region29: #{tpu_custom_call.1} parent=11 // pred_check
          %p453 = pneg %p286
        $region30: #{tpu_custom_call.1} parent=11 // pred_check_branch
          %455 = sbr.rel (%p453) target = $region32
        $region31: #{tpu_custom_call.1} parent=11 // pred_region
          _
        $region32: #{tpu_custom_call.1} parent=11 // pred_fallthru
          _
        // Predicated region
        $region33: #{tpu_custom_call.1} parent=11 // pred_check
          %p456 = pneg %p307
        $region34: #{tpu_custom_call.1} parent=11 // pred_check_branch
          %458 = sbr.rel (%p456) target = $region36
        $region35: #{tpu_custom_call.1} parent=11 // pred_region
          _
        $region36: #{tpu_custom_call.1} parent=11 // pred_fallthru
          _
        // Predicated region
        $region37: #{tpu_custom_call.1} parent=11 // pred_check
          %p459 = pneg %p328
        $region38: #{tpu_custom_call.1} parent=11 // pred_check_branch
          %461 = sbr.rel (%p459) target = $region40
        $region39: #{tpu_custom_call.1} parent=11 // pred_region
          _
        $region40: #{tpu_custom_call.1} parent=11 // pred_fallthru
          _
        // Predicated region
        $region41: #{tpu_custom_call.1} parent=11 // pred_check
          %p462 = pneg %p349
        $region42: #{tpu_custom_call.1} parent=11 // pred_check_branch
          %464 = sbr.rel (%p462) target = $region44
        $region43: #{tpu_custom_call.1} parent=11 // pred_region
          _
        $region44: #{tpu_custom_call.1} parent=11 // pred_fallthru
          _
        // Predicated region
        $region45: #{tpu_custom_call.1} parent=11 // pred_check
          %p465 = pneg %p370
        $region46: #{tpu_custom_call.1} parent=11 // pred_check_branch
          %467 = sbr.rel (%p465) target = $region48
        $region47: #{tpu_custom_call.1} parent=11 // pred_region
          _
        $region48: #{tpu_custom_call.1} parent=11 // pred_fallthru
          _
      $region12: #{tpu_custom_call.1} parent=5 // pred_fallthru
        _
      %p468 = scmp.lt.s32.totalorder %s31, 2
      // Predicated region
      $region49: #{tpu_custom_call.1} parent=5 // pred_check
        %p469 = pneg %p468
      $region50: #{tpu_custom_call.1} parent=5 // pred_check_branch
        %471 = sbr.rel (%p469) target = $region52
      $region51: #{tpu_custom_call.1} parent=5 // pred_region
        // Predicated region
        $region53: #{tpu_custom_call.1} parent=51 // pred_check
          %p472 = pneg %p65
        $region54: #{tpu_custom_call.1} parent=51 // pred_check_branch
          %474 = sbr.rel (%p472) target = $region56
        $region55: #{tpu_custom_call.1} parent=51 // pred_region
          %p475 = scmp.lt.s32.totalorder %s38, 1
          %s476 = scalar_select %p475, %s38, 1
          %p477 = scmp.lt.s32.totalorder %s39, 0
          %s478 = scalar_select %p477, %s39, 0
          %s479 = sadd.s32 %s478, %s476
          %s480 = smul.addr %s479, 8
          %s481 = scalar_lea.vmem %s0, %s480
        $region56: #{tpu_custom_call.1} parent=51 // pred_fallthru
          _
        // Predicated region
        $region57: #{tpu_custom_call.1} parent=51 // pred_check
          %p482 = pneg %p93
        $region58: #{tpu_custom_call.1} parent=51 // pred_check_branch
          %484 = sbr.rel (%p482) target = $region60
        $region59: #{tpu_custom_call.1} parent=51 // pred_region
          %p485 = scmp.lt.s32.totalorder %s38, 1
          %s486 = scalar_select %p485, %s38, 1
          %p487 = scmp.lt.s32.totalorder %s39, 0
          %s488 = scalar_select %p487, %s39, 0
          %s489 = sadd.s32 %s488, %s486
          %s490 = smul.addr %s489, 8
          %s491 = scalar_lea.vmem %s1, %s490
        $region60: #{tpu_custom_call.1} parent=51 // pred_fallthru
          _
        // Predicated region
        $region61: #{tpu_custom_call.1} parent=51 // pred_check
          %p492 = pneg %p121
        $region62: #{tpu_custom_call.1} parent=51 // pred_check_branch
          %494 = sbr.rel (%p492) target = $region64
        $region63: #{tpu_custom_call.1} parent=51 // pred_region
          %s495 = sand.u32 %s111, 1
          %s496 = scalar_lea.sflag [#allocation3], %s495
          %s497 = sand.u32 %s111, 1
          %s498 = smul.addr %s497, 8
          %s499 = scalar_lea.vmem [#allocation2], %s498
          %s501 = ssub.s32 128, 128
          %502 = vsyncadd %s496, %s501
          %s503 = sadd.s32 %s39, %s38
          %s504 = smul.addr %s503, 128
          %s505 = scalar_lea.hbm %s2, %s504
          %s507 = sshll.u32 %s499, 4
          %s508 = int_to_ptr.vmem [resolvable:$true] %s507
          %510 = dma.hbm_to_vmem [thread:$0]  %s505, 128, %s508, %s496
        $region64: #{tpu_custom_call.1} parent=51 // pred_fallthru
          _
        // Predicated region
        $region65: #{tpu_custom_call.1} parent=51 // pred_check
          %p511 = pneg %p147
        $region66: #{tpu_custom_call.1} parent=51 // pred_check_branch
          %513 = sbr.rel (%p511) target = $region68
        $region67: #{tpu_custom_call.1} parent=51 // pred_region
          %s514 = sand.u32 %s137, 1
          %s515 = scalar_lea.sflag [#allocation6], %s514
          %s516 = sand.u32 %s137, 1
          %s517 = smul.addr %s516, 8
          %s518 = scalar_lea.vmem [#allocation5], %s517
          %s520 = ssub.s32 128, 128
          %521 = vsyncadd %s515, %s520
          %s522 = smul.addr %s38, 128
          %s523 = scalar_lea.hbm %s3, %s522
          %s525 = sshll.u32 %s518, 4
          %s526 = int_to_ptr.vmem [resolvable:$true] %s525
          %528 = dma.hbm_to_vmem [thread:$0]  %s523, 128, %s526, %s515
        $region68: #{tpu_custom_call.1} parent=51 // pred_fallthru
          _
        // Predicated region
        $region69: #{tpu_custom_call.1} parent=51 // pred_check
          %p529 = pneg %p175
        $region70: #{tpu_custom_call.1} parent=51 // pred_check_branch
          %531 = sbr.rel (%p529) target = $region72
        $region71: #{tpu_custom_call.1} parent=51 // pred_region
          %s532 = smul.u32 8, %s39
          %p533 = scmp.lt.s32.totalorder %s38, 1
          %s534 = scalar_select %p533, %s38, 1
          %p535 = scmp.lt.s32.totalorder %s532, 7
          %s536 = scalar_select %p535, %s532, 7
          %s537 = smul.addr %s534, 8
          %s538 = sadd.s32 %s536, %s537
          %s539 = smul.addr %s538, 8
          %s540 = scalar_lea.vmem %s4, %s539
          %s541 = smul.u32 8, %s39
        $region72: #{tpu_custom_call.1} parent=51 // pred_fallthru
          _
      $region52: #{tpu_custom_call.1} parent=5 // pred_fallthru
        _
      %p542 = scmp.le.s32.totalorder 1, %s31
      %p543 = scmp.lt.s32.totalorder %s31, 3
      %p544 = pnand %p542, %p543
      %p545 = pneg %p544
      // Predicated region
      $region73: #{tpu_custom_call.1} parent=5 // pred_check
        _
      $region74: #{tpu_custom_call.1} parent=5 // pred_check_branch
        %547 = sbr.rel (%p544) target = $region76
      $region75: #{tpu_custom_call.1} parent=5 // pred_region
        %s548 = ssub.s32 %s31, 1
        %s549 = sand.u32 %s114, 1
        %s550 = scalar_lea.sflag [#allocation3], %s549
        %s551 = sand.u32 %s114, 1
        %s552 = smul.addr %s551, 8
        %s553 = scalar_lea.vmem [#allocation2], %s552
        // Predicated region
        $region77: #{tpu_custom_call.1} parent=75 // pred_check
          %p554 = pneg %p127
        $region78: #{tpu_custom_call.1} parent=75 // pred_check_branch
          %556 = sbr.rel (%p554) target = $region80
        $region79: #{tpu_custom_call.1} parent=75 // pred_region
          %557 = dma.done %s550, 128
        $region80: #{tpu_custom_call.1} parent=75 // pred_fallthru
          _
        %s558 = sand.u32 %s140, 1
        %s559 = scalar_lea.sflag [#allocation6], %s558
        %s560 = sand.u32 %s140, 1
        %s561 = smul.addr %s560, 8
        %s562 = scalar_lea.vmem [#allocation5], %s561
        // Predicated region
        $region81: #{tpu_custom_call.1} parent=75 // pred_check
          %p563 = pneg %p153
        $region82: #{tpu_custom_call.1} parent=75 // pred_check_branch
          %565 = sbr.rel (%p563) target = $region84
        $region83: #{tpu_custom_call.1} parent=75 // pred_region
          %566 = dma.done %s559, 128
        $region84: #{tpu_custom_call.1} parent=75 // pred_fallthru
          _
        %p567 = scmp.lt.s32.totalorder %s40, 1
        %s568 = scalar_select %p567, %s40, 1
        %p569 = scmp.lt.s32.totalorder %s41, 0
        %s570 = scalar_select %p569, %s41, 0
        %s571 = sadd.s32 %s570, %s568
        %s572 = smul.addr %s571, 8
        %s573 = scalar_lea.vmem %s0, %s572
        %p574 = pneg %p71
        %p575 = pneg %p68
        %p576 = scmp.lt.s32.totalorder %s40, 1
        %s577 = scalar_select %p576, %s40, 1
        %p578 = scmp.lt.s32.totalorder %s41, 0
        %s579 = scalar_select %p578, %s41, 0
        %s580 = sadd.s32 %s579, %s577
        %s581 = smul.addr %s580, 8
        %s582 = scalar_lea.vmem %s1, %s581
        %p583 = pneg %p99
        %p584 = pneg %p96
        %s585 = sand.u32 %s114, 1
        %s586 = scalar_lea.sflag [#allocation3], %s585
        %s587 = sand.u32 %s114, 1
        %s588 = smul.addr %s587, 8
        %s589 = scalar_lea.vmem [#allocation2], %s588
        %p590 = pneg %p127
        %p591 = pneg %p124
        %s592 = sand.u32 %s140, 1
        %s593 = scalar_lea.sflag [#allocation6], %s592
        %s594 = sand.u32 %s140, 1
        %s595 = smul.addr %s594, 8
        %s596 = scalar_lea.vmem [#allocation5], %s595
        %p597 = pneg %p153
        %p598 = pneg %p150
        %s599 = smul.u32 8, %s41
        %p600 = scmp.lt.s32.totalorder %s40, 1
        %s601 = scalar_select %p600, %s40, 1
        %p602 = scmp.lt.s32.totalorder %s599, 7
        %s603 = scalar_select %p602, %s599, 7
        %s604 = smul.addr %s601, 8
        %s605 = sadd.s32 %s603, %s604
        %s606 = smul.addr %s605, 8
        %s607 = scalar_lea.vmem %s4, %s606
        %p608 = pneg %p181
        %p609 = pneg %p178
        %p610 = pneg %p202
        %p611 = pneg %p199
        %p612 = pneg %p223
        %p613 = pneg %p220
        %p614 = pneg %p244
        %p615 = pneg %p241
        %p616 = pneg %p265
        %p617 = pneg %p262
        %p618 = pneg %p286
        %p619 = pneg %p283
        %p620 = pneg %p307
        %p621 = pneg %p304
        %p622 = pneg %p328
        %p623 = pneg %p325
        %p624 = pneg %p349
        %p625 = pneg %p346
        %p626 = pneg %p370
        %p627 = pneg %p367
        %p628 = pneg %p398
        %p629 = pneg %p395
        %s630 = sand.u32 %s385, 1
        %s631 = scalar_lea.sflag [#allocation4], %s630
        %s632 = sand.u32 %s385, 1
        %s633 = smul.addr %s632, 8
        %s634 = scalar_lea.vmem [#allocation7], %s633
        %p635 = pneg %p426
        %p636 = pneg %p423
        %s637 = smul.u32 8, %s41
        %p638 = scmp.lt.s32.totalorder %s40, 1
        %s639 = scalar_select %p638, %s40, 1
        %p640 = scmp.lt.s32.totalorder %s637, 7
        %s641 = scalar_select %p640, %s637, 7
        %s642 = smul.addr %s639, 8
        %s643 = sadd.s32 %s641, %s642
        %s644 = smul.addr %s643, 8
        %s645 = scalar_lea.vmem %s15, %s644
        %p646 = scmp.lt.s32.totalorder %s40, 1
        %s647 = scalar_select %p646, %s40, 1
        %p648 = scmp.lt.s32.totalorder %s41, 0
        %s649 = scalar_select %p648, %s41, 0
        %s650 = sadd.s32 %s649, %s647
        %s651 = smul.addr %s650, 8
        %s652 = scalar_lea.vmem %s0, %s651
        %p653 = scmp.lt.s32.totalorder %s40, 1
        %s654 = scalar_select %p653, %s40, 1
        %p655 = scmp.lt.s32.totalorder %s41, 0
        %s656 = scalar_select %p655, %s41, 0
        %s657 = sadd.s32 %s656, %s654
        %s658 = smul.addr %s657, 8
        %s659 = scalar_lea.vmem %s1, %s658
        %s660 = smul.u32 8, %s41
        %p661 = scmp.lt.s32.totalorder %s40, 1
        %s662 = scalar_select %p661, %s40, 1
        %p663 = scmp.lt.s32.totalorder %s660, 7
        %s664 = scalar_select %p663, %s660, 7
        %s665 = smul.addr %s662, 8
        %s666 = sadd.s32 %s664, %s665
        %s667 = smul.addr %s666, 8
        %s668 = scalar_lea.vmem %s4, %s667
        %s669 = smul.u32 8, %s41
        %s670 = smul.u32 8, %s41
        %p671 = scmp.lt.s32.totalorder %s40, 1
        %s672 = scalar_select %p671, %s40, 1
        %p673 = scmp.lt.s32.totalorder %s670, 7
        %s674 = scalar_select %p673, %s670, 7
        %s675 = smul.addr %s672, 8
        %s676 = sadd.s32 %s674, %s675
        %s677 = smul.addr %s676, 8
        %s678 = scalar_lea.vmem %s15, %s677
        %s679 = smul.u32 8, %s41
        %v680 = vld [vmem:[%s652] sm:$0xff]
        %v681 = vld [vmem:[%s659] sm:$0xff]
        %v682 = vld [vmem:[%s553] sm:$0xff]
        %v683 = vld [vmem:[%s562] sm:$0xff]
        %v684 = vld [vmem:[%s668] sm:$0xff]
        %v685 = vld [vmem:[%s668 + $0x8] sm:$0xff]
        %v686 = vld [vmem:[%s668 + $0x10] sm:$0xff]
        %v687 = vld [vmem:[%s668 + $0x18] sm:$0xff]
        %v688 = vld [vmem:[%s668 + $0x20] sm:$0xff]
        %v689 = vld [vmem:[%s668 + $0x28] sm:$0xff]
        %v690 = vld [vmem:[%s668 + $0x30] sm:$0xff]
        %v691 = vld [vmem:[%s668 + $0x38] sm:$0xff]
        %v692 = vld [vmem:[%s5] sm:$0xff]
        %v693 = vld [vmem:[%s5 + $0x8] sm:$0xff]
        %v694 = vld [vmem:[%s5 + $0x10] sm:$0xff]
        %v695 = vld [vmem:[%s5 + $0x18] sm:$0xff]
        %v696 = vld [vmem:[%s6] sm:$0x1]
        %v698 = vlaneseq
        %v699 = vshrl.u32 %v698, 7
        %v700 = vsub.s32 0, %v699
        %v701 = vrot.slane %v696, %v700
        %vm703 = vcmask 261120
        %v705 = vsel %vm703, %v680, 0
        %707 = vmatprep.subr.mxu0 0.0
        %708 = vmatpush1.msra.mxu0 0.0
        %709 = vmatprep.subr.mxu0 0.0
        %710 = vmatpush1.msra.mxu0 0.0
        %711 = vmatprep.subr.mxu0 0.0
        %712 = vmatpush1.msra.mxu0 0.0
        %713 = vmatprep.subr.mxu0 0.0
        %714 = vmatpush1.msra.mxu0 0.0
        %715 = vmatprep.subr.mxu0 0.0
        %716 = vmatpush1.msra.mxu0 0.0
        %717 = vmatprep.subr.mxu0 0.0
        %718 = vmatpush1.msra.mxu0 0.0
        %719 = vmatprep.subr.mxu0 0.0
        %720 = vmatpush1.msra.mxu0 0.0
        %721 = vmatprep.subr.mxu0 0.0
        %722 = vmatpush1.msra.mxu0 0.0
        %723 = vmatprep.subr.mxu0 0.0
        %724 = vmatpush1.msra.mxu0 0.0
        %725 = vmatprep.subr.mxu0 0.0
        %726 = vmatpush1.msra.mxu0 0.0
        %727 = vmatprep.subr.mxu0 0.0
        %728 = vmatpush1.msra.mxu0 0.0
        %729 = vmatprep.subr.mxu0 0.0
        %730 = vmatpush1.msra.mxu0 0.0
        %731 = vmatprep.subr.mxu0 0.0
        %732 = vmatpush1.msra.mxu0 %v695
        %733 = vmatprep.subr.mxu0 0.0
        %734 = vmatpush1.msra.mxu0 %v694
        %735 = vmatprep.subr.mxu0 0.0
        %736 = vmatpush1.msra.mxu0 %v693
        %737 = vmatprep.subr.mxu0 0.0
        %738 = vmatpush1.msra.mxu0 %v692
        %739 = vmatprep.subr.mxu0 0.0
        %740 = vmatpush2.msra.mxu0 0.0
        %741 = vmatprep.subr.mxu0 0.0
        %742 = vmatpush2.msra.mxu0 0.0
        %743 = vmatprep.subr.mxu0 0.0
        %744 = vmatpush2.msra.mxu0 0.0
        %745 = vmatprep.subr.mxu0 0.0
        %746 = vmatpush2.msra.mxu0 0.0
        %747 = vmatprep.subr.mxu0 0.0
        %748 = vmatpush2.msra.mxu0 0.0
        %749 = vmatprep.subr.mxu0 0.0
        %750 = vmatpush2.msra.mxu0 0.0
        %751 = vmatprep.subr.mxu0 0.0
        %752 = vmatpush2.msra.mxu0 0.0
        %753 = vmatprep.subr.mxu0 0.0
        %754 = vmatpush2.msra.mxu0 0.0
        %755 = vmatprep.subr.mxu0 0.0
        %756 = vmatpush2.msra.mxu0 0.0
        %757 = vmatprep.subr.mxu0 0.0
        %758 = vmatpush2.msra.mxu0 0.0
        %759 = vmatprep.subr.mxu0 0.0
        %760 = vmatpush2.msra.mxu0 0.0
        %761 = vmatprep.subr.mxu0 0.0
        %762 = vmatpush2.msra.mxu0 0.0
        %763 = vmatprep.subr.mxu0 0.0
        %764 = vmatpush2.msra.mxu0 0.0
        %765 = vmatprep.subr.mxu0 0.0
        %766 = vmatpush2.msra.mxu0 0.0
        %767 = vmatprep.subr.mxu0 0.0
        %768 = vmatpush2.msra.mxu0 0.0
        %769 = vmatprep.subr.mxu0 0.0
        %770 = vmatpush2.msra.mxu0 0.0
        %771 = vmatprep.mubr.f32.mxu0 0.0
        %772 = vmatmul.mubr.f32.gmra.mxu0 %v705
        %v773 = vpop.f32.mrf.mxu0
        %v774 = vadd.f32 %v701, %v773
        %v775 = vpop.f32.mrf.mxu0
        %776 = vdwg.mxu0
        %v777 = vmax.f32 %v774, 0.0
        %v778 = vld [vmem:[%s7] sm:$0xff]
        %v779 = vld [vmem:[%s7 + $0x8] sm:$0xff]
        %v780 = vld [vmem:[%s7 + $0x10] sm:$0xff]
        %v781 = vld [vmem:[%s7 + $0x18] sm:$0xff]
        %v782 = vld [vmem:[%s8] sm:$0xff]
        %v783 = vld [vmem:[%s8 + $0x8] sm:$0xff]
        %v784 = vld [vmem:[%s8 + $0x10] sm:$0xff]
        %v785 = vld [vmem:[%s8 + $0x18] sm:$0xff]
        %v787 = vsel %vm703, %v681, 0
        %789 = vmatprep.subr.mxu0 0.0
        %790 = vmatpush1.msra.mxu0 0.0
        %791 = vmatprep.subr.mxu0 0.0
        %792 = vmatpush1.msra.mxu0 0.0
        %793 = vmatprep.subr.mxu0 0.0
        %794 = vmatpush1.msra.mxu0 0.0
        %795 = vmatprep.subr.mxu0 0.0
        %796 = vmatpush1.msra.mxu0 0.0
        %797 = vmatprep.subr.mxu0 0.0
        %798 = vmatpush1.msra.mxu0 0.0
        %799 = vmatprep.subr.mxu0 0.0
        %800 = vmatpush1.msra.mxu0 0.0
        %801 = vmatprep.subr.mxu0 0.0
        %802 = vmatpush1.msra.mxu0 0.0
        %803 = vmatprep.subr.mxu0 0.0
        %804 = vmatpush1.msra.mxu0 0.0
        %805 = vmatprep.subr.mxu0 0.0
        %806 = vmatpush1.msra.mxu0 0.0
        %807 = vmatprep.subr.mxu0 0.0
        %808 = vmatpush1.msra.mxu0 0.0
        %809 = vmatprep.subr.mxu0 0.0
        %810 = vmatpush1.msra.mxu0 0.0
        %811 = vmatprep.subr.mxu0 0.0
        %812 = vmatpush1.msra.mxu0 0.0
        %813 = vmatprep.subr.mxu0 0.0
        %814 = vmatpush1.msra.mxu0 %v785
        %815 = vmatprep.subr.mxu0 0.0
        %816 = vmatpush1.msra.mxu0 %v784
        %817 = vmatprep.subr.mxu0 0.0
        %818 = vmatpush1.msra.mxu0 %v783
        %819 = vmatprep.subr.mxu0 0.0
        %820 = vmatpush1.msra.mxu0 %v782
        %821 = vmatprep.subr.mxu0 0.0
        %822 = vmatpush2.msra.mxu0 0.0
        %823 = vmatprep.subr.mxu0 0.0
        %824 = vmatpush2.msra.mxu0 0.0
        %825 = vmatprep.subr.mxu0 0.0
        %826 = vmatpush2.msra.mxu0 0.0
        %827 = vmatprep.subr.mxu0 0.0
        %828 = vmatpush2.msra.mxu0 0.0
        %829 = vmatprep.subr.mxu0 0.0
        %830 = vmatpush2.msra.mxu0 0.0
        %831 = vmatprep.subr.mxu0 0.0
        %832 = vmatpush2.msra.mxu0 0.0
        %833 = vmatprep.subr.mxu0 0.0
        %834 = vmatpush2.msra.mxu0 0.0
        %835 = vmatprep.subr.mxu0 0.0
        %836 = vmatpush2.msra.mxu0 0.0
        %837 = vmatprep.subr.mxu0 0.0
        %838 = vmatpush2.msra.mxu0 0.0
        %839 = vmatprep.subr.mxu0 0.0
        %840 = vmatpush2.msra.mxu0 0.0
        %841 = vmatprep.subr.mxu0 0.0
        %842 = vmatpush2.msra.mxu0 0.0
        %843 = vmatprep.subr.mxu0 0.0
        %844 = vmatpush2.msra.mxu0 0.0
        %845 = vmatprep.subr.mxu0 0.0
        %846 = vmatpush2.msra.mxu0 0.0
        %847 = vmatprep.subr.mxu0 0.0
        %848 = vmatpush2.msra.mxu0 0.0
        %849 = vmatprep.subr.mxu0 0.0
        %850 = vmatpush2.msra.mxu0 0.0
        %851 = vmatprep.subr.mxu0 0.0
        %852 = vmatpush2.msra.mxu0 0.0
        %853 = vmatprep.mubr.f32.mxu0 0.0
        %854 = vmatmul.mubr.f32.gmra.mxu0 %v787
        %v855 = vpop.f32.mrf.mxu0
        %v856 = vadd.f32 0.0, %v855
        %v857 = vpop.f32.mrf.mxu0
        %858 = vdwg.mxu0
        %v860 = vsel %vm703, %v777, 0
        %862 = vmatprep.subr.mxu0 0.0
        %863 = vmatpush1.msra.mxu0 0.0
        %864 = vmatprep.subr.mxu0 0.0
        %865 = vmatpush1.msra.mxu0 0.0
        %866 = vmatprep.subr.mxu0 0.0
        %867 = vmatpush1.msra.mxu0 0.0
        %868 = vmatprep.subr.mxu0 0.0
        %869 = vmatpush1.msra.mxu0 0.0
        %870 = vmatprep.subr.mxu0 0.0
        %871 = vmatpush1.msra.mxu0 0.0
        %872 = vmatprep.subr.mxu0 0.0
        %873 = vmatpush1.msra.mxu0 0.0
        %874 = vmatprep.subr.mxu0 0.0
        %875 = vmatpush1.msra.mxu0 0.0
        %876 = vmatprep.subr.mxu0 0.0
        %877 = vmatpush1.msra.mxu0 0.0
        %878 = vmatprep.subr.mxu0 0.0
        %879 = vmatpush1.msra.mxu0 0.0
        %880 = vmatprep.subr.mxu0 0.0
        %881 = vmatpush1.msra.mxu0 0.0
        %882 = vmatprep.subr.mxu0 0.0
        %883 = vmatpush1.msra.mxu0 0.0
        %884 = vmatprep.subr.mxu0 0.0
        %885 = vmatpush1.msra.mxu0 0.0
        %886 = vmatprep.subr.mxu0 0.0
        %887 = vmatpush1.msra.mxu0 %v781
        %888 = vmatprep.subr.mxu0 0.0
        %889 = vmatpush1.msra.mxu0 %v780
        %890 = vmatprep.subr.mxu0 0.0
        %891 = vmatpush1.msra.mxu0 %v779
        %892 = vmatprep.subr.mxu0 0.0
        %893 = vmatpush1.msra.mxu0 %v778
        %894 = vmatprep.subr.mxu0 0.0
        %895 = vmatpush2.msra.mxu0 0.0
        %896 = vmatprep.subr.mxu0 0.0
        %897 = vmatpush2.msra.mxu0 0.0
        %898 = vmatprep.subr.mxu0 0.0
        %899 = vmatpush2.msra.mxu0 0.0
        %900 = vmatprep.subr.mxu0 0.0
        %901 = vmatpush2.msra.mxu0 0.0
        %902 = vmatprep.subr.mxu0 0.0
        %903 = vmatpush2.msra.mxu0 0.0
        %904 = vmatprep.subr.mxu0 0.0
        %905 = vmatpush2.msra.mxu0 0.0
        %906 = vmatprep.subr.mxu0 0.0
        %907 = vmatpush2.msra.mxu0 0.0
        %908 = vmatprep.subr.mxu0 0.0
        %909 = vmatpush2.msra.mxu0 0.0
        %910 = vmatprep.subr.mxu0 0.0
        %911 = vmatpush2.msra.mxu0 0.0
        %912 = vmatprep.subr.mxu0 0.0
        %913 = vmatpush2.msra.mxu0 0.0
        %914 = vmatprep.subr.mxu0 0.0
        %915 = vmatpush2.msra.mxu0 0.0
        %916 = vmatprep.subr.mxu0 0.0
        %917 = vmatpush2.msra.mxu0 0.0
        %918 = vmatprep.subr.mxu0 0.0
        %919 = vmatpush2.msra.mxu0 0.0
        %920 = vmatprep.subr.mxu0 0.0
        %921 = vmatpush2.msra.mxu0 0.0
        %922 = vmatprep.subr.mxu0 0.0
        %923 = vmatpush2.msra.mxu0 0.0
        %924 = vmatprep.subr.mxu0 0.0
        %925 = vmatpush2.msra.mxu0 0.0
        %926 = vmatprep.mubr.f32.mxu0 0.0
        %927 = vmatmul.mubr.f32.gmra.mxu0 %v860
        %v928 = vpop.f32.mrf.mxu0
        %v929 = vadd.f32 %v856, %v928
        %v930 = vpop.f32.mrf.mxu0
        %931 = vdwg.mxu0
        %v932 = vld [vmem:[%s9] sm:$0x1]
        %v934 = vlaneseq
        %v935 = vshrl.u32 %v934, 7
        %v936 = vsub.s32 0, %v935
        %v937 = vrot.slane %v932, %v936
        %v939 = vadd.f32 %v929, %v937
        %v940 = vmax.f32 %v939, 0.0
        %941 = vst.msk [vmem:[%s634] sm:$0xff] %vm703, %v940
        %v943 = vcombine.high %v682, %v682
        %v945 = vunpack.c.l.s4 1966171168
        %v946 = vunpack.c.0.s8 %v945
        %v947 = vlaneseq
        %v948 = vshrl.u32 %v947, 7
        %v949 = vsub.s32 %v946, %v948
        %v950 = vrot.slane %v682, %v949
        %v952 = vunpack.c.l.s4 1966171168
        %v953 = vunpack.c.0.s8 %v952
        %v954 = vlaneseq
        %v955 = vshrl.u32 %v954, 7
        %v956 = vsub.s32 %v953, %v955
        %v957 = vrot.slane %v943, %v956
        %v958 = vcombine.high %v950, %v950
        %v959 = vcombine.high %v957, %v957
        %v961 = vunpack.c.l.s4 1966171168
        %v962 = vunpack.c.0.s8 %v961
        %v963 = vlaneseq
        %v964 = vshrl.u32 %v963, 7
        %v965 = vsub.s32 %v962, %v964
        %v966 = vrot.slane %v950, %v965
        %v968 = vunpack.c.l.s4 1966171168
        %v969 = vunpack.c.0.s8 %v968
        %v970 = vlaneseq
        %v971 = vshrl.u32 %v970, 7
        %v972 = vsub.s32 %v969, %v971
        %v973 = vrot.slane %v957, %v972
        %v975 = vunpack.c.l.s4 1966171168
        %v976 = vunpack.c.0.s8 %v975
        %v977 = vlaneseq
        %v978 = vshrl.u32 %v977, 7
        %v979 = vsub.s32 %v976, %v978
        %v980 = vrot.slane %v958, %v979
        %v982 = vunpack.c.l.s4 1966171168
        %v983 = vunpack.c.0.s8 %v982
        %v984 = vlaneseq
        %v985 = vshrl.u32 %v984, 7
        %v986 = vsub.s32 %v983, %v985
        %v987 = vrot.slane %v959, %v986
        %v988 = vcombine.high %v966, %v966
        %v989 = vcombine.high %v973, %v973
        %v990 = vcombine.high %v980, %v980
        %v991 = vcombine.high %v987, %v987
        %v992 = vlaneseq
        %v993 = vshrl.u32 %v992, 7
        %v994 = vsub.s32 0, %v993
        %v995 = vrot.slane %v966, %v994
        %v996 = vlaneseq
        %v997 = vshrl.u32 %v996, 7
        %v998 = vsub.s32 0, %v997
        %v999 = vrot.slane %v980, %v998
        %v1000 = vlaneseq
        %v1001 = vshrl.u32 %v1000, 7
        %v1002 = vsub.s32 0, %v1001
        %v1003 = vrot.slane %v988, %v1002
        %v1004 = vlaneseq
        %v1005 = vshrl.u32 %v1004, 7
        %v1006 = vsub.s32 0, %v1005
        %v1007 = vrot.slane %v990, %v1006
        %v1008 = vlaneseq
        %v1009 = vshrl.u32 %v1008, 7
        %v1010 = vsub.s32 0, %v1009
        %v1011 = vrot.slane %v973, %v1010
        %v1012 = vlaneseq
        %v1013 = vshrl.u32 %v1012, 7
        %v1014 = vsub.s32 0, %v1013
        %v1015 = vrot.slane %v987, %v1014
        %v1016 = vlaneseq
        %v1017 = vshrl.u32 %v1016, 7
        %v1018 = vsub.s32 0, %v1017
        %v1019 = vrot.slane %v989, %v1018
        %v1020 = vlaneseq
        %v1021 = vshrl.u32 %v1020, 7
        %v1022 = vsub.s32 0, %v1021
        %v1023 = vrot.slane %v991, %v1022
        %v1032 = vadd.f32 %v995, %v683
        %v1033 = vadd.f32 %v999, %v683
        %v1034 = vadd.f32 %v1003, %v683
        %v1035 = vadd.f32 %v1007, %v683
        %v1036 = vadd.f32 %v1011, %v683
        %v1037 = vadd.f32 %v1015, %v683
        %v1038 = vadd.f32 %v1019, %v683
        %v1039 = vadd.f32 %v1023, %v683
        %v1040 = vmax.f32 %v1032, 0.0
        %v1041 = vmax.f32 %v1033, 0.0
        %v1042 = vmax.f32 %v1034, 0.0
        %v1043 = vmax.f32 %v1035, 0.0
        %v1044 = vmax.f32 %v1036, 0.0
        %v1045 = vmax.f32 %v1037, 0.0
        %v1046 = vmax.f32 %v1038, 0.0
        %v1047 = vmax.f32 %v1039, 0.0
        %v1048 = vld [vmem:[%s10] sm:$0xff]
        %v1049 = vld [vmem:[%s10 + $0x8] sm:$0xff]
        %v1050 = vld [vmem:[%s10 + $0x10] sm:$0xff]
        %v1051 = vld [vmem:[%s10 + $0x18] sm:$0xff]
        %v1052 = vld [vmem:[%s11] sm:$0x1]
        %v1054 = vlaneseq
        %v1055 = vshrl.u32 %v1054, 7
        %v1056 = vsub.s32 0, %v1055
        %v1057 = vrot.slane %v1052, %v1056
        %v1060 = vsel %vm703, %v684, 0
        %v1063 = vsel %vm703, %v685, 0
        %v1066 = vsel %vm703, %v686, 0
        %v1069 = vsel %vm703, %v687, 0
        %v1072 = vsel %vm703, %v688, 0
        %v1075 = vsel %vm703, %v689, 0
        %v1078 = vsel %vm703, %v690, 0
        %v1081 = vsel %vm703, %v691, 0
        %1083 = vmatprep.subr.mxu0 0.0
        %1084 = vmatpush1.msra.mxu0 0.0
        %1085 = vmatprep.subr.mxu0 0.0
        %1086 = vmatpush1.msra.mxu0 0.0
        %1087 = vmatprep.subr.mxu0 0.0
        %1088 = vmatpush1.msra.mxu0 0.0
        %1089 = vmatprep.subr.mxu0 0.0
        %1090 = vmatpush1.msra.mxu0 0.0
        %1091 = vmatprep.subr.mxu0 0.0
        %1092 = vmatpush1.msra.mxu0 0.0
        %1093 = vmatprep.subr.mxu0 0.0
        %1094 = vmatpush1.msra.mxu0 0.0
        %1095 = vmatprep.subr.mxu0 0.0
        %1096 = vmatpush1.msra.mxu0 0.0
        %1097 = vmatprep.subr.mxu0 0.0
        %1098 = vmatpush1.msra.mxu0 0.0
        %1099 = vmatprep.subr.mxu0 0.0
        %1100 = vmatpush1.msra.mxu0 0.0
        %1101 = vmatprep.subr.mxu0 0.0
        %1102 = vmatpush1.msra.mxu0 0.0
        %1103 = vmatprep.subr.mxu0 0.0
        %1104 = vmatpush1.msra.mxu0 0.0
        %1105 = vmatprep.subr.mxu0 0.0
        %1106 = vmatpush1.msra.mxu0 0.0
        %1107 = vmatprep.subr.mxu0 0.0
        %1108 = vmatpush1.msra.mxu0 %v1051
        %1109 = vmatprep.subr.mxu0 0.0
        %1110 = vmatpush1.msra.mxu0 %v1050
        %1111 = vmatprep.subr.mxu0 0.0
        %1112 = vmatpush1.msra.mxu0 %v1049
        %1113 = vmatprep.subr.mxu0 0.0
        %1114 = vmatpush1.msra.mxu0 %v1048
        %1115 = vmatprep.subr.mxu0 0.0
        %1116 = vmatpush2.msra.mxu0 0.0
        %1117 = vmatprep.subr.mxu0 0.0
        %1118 = vmatpush2.msra.mxu0 0.0
        %1119 = vmatprep.subr.mxu0 0.0
        %1120 = vmatpush2.msra.mxu0 0.0
        %1121 = vmatprep.subr.mxu0 0.0
        %1122 = vmatpush2.msra.mxu0 0.0
        %1123 = vmatprep.subr.mxu0 0.0
        %1124 = vmatpush2.msra.mxu0 0.0
        %1125 = vmatprep.subr.mxu0 0.0
        %1126 = vmatpush2.msra.mxu0 0.0
        %1127 = vmatprep.subr.mxu0 0.0
        %1128 = vmatpush2.msra.mxu0 0.0
        %1129 = vmatprep.subr.mxu0 0.0
        %1130 = vmatpush2.msra.mxu0 0.0
        %1131 = vmatprep.subr.mxu0 0.0
        %1132 = vmatpush2.msra.mxu0 0.0
        %1133 = vmatprep.subr.mxu0 0.0
        %1134 = vmatpush2.msra.mxu0 0.0
        %1135 = vmatprep.subr.mxu0 0.0
        %1136 = vmatpush2.msra.mxu0 0.0
        %1137 = vmatprep.subr.mxu0 0.0
        %1138 = vmatpush2.msra.mxu0 0.0
        %1139 = vmatprep.subr.mxu0 0.0
        %1140 = vmatpush2.msra.mxu0 0.0
        %1141 = vmatprep.subr.mxu0 0.0
        %1142 = vmatpush2.msra.mxu0 0.0
        %1143 = vmatprep.subr.mxu0 0.0
        %1144 = vmatpush2.msra.mxu0 0.0
        %1145 = vmatprep.subr.mxu0 0.0
        %1146 = vmatpush2.msra.mxu0 0.0
        %1147 = vmatprep.mubr.f32.mxu0 0.0
        %1148 = vmatmul.mubr.f32.gmra.mxu0 %v1060
        %v1149 = vpop.f32.mrf.mxu0
        %v1150 = vadd.f32 %v1057, %v1149
        %v1151 = vpop.f32.mrf.mxu0
        %1152 = vmatprep.mubr.f32.mxu0 0.0
        %1153 = vmatmul.mubr.f32.gmra.mxu0 %v1063
        %v1154 = vpop.f32.mrf.mxu0
        %v1155 = vadd.f32 %v1057, %v1154
        %v1156 = vpop.f32.mrf.mxu0
        %1157 = vmatprep.mubr.f32.mxu0 0.0
        %1158 = vmatmul.mubr.f32.gmra.mxu0 %v1066
        %v1159 = vpop.f32.mrf.mxu0
        %v1160 = vadd.f32 %v1057, %v1159
        %v1161 = vpop.f32.mrf.mxu0
        %1162 = vmatprep.mubr.f32.mxu0 0.0
        %1163 = vmatmul.mubr.f32.gmra.mxu0 %v1069
        %v1164 = vpop.f32.mrf.mxu0
        %v1165 = vadd.f32 %v1057, %v1164
        %v1166 = vpop.f32.mrf.mxu0
        %1167 = vmatprep.mubr.f32.mxu0 0.0
        %1168 = vmatmul.mubr.f32.gmra.mxu0 %v1072
        %v1169 = vpop.f32.mrf.mxu0
        %v1170 = vadd.f32 %v1057, %v1169
        %v1171 = vpop.f32.mrf.mxu0
        %1172 = vmatprep.mubr.f32.mxu0 0.0
        %1173 = vmatmul.mubr.f32.gmra.mxu0 %v1075
        %v1174 = vpop.f32.mrf.mxu0
        %v1175 = vadd.f32 %v1057, %v1174
        %v1176 = vpop.f32.mrf.mxu0
        %1177 = vmatprep.mubr.f32.mxu0 0.0
        %1178 = vmatmul.mubr.f32.gmra.mxu0 %v1078
        %v1179 = vpop.f32.mrf.mxu0
        %v1180 = vadd.f32 %v1057, %v1179
        %v1181 = vpop.f32.mrf.mxu0
        %1182 = vmatprep.mubr.f32.mxu0 0.0
        %1183 = vmatmul.mubr.f32.gmra.mxu0 %v1081
        %v1184 = vpop.f32.mrf.mxu0
        %v1185 = vadd.f32 %v1057, %v1184
        %v1186 = vpop.f32.mrf.mxu0
        %1187 = vdwg.mxu0
        %v1188 = vmax.f32 %v1150, 0.0
        %v1189 = vmax.f32 %v1155, 0.0
        %v1190 = vmax.f32 %v1160, 0.0
        %v1191 = vmax.f32 %v1165, 0.0
        %v1192 = vmax.f32 %v1170, 0.0
        %v1193 = vmax.f32 %v1175, 0.0
        %v1194 = vmax.f32 %v1180, 0.0
        %v1195 = vmax.f32 %v1185, 0.0
        %v1196 = vadd.f32 %v1188, %v1040
        %v1197 = vadd.f32 %v1189, %v1041
        %v1198 = vadd.f32 %v1190, %v1042
        %v1199 = vadd.f32 %v1191, %v1043
        %v1200 = vadd.f32 %v1192, %v1044
        %v1201 = vadd.f32 %v1193, %v1045
        %v1202 = vadd.f32 %v1194, %v1046
        %v1203 = vadd.f32 %v1195, %v1047
        %v1204 = vld [vmem:[%s12] sm:$0xff]
        %v1205 = vld [vmem:[%s12 + $0x8] sm:$0xff]
        %v1206 = vld [vmem:[%s12 + $0x10] sm:$0xff]
        %v1207 = vld [vmem:[%s12 + $0x18] sm:$0xff]
        %v1208 = vld [vmem:[%s13] sm:$0x1]
        %v1210 = vlaneseq
        %v1211 = vshrl.u32 %v1210, 7
        %v1212 = vsub.s32 0, %v1211
        %v1213 = vrot.slane %v1208, %v1212
        %v1216 = vsel %vm703, %v1196, 0
        %v1219 = vsel %vm703, %v1197, 0
        %v1222 = vsel %vm703, %v1198, 0
        %v1225 = vsel %vm703, %v1199, 0
        %v1228 = vsel %vm703, %v1200, 0
        %v1231 = vsel %vm703, %v1201, 0
        %v1234 = vsel %vm703, %v1202, 0
        %v1237 = vsel %vm703, %v1203, 0
        %1239 = vmatprep.subr.mxu0 0.0
        %1240 = vmatpush1.msra.mxu0 0.0
        %1241 = vmatprep.subr.mxu0 0.0
        %1242 = vmatpush1.msra.mxu0 0.0
        %1243 = vmatprep.subr.mxu0 0.0
        %1244 = vmatpush1.msra.mxu0 0.0
        %1245 = vmatprep.subr.mxu0 0.0
        %1246 = vmatpush1.msra.mxu0 0.0
        %1247 = vmatprep.subr.mxu0 0.0
        %1248 = vmatpush1.msra.mxu0 0.0
        %1249 = vmatprep.subr.mxu0 0.0
        %1250 = vmatpush1.msra.mxu0 0.0
        %1251 = vmatprep.subr.mxu0 0.0
        %1252 = vmatpush1.msra.mxu0 0.0
        %1253 = vmatprep.subr.mxu0 0.0
        %1254 = vmatpush1.msra.mxu0 0.0
        %1255 = vmatprep.subr.mxu0 0.0
        %1256 = vmatpush1.msra.mxu0 0.0
        %1257 = vmatprep.subr.mxu0 0.0
        %1258 = vmatpush1.msra.mxu0 0.0
        %1259 = vmatprep.subr.mxu0 0.0
        %1260 = vmatpush1.msra.mxu0 0.0
        %1261 = vmatprep.subr.mxu0 0.0
        %1262 = vmatpush1.msra.mxu0 0.0
        %1263 = vmatprep.subr.mxu0 0.0
        %1264 = vmatpush1.msra.mxu0 %v1207
        %1265 = vmatprep.subr.mxu0 0.0
        %1266 = vmatpush1.msra.mxu0 %v1206
        %1267 = vmatprep.subr.mxu0 0.0
        %1268 = vmatpush1.msra.mxu0 %v1205
        %1269 = vmatprep.subr.mxu0 0.0
        %1270 = vmatpush1.msra.mxu0 %v1204
        %1271 = vmatprep.subr.mxu0 0.0
        %1272 = vmatpush2.msra.mxu0 0.0
        %1273 = vmatprep.subr.mxu0 0.0
        %1274 = vmatpush2.msra.mxu0 0.0
        %1275 = vmatprep.subr.mxu0 0.0
        %1276 = vmatpush2.msra.mxu0 0.0
        %1277 = vmatprep.subr.mxu0 0.0
        %1278 = vmatpush2.msra.mxu0 0.0
        %1279 = vmatprep.subr.mxu0 0.0
        %1280 = vmatpush2.msra.mxu0 0.0
        %1281 = vmatprep.subr.mxu0 0.0
        %1282 = vmatpush2.msra.mxu0 0.0
        %1283 = vmatprep.subr.mxu0 0.0
        %1284 = vmatpush2.msra.mxu0 0.0
        %1285 = vmatprep.subr.mxu0 0.0
        %1286 = vmatpush2.msra.mxu0 0.0
        %1287 = vmatprep.subr.mxu0 0.0
        %1288 = vmatpush2.msra.mxu0 0.0
        %1289 = vmatprep.subr.mxu0 0.0
        %1290 = vmatpush2.msra.mxu0 0.0
        %1291 = vmatprep.subr.mxu0 0.0
        %1292 = vmatpush2.msra.mxu0 0.0
        %1293 = vmatprep.subr.mxu0 0.0
        %1294 = vmatpush2.msra.mxu0 0.0
        %1295 = vmatprep.subr.mxu0 0.0
        %1296 = vmatpush2.msra.mxu0 0.0
        %1297 = vmatprep.subr.mxu0 0.0
        %1298 = vmatpush2.msra.mxu0 0.0
        %1299 = vmatprep.subr.mxu0 0.0
        %1300 = vmatpush2.msra.mxu0 0.0
        %1301 = vmatprep.subr.mxu0 0.0
        %1302 = vmatpush2.msra.mxu0 0.0
        %1303 = vmatprep.mubr.f32.mxu0 0.0
        %1304 = vmatmul.mubr.f32.gmra.mxu0 %v1216
        %v1305 = vpop.f32.mrf.mxu0
        %v1306 = vadd.f32 %v1213, %v1305
        %v1307 = vpop.f32.mrf.mxu0
        %1308 = vmatprep.mubr.f32.mxu0 0.0
        %1309 = vmatmul.mubr.f32.gmra.mxu0 %v1219
        %v1310 = vpop.f32.mrf.mxu0
        %v1311 = vadd.f32 %v1213, %v1310
        %v1312 = vpop.f32.mrf.mxu0
        %1313 = vmatprep.mubr.f32.mxu0 0.0
        %1314 = vmatmul.mubr.f32.gmra.mxu0 %v1222
        %v1315 = vpop.f32.mrf.mxu0
        %v1316 = vadd.f32 %v1213, %v1315
        %v1317 = vpop.f32.mrf.mxu0
        %1318 = vmatprep.mubr.f32.mxu0 0.0
        %1319 = vmatmul.mubr.f32.gmra.mxu0 %v1225
        %v1320 = vpop.f32.mrf.mxu0
        %v1321 = vadd.f32 %v1213, %v1320
        %v1322 = vpop.f32.mrf.mxu0
        %1323 = vmatprep.mubr.f32.mxu0 0.0
        %1324 = vmatmul.mubr.f32.gmra.mxu0 %v1228
        %v1325 = vpop.f32.mrf.mxu0
        %v1326 = vadd.f32 %v1213, %v1325
        %v1327 = vpop.f32.mrf.mxu0
        %1328 = vmatprep.mubr.f32.mxu0 0.0
        %1329 = vmatmul.mubr.f32.gmra.mxu0 %v1231
        %v1330 = vpop.f32.mrf.mxu0
        %v1331 = vadd.f32 %v1213, %v1330
        %v1332 = vpop.f32.mrf.mxu0
        %1333 = vmatprep.mubr.f32.mxu0 0.0
        %1334 = vmatmul.mubr.f32.gmra.mxu0 %v1234
        %v1335 = vpop.f32.mrf.mxu0
        %v1336 = vadd.f32 %v1213, %v1335
        %v1337 = vpop.f32.mrf.mxu0
        %1338 = vmatprep.mubr.f32.mxu0 0.0
        %1339 = vmatmul.mubr.f32.gmra.mxu0 %v1237
        %v1340 = vpop.f32.mrf.mxu0
        %v1341 = vadd.f32 %v1213, %v1340
        %v1342 = vpop.f32.mrf.mxu0
        %1343 = vdwg.mxu0
        %v1344 = vmax.f32 %v1306, 0.0
        %v1345 = vmax.f32 %v1311, 0.0
        %v1346 = vmax.f32 %v1316, 0.0
        %v1347 = vmax.f32 %v1321, 0.0
        %v1348 = vmax.f32 %v1326, 0.0
        %v1349 = vmax.f32 %v1331, 0.0
        %v1350 = vmax.f32 %v1336, 0.0
        %v1351 = vmax.f32 %v1341, 0.0
        %1352 = vst.msk [vmem:[%s678] sm:$0xff] %vm703, %v1344
        %1353 = vst.msk [vmem:[%s678 + $0x8] sm:$0xff] %vm703, %v1345
        %1354 = vst.msk [vmem:[%s678 + $0x10] sm:$0xff] %vm703, %v1346
        %1355 = vst.msk [vmem:[%s678 + $0x18] sm:$0xff] %vm703, %v1347
        %1356 = vst.msk [vmem:[%s678 + $0x20] sm:$0xff] %vm703, %v1348
        %1357 = vst.msk [vmem:[%s678 + $0x28] sm:$0xff] %vm703, %v1349
        %1358 = vst.msk [vmem:[%s678 + $0x30] sm:$0xff] %vm703, %v1350
        %1359 = vst.msk [vmem:[%s678 + $0x38] sm:$0xff] %vm703, %v1351
        %s1360 = sand.u32 %s385, 1
        %s1361 = scalar_lea.sflag [#allocation4], %s1360
        %s1362 = sand.u32 %s385, 1
        %s1363 = smul.addr %s1362, 8
        %s1364 = scalar_lea.vmem [#allocation7], %s1363
        %s1365 = smul.u32 8, %s41
        %p1366 = scmp.lt.s32.totalorder %s40, 1
        %s1367 = scalar_select %p1366, %s40, 1
        %p1368 = scmp.lt.s32.totalorder %s1365, 7
        %s1369 = scalar_select %p1368, %s1365, 7
        %s1370 = smul.addr %s1367, 8
        %s1371 = sadd.s32 %s1369, %s1370
        %s1372 = smul.addr %s1371, 8
        %s1373 = scalar_lea.vmem %s15, %s1372
        // Predicated region
        $region85: #{tpu_custom_call.1} parent=75 // pred_check
          %p1374 = pneg %p395
        $region86: #{tpu_custom_call.1} parent=75 // pred_check_branch
          %1376 = sbr.rel (%p1374) target = $region88
        $region87: #{tpu_custom_call.1} parent=75 // pred_region
          %s1378 = ssub.s32 128, 128
          %1379 = vsyncadd %s1361, %s1378
          %s1380 = sadd.s32 %s41, %s40
          %s1381 = smul.addr %s1380, 128
          %s1382 = scalar_lea.hbm %s14, %s1381
          %s1384 = sshll.u32 %s1364, 4
          %s1385 = int_to_ptr.vmem [resolvable:$true] %s1384
          %1387 = dma.vmem_to_hbm [thread:$0]  %s1385, 128, %s1382, %s1361
        $region88: #{tpu_custom_call.1} parent=75 // pred_fallthru
          _
        // Predicated region
        $region89: #{tpu_custom_call.1} parent=75 // pred_check
          %p1388 = pneg %p423
        $region90: #{tpu_custom_call.1} parent=75 // pred_check_branch
          %1390 = sbr.rel (%p1388) target = $region92
        $region91: #{tpu_custom_call.1} parent=75 // pred_region
          %s1391 = smul.u32 8, %s41
        $region92: #{tpu_custom_call.1} parent=75 // pred_fallthru
          _
      $region76: #{tpu_custom_call.1} parent=5 // pred_fallthru
        _
      %p1392 = scmp.le.s32.totalorder 2, %s31
      // Predicated region
      $region93: #{tpu_custom_call.1} parent=5 // pred_check
        %p1393 = pneg %p1392
      $region94: #{tpu_custom_call.1} parent=5 // pred_check_branch
        %1395 = sbr.rel (%p1393) target = $region96
      $region95: #{tpu_custom_call.1} parent=5 // pred_region
        %s1396 = ssub.s32 %s31, 2
        // Predicated region
        $region97: #{tpu_custom_call.1} parent=95 // pred_check
          %p1397 = pneg %p401
        $region98: #{tpu_custom_call.1} parent=95 // pred_check_branch
          %1399 = sbr.rel (%p1397) target = $region100
        $region99: #{tpu_custom_call.1} parent=95 // pred_region
          %s1400 = sand.u32 %s386, 1
          %s1401 = scalar_lea.sflag [#allocation4], %s1400
          %s1402 = sand.u32 %s386, 1
          %s1403 = smul.addr %s1402, 8
          %s1404 = scalar_lea.vmem [#allocation7], %s1403
          %1405 = dma.done %s1401, 128
        $region100: #{tpu_custom_call.1} parent=95 // pred_fallthru
          _
        // Predicated region
        $region101: #{tpu_custom_call.1} parent=95 // pred_check
          %p1406 = pneg %p429
        $region102: #{tpu_custom_call.1} parent=95 // pred_check_branch
          %1408 = sbr.rel (%p1406) target = $region104
        $region103: #{tpu_custom_call.1} parent=95 // pred_region
          %s1409 = smul.u32 8, %s43
          %p1410 = scmp.lt.s32.totalorder %s42, 1
          %s1411 = scalar_select %p1410, %s42, 1
          %p1412 = scmp.lt.s32.totalorder %s1409, 7
          %s1413 = scalar_select %p1412, %s1409, 7
          %s1414 = smul.addr %s1411, 8
          %s1415 = sadd.s32 %s1413, %s1414
          %s1416 = smul.addr %s1415, 8
          %s1417 = scalar_lea.vmem %s15, %s1416
        $region104: #{tpu_custom_call.1} parent=95 // pred_fallthru
          _
      $region96: #{tpu_custom_call.1} parent=5 // pred_fallthru
        _
    $region6: #{tpu_custom_call.1} parent=1 // loop_footer
      %s35 = sadd.s32 1, %s31
    $region7: #{tpu_custom_call.1} parent=1 // loop_footer_branch
      %30 = sbr.rel target = $region3
    $region8: #{tpu_custom_call.1} parent=1 // loop_exit
      _
    %1418 = vsyncpa [#allocation3], 1
    %s1419 = scalar_lea.sflag [#allocation3], 1
    %1420 = vsyncpa %s1419, 1
    %1421 = vsyncpa [#allocation6], 1
    %s1422 = scalar_lea.sflag [#allocation6], 1
    %1423 = vsyncpa %s1422, 1
    %1424 = vsyncpa [#allocation4], 1
    %s1425 = scalar_lea.sflag [#allocation4], 1
    %1426 = vsyncpa %s1425, 1

// kernel: tpu_custom_call.1
$region0: #{tpu_custom_call.1}
  #allocation0 [shape = 'u32[]', space=smem, size = 0x4, offset = 0x4, fixed_abs, tag = 'smem constant byte address 0x4 - core index']
  #allocation1 [shape = 'u32[144,128]{1,0:T(1,128)}', space=vmem, size = 0x12000, scoped, tag = 'internal scratch']
  %s0 = inlined_call_operand.vmem [shape: f32[2,8,32], index: 0, kind: input, shape index: {}]
  %s1 = inlined_call_operand.vmem [shape: f32[2,8,32], index: 1, kind: input, shape index: {}]
  %s2 = inlined_call_operand.hbm [shape: f32[2,8,32], index: 2, kind: input, shape index: {}]
  %s3 = inlined_call_operand.hbm [shape: f32[2,8,32], index: 3, kind: input, shape index: {}]
  %s4 = inlined_call_operand.vmem [shape: f32[2,64,32], index: 4, kind: input, shape index: {}]
  %s5 = inlined_call_operand.vmem [shape: f32[32,32], index: 5, kind: input, shape index: {}]
  %s6 = inlined_call_operand.vmem [shape: f32[1,32], index: 6, kind: input, shape index: {}]
  %s7 = inlined_call_operand.vmem [shape: f32[32,32], index: 7, kind: input, shape index: {}]
  %s8 = inlined_call_operand.vmem [shape: f32[32,32], index: 8, kind: input, shape index: {}]
  %s9 = inlined_call_operand.vmem [shape: f32[1,32], index: 9, kind: input, shape index: {}]
  %s10 = inlined_call_operand.vmem [shape: f32[32,32], index: 10, kind: input, shape index: {}]
  %s11 = inlined_call_operand.vmem [shape: f32[1,32], index: 11, kind: input, shape index: {}]
  %s12 = inlined_call_operand.vmem [shape: f32[32,32], index: 12, kind: input, shape index: {}]
  %s13 = inlined_call_operand.vmem [shape: f32[1,32], index: 13, kind: input, shape index: {}]
  %s14 = inlined_call_operand.hbm [shape: f32[2,8,32], index: 14, kind: output, shape index: {0}]
  %s15 = inlined_call_operand.vmem [shape: f32[2,64,32], index: 15, kind: output, shape index: {1}]
  %16 = xla_tuple %s14, %s15
  %s17 = sld [smem:[#allocation0]]
  $region105: #{tpu_custom_call.1} parent=0
    _
  %s19 = ssub.s32 1, %s17
  %s20 = scalar_select 0, %s19, %s17
  $region1: #{tpu_custom_call.1} parent=0
    #allocation2 [shape = 'u8[8192]{0}', space=vmem, size = 0x2000, scoped, tag = 'input window, operand 2']
    #allocation3 [shape = 's32[2]{0}', space=sflag, size = 0x8, scoped, tag = 'scoped memory for tpu_custom_call.1']
    #allocation4 [shape = 's32[2]{0}', space=sflag, size = 0x8, scoped, tag = 'scoped memory for tpu_custom_call.1']
    #allocation5 [shape = 'u8[8192]{0}', space=vmem, size = 0x2000, scoped, tag = 'input window, operand 3']
    #allocation6 [shape = 's32[2]{0}', space=sflag, size = 0x8, scoped, tag = 'scoped memory for tpu_custom_call.1']
    #allocation7 [shape = 'u8[8192]{0}', space=vmem, size = 0x2000, scoped, tag = 'output window, operand 0']
    %21 = vsyncpa [#allocation3], 0
    %s22 = scalar_lea.sflag [#allocation3], 1
    %23 = vsyncpa %s22, 0
    %24 = vsyncpa [#allocation6], 0
    %s25 = scalar_lea.sflag [#allocation6], 1
    %26 = vsyncpa %s25, 0
    %27 = vsyncpa [#allocation4], 0
    %s28 = scalar_lea.sflag [#allocation4], 1
    %29 = vsyncpa %s28, 0
    loop: start=0, step=1, limit=4
    $region2: #{tpu_custom_call.1} parent=1 // loop_pre_header
      _
    $region3: #{tpu_custom_call.1} parent=1 // loop_header
      %s31 = sphi 0, %s35
      %p32 = scmp.ge.s32.totalorder %s31, 4
      %s38 = sphi 0, %s50
      %s39 = sphi 0, %s46
      %s40 = sphi 0, %s38
      %s41 = sphi 0, %s39
      %s42 = sphi 0, %s40
      %s43 = sphi 0, %s41
      %s55 = sphi 0, %s57
      %s58 = sphi 0, %s55
      %s59 = sphi 0, %s58
      %s75 = sphi 0, %s59
      %s83 = sphi 0, %s85
      %s86 = sphi 0, %s83
      %s87 = sphi 0, %s86
      %s103 = sphi 0, %s87
      %s111 = sphi 0, %s113
      %s114 = sphi 0, %s111
      %s115 = sphi 0, %s114
      %s131 = sphi 0, %s115
      %s137 = sphi 0, %s139
      %s140 = sphi 0, %s137
      %s141 = sphi 0, %s140
      %s157 = sphi 0, %s141
      %s165 = sphi 0, %s167
      %s168 = sphi 0, %s165
      %s169 = sphi 0, %s168
      %s185 = sphi 0, %s169
      %s189 = sphi 0, %s189
      %s191 = sphi 0, %s189
      %s192 = sphi 0, %s191
      %s206 = sphi 0, %s192
      %s210 = sphi 0, %s210
      %s212 = sphi 0, %s210
      %s213 = sphi 0, %s212
      %s227 = sphi 0, %s213
      %s231 = sphi 0, %s231
      %s233 = sphi 0, %s231
      %s234 = sphi 0, %s233
      %s248 = sphi 0, %s234
      %s252 = sphi 0, %s252
      %s254 = sphi 0, %s252
      %s255 = sphi 0, %s254
      %s269 = sphi 0, %s255
      %s273 = sphi 0, %s273
      %s275 = sphi 0, %s273
      %s276 = sphi 0, %s275
      %s290 = sphi 0, %s276
      %s294 = sphi 0, %s294
      %s296 = sphi 0, %s294
      %s297 = sphi 0, %s296
      %s311 = sphi 0, %s297
      %s315 = sphi 0, %s315
      %s317 = sphi 0, %s315
      %s318 = sphi 0, %s317
      %s332 = sphi 0, %s318
      %s336 = sphi 0, %s336
      %s338 = sphi 0, %s336
      %s339 = sphi 0, %s338
      %s353 = sphi 0, %s339
      %s357 = sphi 0, %s357
      %s359 = sphi 0, %s357
      %s360 = sphi 0, %s359
      %s374 = sphi 0, %s360
      %s382 = sphi 0, %s384
      %s385 = sphi 0, %s382
      %s386 = sphi 0, %s385
      %s402 = sphi 0, %s386
      %s410 = sphi 0, %s412
      %s413 = sphi 0, %s410
      %s414 = sphi 0, %s413
      %s430 = sphi 0, %s414
    $region4: #{tpu_custom_call.1} parent=1 // loop_header_branch
      %34 = sbr.rel (%p32) target = $region8
    $region5: #{tpu_custom_call.1} parent=1 // loop_body
      %s36 = ssub.s32 %s31, 1
      %s37 = ssub.s32 %s31, 2
      %s44 = sadd.s32 1, %s39
      %p45 = scmp.ge.s32.totalorder %s44, 1
      %s46 = scalar_select %p45, 0, %s44
      %s47 = sadd.s32 1, %s38
      %s48 = scalar_select %p45, %s47, %s38
      %p49 = scmp.ge.s32.totalorder %s48, 2
      %s50 = scalar_select %p49, 0, %s48
      %s51 = ssub.s32 %s38, %s50
      %s52 = ssub.s32 %s39, %s46
      %s53 = sor.u32 %s51, %s52
      %p54 = scmp.eq.s32.totalorder %s53, 0
      %s56 = sadd.s32 %s55, 1
      %s57 = scalar_select %p54, %s55, %s56
      %p60 = pneg %p54
      %p61 = scmp.eq.s32.totalorder %s31, 1
      %p62 = por %p60, %p61
      %p63 = scmp.ne.s32.totalorder %s55, %s58
      %p64 = scmp.eq.s32.totalorder %s31, 0
      %p65 = por %p63, %p64
      %p66 = scmp.ne.s32.totalorder %s55, %s58
      %p67 = scmp.eq.s32.totalorder %s36, 1
      %p68 = por %p66, %p67
      %p69 = scmp.ne.s32.totalorder %s58, %s59
      %p70 = scmp.eq.s32.totalorder %s36, 0
      %p71 = por %p69, %p70
      %p72 = scmp.ne.s32.totalorder %s58, %s59
      %p73 = scmp.eq.s32.totalorder %s37, 1
      %p74 = por %p72, %p73
      %p76 = scmp.ne.s32.totalorder %s59, %s75
      %p77 = scmp.eq.s32.totalorder %s37, 0
      %p78 = por %p76, %p77
      %s79 = ssub.s32 %s38, %s50
      %s80 = ssub.s32 %s39, %s46
      %s81 = sor.u32 %s79, %s80
      %p82 = scmp.eq.s32.totalorder %s81, 0
      %s84 = sadd.s32 %s83, 1
      %s85 = scalar_select %p82, %s83, %s84
      %p88 = pneg %p82
      %p89 = scmp.eq.s32.totalorder %s31, 1
      %p90 = por %p88, %p89
      %p91 = scmp.ne.s32.totalorder %s83, %s86
      %p92 = scmp.eq.s32.totalorder %s31, 0
      %p93 = por %p91, %p92
      %p94 = scmp.ne.s32.totalorder %s83, %s86
      %p95 = scmp.eq.s32.totalorder %s36, 1
      %p96 = por %p94, %p95
      %p97 = scmp.ne.s32.totalorder %s86, %s87
      %p98 = scmp.eq.s32.totalorder %s36, 0
      %p99 = por %p97, %p98
      %p100 = scmp.ne.s32.totalorder %s86, %s87
      %p101 = scmp.eq.s32.totalorder %s37, 1
      %p102 = por %p100, %p101
      %p104 = scmp.ne.s32.totalorder %s87, %s103
      %p105 = scmp.eq.s32.totalorder %s37, 0
      %p106 = por %p104, %p105
      %s107 = ssub.s32 %s38, %s50
      %s108 = ssub.s32 %s39, %s46
      %s109 = sor.u32 %s107, %s108
      %p110 = scmp.eq.s32.totalorder %s109, 0
      %s112 = sadd.s32 %s111, 1
      %s113 = scalar_select %p110, %s111, %s112
      %p116 = pneg %p110
      %p117 = scmp.eq.s32.totalorder %s31, 1
      %p118 = por %p116, %p117
      %p119 = scmp.ne.s32.totalorder %s111, %s114
      %p120 = scmp.eq.s32.totalorder %s31, 0
      %p121 = por %p119, %p120
      %p122 = scmp.ne.s32.totalorder %s111, %s114
      %p123 = scmp.eq.s32.totalorder %s36, 1
      %p124 = por %p122, %p123
      %p125 = scmp.ne.s32.totalorder %s114, %s115
      %p126 = scmp.eq.s32.totalorder %s36, 0
      %p127 = por %p125, %p126
      %p128 = scmp.ne.s32.totalorder %s114, %s115
      %p129 = scmp.eq.s32.totalorder %s37, 1
      %p130 = por %p128, %p129
      %p132 = scmp.ne.s32.totalorder %s115, %s131
      %p133 = scmp.eq.s32.totalorder %s37, 0
      %p134 = por %p132, %p133
      %s135 = ssub.s32 %s38, %s50
      %p136 = scmp.eq.s32.totalorder %s135, 0
      %s138 = sadd.s32 %s137, 1
      %s139 = scalar_select %p136, %s137, %s138
      %p142 = pneg %p136
      %p143 = scmp.eq.s32.totalorder %s31, 1
      %p144 = por %p142, %p143
      %p145 = scmp.ne.s32.totalorder %s137, %s140
      %p146 = scmp.eq.s32.totalorder %s31, 0
      %p147 = por %p145, %p146
      %p148 = scmp.ne.s32.totalorder %s137, %s140
      %p149 = scmp.eq.s32.totalorder %s36, 1
      %p150 = por %p148, %p149
      %p151 = scmp.ne.s32.totalorder %s140, %s141
      %p152 = scmp.eq.s32.totalorder %s36, 0
      %p153 = por %p151, %p152
      %p154 = scmp.ne.s32.totalorder %s140, %s141
      %p155 = scmp.eq.s32.totalorder %s37, 1
      %p156 = por %p154, %p155
      %p158 = scmp.ne.s32.totalorder %s141, %s157
      %p159 = scmp.eq.s32.totalorder %s37, 0
      %p160 = por %p158, %p159
      %s161 = ssub.s32 %s38, %s50
      %s162 = ssub.s32 %s39, %s46
      %s163 = sor.u32 %s161, %s162
      %p164 = scmp.eq.s32.totalorder %s163, 0
      %s166 = sadd.s32 %s165, 1
      %s167 = scalar_select %p164, %s165, %s166
      %p170 = pneg %p164
      %p171 = scmp.eq.s32.totalorder %s31, 1
      %p172 = por %p170, %p171
      %p173 = scmp.ne.s32.totalorder %s165, %s168
      %p174 = scmp.eq.s32.totalorder %s31, 0
      %p175 = por %p173, %p174
      %p176 = scmp.ne.s32.totalorder %s165, %s168
      %p177 = scmp.eq.s32.totalorder %s36, 1
      %p178 = por %p176, %p177
      %p179 = scmp.ne.s32.totalorder %s168, %s169
      %p180 = scmp.eq.s32.totalorder %s36, 0
      %p181 = por %p179, %p180
      %p182 = scmp.ne.s32.totalorder %s168, %s169
      %p183 = scmp.eq.s32.totalorder %s37, 1
      %p184 = por %p182, %p183
      %p186 = scmp.ne.s32.totalorder %s169, %s185
      %p187 = scmp.eq.s32.totalorder %s37, 0
      %p188 = por %p186, %p187
      %s190 = sadd.s32 %s189, 1
      %p193 = scmp.eq.s32.totalorder %s31, 1
      %p194 = scmp.ne.s32.totalorder %s189, %s191
      %p195 = scmp.eq.s32.totalorder %s31, 0
      %p196 = por %p194, %p195
      %p197 = scmp.ne.s32.totalorder %s189, %s191
      %p198 = scmp.eq.s32.totalorder %s36, 1
      %p199 = por %p197, %p198
      %p200 = scmp.ne.s32.totalorder %s191, %s192
      %p201 = scmp.eq.s32.totalorder %s36, 0
      %p202 = por %p200, %p201
      %p203 = scmp.ne.s32.totalorder %s191, %s192
      %p204 = scmp.eq.s32.totalorder %s37, 1
      %p205 = por %p203, %p204
      %p207 = scmp.ne.s32.totalorder %s192, %s206
      %p208 = scmp.eq.s32.totalorder %s37, 0
      %p209 = por %p207, %p208
      %s211 = sadd.s32 %s210, 1
      %p214 = scmp.eq.s32.totalorder %s31, 1
      %p215 = scmp.ne.s32.totalorder %s210, %s212
      %p216 = scmp.eq.s32.totalorder %s31, 0
      %p217 = por %p215, %p216
      %p218 = scmp.ne.s32.totalorder %s210, %s212
      %p219 = scmp.eq.s32.totalorder %s36, 1
      %p220 = por %p218, %p219
      %p221 = scmp.ne.s32.totalorder %s212, %s213
      %p222 = scmp.eq.s32.totalorder %s36, 0
      %p223 = por %p221, %p222
      %p224 = scmp.ne.s32.totalorder %s212, %s213
      %p225 = scmp.eq.s32.totalorder %s37, 1
      %p226 = por %p224, %p225
      %p228 = scmp.ne.s32.totalorder %s213, %s227
      %p229 = scmp.eq.s32.totalorder %s37, 0
      %p230 = por %p228, %p229
      %s232 = sadd.s32 %s231, 1
      %p235 = scmp.eq.s32.totalorder %s31, 1
      %p236 = scmp.ne.s32.totalorder %s231, %s233
      %p237 = scmp.eq.s32.totalorder %s31, 0
      %p238 = por %p236, %p237
      %p239 = scmp.ne.s32.totalorder %s231, %s233
      %p240 = scmp.eq.s32.totalorder %s36, 1
      %p241 = por %p239, %p240
      %p242 = scmp.ne.s32.totalorder %s233, %s234
      %p243 = scmp.eq.s32.totalorder %s36, 0
      %p244 = por %p242, %p243
      %p245 = scmp.ne.s32.totalorder %s233, %s234
      %p246 = scmp.eq.s32.totalorder %s37, 1
      %p247 = por %p245, %p246
      %p249 = scmp.ne.s32.totalorder %s234, %s248
      %p250 = scmp.eq.s32.totalorder %s37, 0
      %p251 = por %p249, %p250
      %s253 = sadd.s32 %s252, 1
      %p256 = scmp.eq.s32.totalorder %s31, 1
      %p257 = scmp.ne.s32.totalorder %s252, %s254
      %p258 = scmp.eq.s32.totalorder %s31, 0
      %p259 = por %p257, %p258
      %p260 = scmp.ne.s32.totalorder %s252, %s254
      %p261 = scmp.eq.s32.totalorder %s36, 1
      %p262 = por %p260, %p261
      %p263 = scmp.ne.s32.totalorder %s254, %s255
      %p264 = scmp.eq.s32.totalorder %s36, 0
      %p265 = por %p263, %p264
      %p266 = scmp.ne.s32.totalorder %s254, %s255
      %p267 = scmp.eq.s32.totalorder %s37, 1
      %p268 = por %p266, %p267
      %p270 = scmp.ne.s32.totalorder %s255, %s269
      %p271 = scmp.eq.s32.totalorder %s37, 0
      %p272 = por %p270, %p271
      %s274 = sadd.s32 %s273, 1
      %p277 = scmp.eq.s32.totalorder %s31, 1
      %p278 = scmp.ne.s32.totalorder %s273, %s275
      %p279 = scmp.eq.s32.totalorder %s31, 0
      %p280 = por %p278, %p279
      %p281 = scmp.ne.s32.totalorder %s273, %s275
      %p282 = scmp.eq.s32.totalorder %s36, 1
      %p283 = por %p281, %p282
      %p284 = scmp.ne.s32.totalorder %s275, %s276
      %p285 = scmp.eq.s32.totalorder %s36, 0
      %p286 = por %p284, %p285
      %p287 = scmp.ne.s32.totalorder %s275, %s276
      %p288 = scmp.eq.s32.totalorder %s37, 1
      %p289 = por %p287, %p288
      %p291 = scmp.ne.s32.totalorder %s276, %s290
      %p292 = scmp.eq.s32.totalorder %s37, 0
      %p293 = por %p291, %p292
      %s295 = sadd.s32 %s294, 1
      %p298 = scmp.eq.s32.totalorder %s31, 1
      %p299 = scmp.ne.s32.totalorder %s294, %s296
      %p300 = scmp.eq.s32.totalorder %s31, 0
      %p301 = por %p299, %p300
      %p302 = scmp.ne.s32.totalorder %s294, %s296
      %p303 = scmp.eq.s32.totalorder %s36, 1
      %p304 = por %p302, %p303
      %p305 = scmp.ne.s32.totalorder %s296, %s297
      %p306 = scmp.eq.s32.totalorder %s36, 0
      %p307 = por %p305, %p306
      %p308 = scmp.ne.s32.totalorder %s296, %s297
      %p309 = scmp.eq.s32.totalorder %s37, 1
      %p310 = por %p308, %p309
      %p312 = scmp.ne.s32.totalorder %s297, %s311
      %p313 = scmp.eq.s32.totalorder %s37, 0
      %p314 = por %p312, %p313
      %s316 = sadd.s32 %s315, 1
      %p319 = scmp.eq.s32.totalorder %s31, 1
      %p320 = scmp.ne.s32.totalorder %s315, %s317
      %p321 = scmp.eq.s32.totalorder %s31, 0
      %p322 = por %p320, %p321
      %p323 = scmp.ne.s32.totalorder %s315, %s317
      %p324 = scmp.eq.s32.totalorder %s36, 1
      %p325 = por %p323, %p324
      %p326 = scmp.ne.s32.totalorder %s317, %s318
      %p327 = scmp.eq.s32.totalorder %s36, 0
      %p328 = por %p326, %p327
      %p329 = scmp.ne.s32.totalorder %s317, %s318
      %p330 = scmp.eq.s32.totalorder %s37, 1
      %p331 = por %p329, %p330
      %p333 = scmp.ne.s32.totalorder %s318, %s332
      %p334 = scmp.eq.s32.totalorder %s37, 0
      %p335 = por %p333, %p334
      %s337 = sadd.s32 %s336, 1
      %p340 = scmp.eq.s32.totalorder %s31, 1
      %p341 = scmp.ne.s32.totalorder %s336, %s338
      %p342 = scmp.eq.s32.totalorder %s31, 0
      %p343 = por %p341, %p342
      %p344 = scmp.ne.s32.totalorder %s336, %s338
      %p345 = scmp.eq.s32.totalorder %s36, 1
      %p346 = por %p344, %p345
      %p347 = scmp.ne.s32.totalorder %s338, %s339
      %p348 = scmp.eq.s32.totalorder %s36, 0
      %p349 = por %p347, %p348
      %p350 = scmp.ne.s32.totalorder %s338, %s339
      %p351 = scmp.eq.s32.totalorder %s37, 1
      %p352 = por %p350, %p351
      %p354 = scmp.ne.s32.totalorder %s339, %s353
      %p355 = scmp.eq.s32.totalorder %s37, 0
      %p356 = por %p354, %p355
      %s358 = sadd.s32 %s357, 1
      %p361 = scmp.eq.s32.totalorder %s31, 1
      %p362 = scmp.ne.s32.totalorder %s357, %s359
      %p363 = scmp.eq.s32.totalorder %s31, 0
      %p364 = por %p362, %p363
      %p365 = scmp.ne.s32.totalorder %s357, %s359
      %p366 = scmp.eq.s32.totalorder %s36, 1
      %p367 = por %p365, %p366
      %p368 = scmp.ne.s32.totalorder %s359, %s360
      %p369 = scmp.eq.s32.totalorder %s36, 0
      %p370 = por %p368, %p369
      %p371 = scmp.ne.s32.totalorder %s359, %s360
      %p372 = scmp.eq.s32.totalorder %s37, 1
      %p373 = por %p371, %p372
      %p375 = scmp.ne.s32.totalorder %s360, %s374
      %p376 = scmp.eq.s32.totalorder %s37, 0
      %p377 = por %p375, %p376
      %s378 = ssub.s32 %s38, %s50
      %s379 = ssub.s32 %s39, %s46
      %s380 = sor.u32 %s378, %s379
      %p381 = scmp.eq.s32.totalorder %s380, 0
      %s383 = sadd.s32 %s382, 1
      %s384 = scalar_select %p381, %s382, %s383
      %p387 = pneg %p381
      %p388 = scmp.eq.s32.totalorder %s31, 1
      %p389 = por %p387, %p388
      %p390 = scmp.ne.s32.totalorder %s382, %s385
      %p391 = scmp.eq.s32.totalorder %s31, 0
      %p392 = por %p390, %p391
      %p393 = scmp.ne.s32.totalorder %s382, %s385
      %p394 = scmp.eq.s32.totalorder %s36, 1
      %p395 = por %p393, %p394
      %p396 = scmp.ne.s32.totalorder %s385, %s386
      %p397 = scmp.eq.s32.totalorder %s36, 0
      %p398 = por %p396, %p397
      %p399 = scmp.ne.s32.totalorder %s385, %s386
      %p400 = scmp.eq.s32.totalorder %s37, 1
      %p401 = por %p399, %p400
      %p403 = scmp.ne.s32.totalorder %s386, %s402
      %p404 = scmp.eq.s32.totalorder %s37, 0
      %p405 = por %p403, %p404
      %s406 = ssub.s32 %s38, %s50
      %s407 = ssub.s32 %s39, %s46
      %s408 = sor.u32 %s406, %s407
      %p409 = scmp.eq.s32.totalorder %s408, 0
      %s411 = sadd.s32 %s410, 1
      %s412 = scalar_select %p409, %s410, %s411
      %p415 = pneg %p409
      %p416 = scmp.eq.s32.totalorder %s31, 1
      %p417 = por %p415, %p416
      %p418 = scmp.ne.s32.totalorder %s410, %s413
      %p419 = scmp.eq.s32.totalorder %s31, 0
      %p420 = por %p418, %p419
      %p421 = scmp.ne.s32.totalorder %s410, %s413
      %p422 = scmp.eq.s32.totalorder %s36, 1
      %p423 = por %p421, %p422
      %p424 = scmp.ne.s32.totalorder %s413, %s414
      %p425 = scmp.eq.s32.totalorder %s36, 0
      %p426 = por %p424, %p425
      %p427 = scmp.ne.s32.totalorder %s413, %s414
      %p428 = scmp.eq.s32.totalorder %s37, 1
      %p429 = por %p427, %p428
      %p431 = scmp.ne.s32.totalorder %s414, %s430
      %p432 = scmp.eq.s32.totalorder %s37, 0
      %p433 = por %p431, %p432
      %p434 = scmp.le.s32.totalorder 1, %s31
      %p435 = scmp.lt.s32.totalorder %s31, 3
      %p436 = pnand %p434, %p435
      %p437 = pneg %p436
      // Predicated region
      $region9: #{tpu_custom_call.1} parent=5 // pred_check
        _
      $region10: #{tpu_custom_call.1} parent=5 // pred_check_branch
        %439 = sbr.rel (%p436) target = $region12
      $region11: #{tpu_custom_call.1} parent=5 // pred_region
        %s440 = ssub.s32 %s31, 1
        // Predicated region
        $region13: #{tpu_custom_call.1} parent=11 // pred_check
          %p441 = pneg %p202
        $region14: #{tpu_custom_call.1} parent=11 // pred_check_branch
          %443 = sbr.rel (%p441) target = $region16
        $region15: #{tpu_custom_call.1} parent=11 // pred_region
          _
        $region16: #{tpu_custom_call.1} parent=11 // pred_fallthru
          _
        // Predicated region
        $region17: #{tpu_custom_call.1} parent=11 // pred_check
          %p444 = pneg %p223
        $region18: #{tpu_custom_call.1} parent=11 // pred_check_branch
          %446 = sbr.rel (%p444) target = $region20
        $region19: #{tpu_custom_call.1} parent=11 // pred_region
          _
        $region20: #{tpu_custom_call.1} parent=11 // pred_fallthru
          _
        // Predicated region
        $region21: #{tpu_custom_call.1} parent=11 // pred_check
          %p447 = pneg %p244
        $region22: #{tpu_custom_call.1} parent=11 // pred_check_branch
          %449 = sbr.rel (%p447) target = $region24
        $region23: #{tpu_custom_call.1} parent=11 // pred_region
          _
        $region24: #{tpu_custom_call.1} parent=11 // pred_fallthru
          _
        // Predicated region
        $region25: #{tpu_custom_call.1} parent=11 // pred_check
          %p450 = pneg %p265
        $region26: #{tpu_custom_call.1} parent=11 // pred_check_branch
          %452 = sbr.rel (%p450) target = $region28
        $region27: #{tpu_custom_call.1} parent=11 // pred_region
          _
        $region28: #{tpu_custom_call.1} parent=11 // pred_fallthru
          _
        // Predicated region
        $region29: #{tpu_custom_call.1} parent=11 // pred_check
          %p453 = pneg %p286
        $region30: #{tpu_custom_call.1} parent=11 // pred_check_branch
          %455 = sbr.rel (%p453) target = $region32
        $region31: #{tpu_custom_call.1} parent=11 // pred_region
          _
        $region32: #{tpu_custom_call.1} parent=11 // pred_fallthru
          _
        // Predicated region
        $region33: #{tpu_custom_call.1} parent=11 // pred_check
          %p456 = pneg %p307
        $region34: #{tpu_custom_call.1} parent=11 // pred_check_branch
          %458 = sbr.rel (%p456) target = $region36
        $region35: #{tpu_custom_call.1} parent=11 // pred_region
          _
        $region36: #{tpu_custom_call.1} parent=11 // pred_fallthru
          _
        // Predicated region
        $region37: #{tpu_custom_call.1} parent=11 // pred_check
          %p459 = pneg %p328
        $region38: #{tpu_custom_call.1} parent=11 // pred_check_branch
          %461 = sbr.rel (%p459) target = $region40
        $region39: #{tpu_custom_call.1} parent=11 // pred_region
          _
        $region40: #{tpu_custom_call.1} parent=11 // pred_fallthru
          _
        // Predicated region
        $region41: #{tpu_custom_call.1} parent=11 // pred_check
          %p462 = pneg %p349
        $region42: #{tpu_custom_call.1} parent=11 // pred_check_branch
          %464 = sbr.rel (%p462) target = $region44
        $region43: #{tpu_custom_call.1} parent=11 // pred_region
          _
        $region44: #{tpu_custom_call.1} parent=11 // pred_fallthru
          _
        // Predicated region
        $region45: #{tpu_custom_call.1} parent=11 // pred_check
          %p465 = pneg %p370
        $region46: #{tpu_custom_call.1} parent=11 // pred_check_branch
          %467 = sbr.rel (%p465) target = $region48
        $region47: #{tpu_custom_call.1} parent=11 // pred_region
          _
        $region48: #{tpu_custom_call.1} parent=11 // pred_fallthru
          _
      $region12: #{tpu_custom_call.1} parent=5 // pred_fallthru
        _
      %p468 = scmp.lt.s32.totalorder %s31, 2
      // Predicated region
      $region49: #{tpu_custom_call.1} parent=5 // pred_check
        %p469 = pneg %p468
      $region50: #{tpu_custom_call.1} parent=5 // pred_check_branch
        %471 = sbr.rel (%p469) target = $region52
      $region51: #{tpu_custom_call.1} parent=5 // pred_region
        // Predicated region
        $region53: #{tpu_custom_call.1} parent=51 // pred_check
          %p472 = pneg %p65
        $region54: #{tpu_custom_call.1} parent=51 // pred_check_branch
          %474 = sbr.rel (%p472) target = $region56
        $region55: #{tpu_custom_call.1} parent=51 // pred_region
          %p475 = scmp.lt.s32.totalorder %s38, 1
          %s476 = scalar_select %p475, %s38, 1
          %p477 = scmp.lt.s32.totalorder %s39, 0
          %s478 = scalar_select %p477, %s39, 0
          %s479 = sadd.s32 %s478, %s476
          %s480 = smul.addr %s479, 8
          %s481 = scalar_lea.vmem %s0, %s480
        $region56: #{tpu_custom_call.1} parent=51 // pred_fallthru
          _
        // Predicated region
        $region57: #{tpu_custom_call.1} parent=51 // pred_check
          %p482 = pneg %p93
        $region58: #{tpu_custom_call.1} parent=51 // pred_check_branch
          %484 = sbr.rel (%p482) target = $region60
        $region59: #{tpu_custom_call.1} parent=51 // pred_region
          %p485 = scmp.lt.s32.totalorder %s38, 1
          %s486 = scalar_select %p485, %s38, 1
          %p487 = scmp.lt.s32.totalorder %s39, 0
          %s488 = scalar_select %p487, %s39, 0
          %s489 = sadd.s32 %s488, %s486
          %s490 = smul.addr %s489, 8
          %s491 = scalar_lea.vmem %s1, %s490
        $region60: #{tpu_custom_call.1} parent=51 // pred_fallthru
          _
        // Predicated region
        $region61: #{tpu_custom_call.1} parent=51 // pred_check
          %p492 = pneg %p121
        $region62: #{tpu_custom_call.1} parent=51 // pred_check_branch
          %494 = sbr.rel (%p492) target = $region64
        $region63: #{tpu_custom_call.1} parent=51 // pred_region
          %s495 = sand.u32 %s111, 1
          %s496 = scalar_lea.sflag [#allocation3], %s495
          %s497 = sand.u32 %s111, 1
          %s498 = smul.addr %s497, 8
          %s499 = scalar_lea.vmem [#allocation2], %s498
          %s501 = ssub.s32 128, 128
          %502 = vsyncadd %s496, %s501
          %s503 = sadd.s32 %s39, %s38
          %s504 = smul.addr %s503, 128
          %s505 = scalar_lea.hbm %s2, %s504
          %s507 = sshll.u32 %s499, 4
          %s508 = int_to_ptr.vmem [resolvable:$true] %s507
          %510 = dma.hbm_to_vmem [thread:$0]  %s505, 128, %s508, %s496
        $region64: #{tpu_custom_call.1} parent=51 // pred_fallthru
          _
        // Predicated region
        $region65: #{tpu_custom_call.1} parent=51 // pred_check
          %p511 = pneg %p147
        $region66: #{tpu_custom_call.1} parent=51 // pred_check_branch
          %513 = sbr.rel (%p511) target = $region68
        $region67: #{tpu_custom_call.1} parent=51 // pred_region
          %s514 = sand.u32 %s137, 1
          %s515 = scalar_lea.sflag [#allocation6], %s514
          %s516 = sand.u32 %s137, 1
          %s517 = smul.addr %s516, 8
          %s518 = scalar_lea.vmem [#allocation5], %s517
          %s520 = ssub.s32 128, 128
          %521 = vsyncadd %s515, %s520
          %s522 = smul.addr %s38, 128
          %s523 = scalar_lea.hbm %s3, %s522
          %s525 = sshll.u32 %s518, 4
          %s526 = int_to_ptr.vmem [resolvable:$true] %s525
          %528 = dma.hbm_to_vmem [thread:$0]  %s523, 128, %s526, %s515
        $region68: #{tpu_custom_call.1} parent=51 // pred_fallthru
          _
        // Predicated region
        $region69: #{tpu_custom_call.1} parent=51 // pred_check
          %p529 = pneg %p175
        $region70: #{tpu_custom_call.1} parent=51 // pred_check_branch
          %531 = sbr.rel (%p529) target = $region72
        $region71: #{tpu_custom_call.1} parent=51 // pred_region
          %s532 = smul.u32 8, %s39
          %p533 = scmp.lt.s32.totalorder %s38, 1
          %s534 = scalar_select %p533, %s38, 1
          %p535 = scmp.lt.s32.totalorder %s532, 7
          %s536 = scalar_select %p535, %s532, 7
          %s537 = smul.addr %s534, 8
          %s538 = sadd.s32 %s536, %s537
          %s539 = smul.addr %s538, 8
          %s540 = scalar_lea.vmem %s4, %s539
          %s541 = smul.u32 8, %s39
        $region72: #{tpu_custom_call.1} parent=51 // pred_fallthru
          _
      $region52: #{tpu_custom_call.1} parent=5 // pred_fallthru
        _
      %p542 = scmp.le.s32.totalorder 1, %s31
      %p543 = scmp.lt.s32.totalorder %s31, 3
      %p544 = pnand %p542, %p543
      %p545 = pneg %p544
      // Predicated region
      $region73: #{tpu_custom_call.1} parent=5 // pred_check
        _
      $region74: #{tpu_custom_call.1} parent=5 // pred_check_branch
        %547 = sbr.rel (%p544) target = $region76
      $region75: #{tpu_custom_call.1} parent=5 // pred_region
        %s548 = ssub.s32 %s31, 1
        %s549 = sand.u32 %s114, 1
        %s550 = scalar_lea.sflag [#allocation3], %s549
        %s551 = sand.u32 %s114, 1
        %s552 = smul.addr %s551, 8
        %s553 = scalar_lea.vmem [#allocation2], %s552
        // Predicated region
        $region77: #{tpu_custom_call.1} parent=75 // pred_check
          %p554 = pneg %p127
        $region78: #{tpu_custom_call.1} parent=75 // pred_check_branch
          %556 = sbr.rel (%p554) target = $region80
        $region79: #{tpu_custom_call.1} parent=75 // pred_region
          %557 = dma.done %s550, 128
        $region80: #{tpu_custom_call.1} parent=75 // pred_fallthru
          _
        %s558 = sand.u32 %s140, 1
        %s559 = scalar_lea.sflag [#allocation6], %s558
        %s560 = sand.u32 %s140, 1
        %s561 = smul.addr %s560, 8
        %s562 = scalar_lea.vmem [#allocation5], %s561
        // Predicated region
        $region81: #{tpu_custom_call.1} parent=75 // pred_check
          %p563 = pneg %p153
        $region82: #{tpu_custom_call.1} parent=75 // pred_check_branch
          %565 = sbr.rel (%p563) target = $region84
        $region83: #{tpu_custom_call.1} parent=75 // pred_region
          %566 = dma.done %s559, 128
        $region84: #{tpu_custom_call.1} parent=75 // pred_fallthru
          _
        %p567 = scmp.lt.s32.totalorder %s40, 1
        %s568 = scalar_select %p567, %s40, 1
        %p569 = scmp.lt.s32.totalorder %s41, 0
        %s570 = scalar_select %p569, %s41, 0
        %s571 = sadd.s32 %s570, %s568
        %s572 = smul.addr %s571, 8
        %s573 = scalar_lea.vmem %s0, %s572
        %p574 = pneg %p71
        %p575 = pneg %p68
        %p576 = scmp.lt.s32.totalorder %s40, 1
        %s577 = scalar_select %p576, %s40, 1
        %p578 = scmp.lt.s32.totalorder %s41, 0
        %s579 = scalar_select %p578, %s41, 0
        %s580 = sadd.s32 %s579, %s577
        %s581 = smul.addr %s580, 8
        %s582 = scalar_lea.vmem %s1, %s581
        %p583 = pneg %p99
        %p584 = pneg %p96
        %s585 = sand.u32 %s114, 1
        %s586 = scalar_lea.sflag [#allocation3], %s585
        %s587 = sand.u32 %s114, 1
        %s588 = smul.addr %s587, 8
        %s589 = scalar_lea.vmem [#allocation2], %s588
        %p590 = pneg %p127
        %p591 = pneg %p124
        %s592 = sand.u32 %s140, 1
        %s593 = scalar_lea.sflag [#allocation6], %s592
        %s594 = sand.u32 %s140, 1
        %s595 = smul.addr %s594, 8
        %s596 = scalar_lea.vmem [#allocation5], %s595
        %p597 = pneg %p153
        %p598 = pneg %p150
        %s599 = smul.u32 8, %s41
        %p600 = scmp.lt.s32.totalorder %s40, 1
        %s601 = scalar_select %p600, %s40, 1
        %p602 = scmp.lt.s32.totalorder %s599, 7
        %s603 = scalar_select %p602, %s599, 7
        %s604 = smul.addr %s601, 8
        %s605 = sadd.s32 %s603, %s604
        %s606 = smul.addr %s605, 8
        %s607 = scalar_lea.vmem %s4, %s606
        %p608 = pneg %p181
        %p609 = pneg %p178
        %p610 = pneg %p202
        %p611 = pneg %p199
        %p612 = pneg %p223
        %p613 = pneg %p220
        %p614 = pneg %p244
        %p615 = pneg %p241
        %p616 = pneg %p265
        %p617 = pneg %p262
        %p618 = pneg %p286
        %p619 = pneg %p283
        %p620 = pneg %p307
        %p621 = pneg %p304
        %p622 = pneg %p328
        %p623 = pneg %p325
        %p624 = pneg %p349
        %p625 = pneg %p346
        %p626 = pneg %p370
        %p627 = pneg %p367
        %p628 = pneg %p398
        %p629 = pneg %p395
        %s630 = sand.u32 %s385, 1
        %s631 = scalar_lea.sflag [#allocation4], %s630
        %s632 = sand.u32 %s385, 1
        %s633 = smul.addr %s632, 8
        %s634 = scalar_lea.vmem [#allocation7], %s633
        %p635 = pneg %p426
        %p636 = pneg %p423
        %s637 = smul.u32 8, %s41
        %p638 = scmp.lt.s32.totalorder %s40, 1
        %s639 = scalar_select %p638, %s40, 1
        %p640 = scmp.lt.s32.totalorder %s637, 7
        %s641 = scalar_select %p640, %s637, 7
        %s642 = smul.addr %s639, 8
        %s643 = sadd.s32 %s641, %s642
        %s644 = smul.addr %s643, 8
        %s645 = scalar_lea.vmem %s15, %s644
        %p646 = scmp.lt.s32.totalorder %s40, 1
        %s647 = scalar_select %p646, %s40, 1
        %p648 = scmp.lt.s32.totalorder %s41, 0
        %s649 = scalar_select %p648, %s41, 0
        %s650 = sadd.s32 %s649, %s647
        %s651 = smul.addr %s650, 8
        %s652 = scalar_lea.vmem %s0, %s651
        %p653 = scmp.lt.s32.totalorder %s40, 1
        %s654 = scalar_select %p653, %s40, 1
        %p655 = scmp.lt.s32.totalorder %s41, 0
        %s656 = scalar_select %p655, %s41, 0
        %s657 = sadd.s32 %s656, %s654
        %s658 = smul.addr %s657, 8
        %s659 = scalar_lea.vmem %s1, %s658
        %s660 = smul.u32 8, %s41
        %p661 = scmp.lt.s32.totalorder %s40, 1
        %s662 = scalar_select %p661, %s40, 1
        %p663 = scmp.lt.s32.totalorder %s660, 7
        %s664 = scalar_select %p663, %s660, 7
        %s665 = smul.addr %s662, 8
        %s666 = sadd.s32 %s664, %s665
        %s667 = smul.addr %s666, 8
        %s668 = scalar_lea.vmem %s4, %s667
        %s669 = smul.u32 8, %s41
        %s670 = smul.u32 8, %s41
        %p671 = scmp.lt.s32.totalorder %s40, 1
        %s672 = scalar_select %p671, %s40, 1
        %p673 = scmp.lt.s32.totalorder %s670, 7
        %s674 = scalar_select %p673, %s670, 7
        %s675 = smul.addr %s672, 8
        %s676 = sadd.s32 %s674, %s675
        %s677 = smul.addr %s676, 8
        %s678 = scalar_lea.vmem %s15, %s677
        %s679 = smul.u32 8, %s41
        %v680 = vld [vmem:[%s652] sm:$0xff]
        %v681 = vld [vmem:[%s659] sm:$0xff]
        %v682 = vld [vmem:[%s553] sm:$0xff]
        %v683 = vld [vmem:[%s562] sm:$0xff]
        %v684 = vld [vmem:[%s668] sm:$0xff]
        %v685 = vld [vmem:[%s668 + $0x8] sm:$0xff]
        %v686 = vld [vmem:[%s668 + $0x10] sm:$0xff]
        %v687 = vld [vmem:[%s668 + $0x18] sm:$0xff]
        %v688 = vld [vmem:[%s668 + $0x20] sm:$0xff]
        %v689 = vld [vmem:[%s668 + $0x28] sm:$0xff]
        %v690 = vld [vmem:[%s668 + $0x30] sm:$0xff]
        %v691 = vld [vmem:[%s668 + $0x38] sm:$0xff]
        %v692 = vld [vmem:[%s5] sm:$0xff]
        %v693 = vld [vmem:[%s5 + $0x8] sm:$0xff]
        %v694 = vld [vmem:[%s5 + $0x10] sm:$0xff]
        %v695 = vld [vmem:[%s5 + $0x18] sm:$0xff]
        %v696 = vld [vmem:[%s6] sm:$0x1]
        %v698 = vlaneseq
        %v699 = vshrl.u32 %v698, 7
        %v700 = vsub.s32 0, %v699
        %v701 = vrot.slane %v696, %v700
        %vm703 = vcmask 261120
        %v705 = vsel %vm703, %v680, 0
        %707 = vmatprep.subr.mxu0 0.0
        %708 = vmatpush1.msra.mxu0 0.0
        %709 = vmatprep.subr.mxu0 0.0
        %710 = vmatpush1.msra.mxu0 0.0
        %711 = vmatprep.subr.mxu0 0.0
        %712 = vmatpush1.msra.mxu0 0.0
        %713 = vmatprep.subr.mxu0 0.0
        %714 = vmatpush1.msra.mxu0 0.0
        %715 = vmatprep.subr.mxu0 0.0
        %716 = vmatpush1.msra.mxu0 0.0
        %717 = vmatprep.subr.mxu0 0.0
        %718 = vmatpush1.msra.mxu0 0.0
        %719 = vmatprep.subr.mxu0 0.0
        %720 = vmatpush1.msra.mxu0 0.0
        %721 = vmatprep.subr.mxu0 0.0
        %722 = vmatpush1.msra.mxu0 0.0
        %723 = vmatprep.subr.mxu0 0.0
        %724 = vmatpush1.msra.mxu0 0.0
        %725 = vmatprep.subr.mxu0 0.0
        %726 = vmatpush1.msra.mxu0 0.0
        %727 = vmatprep.subr.mxu0 0.0
        %728 = vmatpush1.msra.mxu0 0.0
        %729 = vmatprep.subr.mxu0 0.0
        %730 = vmatpush1.msra.mxu0 0.0
        %731 = vmatprep.subr.mxu0 0.0
        %732 = vmatpush1.msra.mxu0 %v695
        %733 = vmatprep.subr.mxu0 0.0
        %734 = vmatpush1.msra.mxu0 %v694
        %735 = vmatprep.subr.mxu0 0.0
        %736 = vmatpush1.msra.mxu0 %v693
        %737 = vmatprep.subr.mxu0 0.0
        %738 = vmatpush1.msra.mxu0 %v692
        %739 = vmatprep.subr.mxu0 0.0
        %740 = vmatpush2.msra.mxu0 0.0
        %741 = vmatprep.subr.mxu0 0.0
        %742 = vmatpush2.msra.mxu0 0.0
        %743 = vmatprep.subr.mxu0 0.0
        %744 = vmatpush2.msra.mxu0 0.0
        %745 = vmatprep.subr.mxu0 0.0
        %746 = vmatpush2.msra.mxu0 0.0
        %747 = vmatprep.subr.mxu0 0.0
        %748 = vmatpush2.msra.mxu0 0.0
        %749 = vmatprep.subr.mxu0 0.0
        %750 = vmatpush2.msra.mxu0 0.0
        %751 = vmatprep.subr.mxu0 0.0
        %752 = vmatpush2.msra.mxu0 0.0
        %753 = vmatprep.subr.mxu0 0.0
        %754 = vmatpush2.msra.mxu0 0.0
        %755 = vmatprep.subr.mxu0 0.0
        %756 = vmatpush2.msra.mxu0 0.0
        %757 = vmatprep.subr.mxu0 0.0
        %758 = vmatpush2.msra.mxu0 0.0
        %759 = vmatprep.subr.mxu0 0.0
        %760 = vmatpush2.msra.mxu0 0.0
        %761 = vmatprep.subr.mxu0 0.0
        %762 = vmatpush2.msra.mxu0 0.0
        %763 = vmatprep.subr.mxu0 0.0
        %764 = vmatpush2.msra.mxu0 0.0
        %765 = vmatprep.subr.mxu0 0.0
        %766 = vmatpush2.msra.mxu0 0.0
        %767 = vmatprep.subr.mxu0 0.0
        %768 = vmatpush2.msra.mxu0 0.0
        %769 = vmatprep.subr.mxu0 0.0
        %770 = vmatpush2.msra.mxu0 0.0
        %771 = vmatprep.mubr.f32.mxu0 0.0
        %772 = vmatmul.mubr.f32.gmra.mxu0 %v705
        %v773 = vpop.f32.mrf.mxu0
        %v774 = vadd.f32 %v701, %v773
        %v775 = vpop.f32.mrf.mxu0
        %776 = vdwg.mxu0
        %v777 = vmax.f32 %v774, 0.0
        %v778 = vld [vmem:[%s7] sm:$0xff]
        %v779 = vld [vmem:[%s7 + $0x8] sm:$0xff]
        %v780 = vld [vmem:[%s7 + $0x10] sm:$0xff]
        %v781 = vld [vmem:[%s7 + $0x18] sm:$0xff]
        %v782 = vld [vmem:[%s8] sm:$0xff]
        %v783 = vld [vmem:[%s8 + $0x8] sm:$0xff]
        %v784 = vld [vmem:[%s8 + $0x10] sm:$0xff]
        %v785 = vld [vmem:[%s8 + $0x18] sm:$0xff]
        %v787 = vsel %vm703, %v681, 0
        %789 = vmatprep.subr.mxu0 0.0
        %790 = vmatpush1.msra.mxu0 0.0
        %791 = vmatprep.subr.mxu0 0.0
        %792 = vmatpush1.msra.mxu0 0.0
        %793 = vmatprep.subr.mxu0 0.0
        %794 = vmatpush1.msra.mxu0 0.0
        %795 = vmatprep.subr.mxu0 0.0
        %796 = vmatpush1.msra.mxu0 0.0
        %797 = vmatprep.subr.mxu0 0.0
        %798 = vmatpush1.msra.mxu0 0.0
        %799 = vmatprep.subr.mxu0 0.0
        %800 = vmatpush1.msra.mxu0 0.0
        %801 = vmatprep.subr.mxu0 0.0
        %802 = vmatpush1.msra.mxu0 0.0
        %803 = vmatprep.subr.mxu0 0.0
        %804 = vmatpush1.msra.mxu0 0.0
        %805 = vmatprep.subr.mxu0 0.0
        %806 = vmatpush1.msra.mxu0 0.0
        %807 = vmatprep.subr.mxu0 0.0
        %808 = vmatpush1.msra.mxu0 0.0
        %809 = vmatprep.subr.mxu0 0.0
        %810 = vmatpush1.msra.mxu0 0.0
        %811 = vmatprep.subr.mxu0 0.0
        %812 = vmatpush1.msra.mxu0 0.0
        %813 = vmatprep.subr.mxu0 0.0
        %814 = vmatpush1.msra.mxu0 %v785
        %815 = vmatprep.subr.mxu0 0.0
        %816 = vmatpush1.msra.mxu0 %v784
        %817 = vmatprep.subr.mxu0 0.0
        %818 = vmatpush1.msra.mxu0 %v783
        %819 = vmatprep.subr.mxu0 0.0
        %820 = vmatpush1.msra.mxu0 %v782
        %821 = vmatprep.subr.mxu0 0.0
        %822 = vmatpush2.msra.mxu0 0.0
        %823 = vmatprep.subr.mxu0 0.0
        %824 = vmatpush2.msra.mxu0 0.0
        %825 = vmatprep.subr.mxu0 0.0
        %826 = vmatpush2.msra.mxu0 0.0
        %827 = vmatprep.subr.mxu0 0.0
        %828 = vmatpush2.msra.mxu0 0.0
        %829 = vmatprep.subr.mxu0 0.0
        %830 = vmatpush2.msra.mxu0 0.0
        %831 = vmatprep.subr.mxu0 0.0
        %832 = vmatpush2.msra.mxu0 0.0
        %833 = vmatprep.subr.mxu0 0.0
        %834 = vmatpush2.msra.mxu0 0.0
        %835 = vmatprep.subr.mxu0 0.0
        %836 = vmatpush2.msra.mxu0 0.0
        %837 = vmatprep.subr.mxu0 0.0
        %838 = vmatpush2.msra.mxu0 0.0
        %839 = vmatprep.subr.mxu0 0.0
        %840 = vmatpush2.msra.mxu0 0.0
        %841 = vmatprep.subr.mxu0 0.0
        %842 = vmatpush2.msra.mxu0 0.0
        %843 = vmatprep.subr.mxu0 0.0
        %844 = vmatpush2.msra.mxu0 0.0
        %845 = vmatprep.subr.mxu0 0.0
        %846 = vmatpush2.msra.mxu0 0.0
        %847 = vmatprep.subr.mxu0 0.0
        %848 = vmatpush2.msra.mxu0 0.0
        %849 = vmatprep.subr.mxu0 0.0
        %850 = vmatpush2.msra.mxu0 0.0
        %851 = vmatprep.subr.mxu0 0.0
        %852 = vmatpush2.msra.mxu0 0.0
        %853 = vmatprep.mubr.f32.mxu0 0.0
        %854 = vmatmul.mubr.f32.gmra.mxu0 %v787
        %v855 = vpop.f32.mrf.mxu0
        %v856 = vadd.f32 0.0, %v855
        %v857 = vpop.f32.mrf.mxu0
        %858 = vdwg.mxu0
        %v860 = vsel %vm703, %v777, 0
        %862 = vmatprep.subr.mxu0 0.0
        %863 = vmatpush1.msra.mxu0 0.0
        %864 = vmatprep.subr.mxu0 0.0
        %865 = vmatpush1.msra.mxu0 0.0
        %866 = vmatprep.subr.mxu0 0.0
        %867 = vmatpush1.msra.mxu0 0.0
        %868 = vmatprep.subr.mxu0 0.0
        %869 = vmatpush1.msra.mxu0 0.0
        %870 = vmatprep.subr.mxu0 0.0
        %871 = vmatpush1.msra.mxu0 0.0
        %872 = vmatprep.subr.mxu0 0.0
        %873 = vmatpush1.msra.mxu0 0.0
        %874 = vmatprep.subr.mxu0 0.0
        %875 = vmatpush1.msra.mxu0 0.0
        %876 = vmatprep.subr.mxu0 0.0
        %877 = vmatpush1.msra.mxu0 0.0
        %878 = vmatprep.subr.mxu0 0.0
        %879 = vmatpush1.msra.mxu0 0.0
        %880 = vmatprep.subr.mxu0 0.0
        %881 = vmatpush1.msra.mxu0 0.0
        %882 = vmatprep.subr.mxu0 0.0
        %883 = vmatpush1.msra.mxu0 0.0
        %884 = vmatprep.subr.mxu0 0.0
        %885 = vmatpush1.msra.mxu0 0.0
        %886 = vmatprep.subr.mxu0 0.0
        %887 = vmatpush1.msra.mxu0 %v781
        %888 = vmatprep.subr.mxu0 0.0
        %889 = vmatpush1.msra.mxu0 %v780
        %890 = vmatprep.subr.mxu0 0.0
        %891 = vmatpush1.msra.mxu0 %v779
        %892 = vmatprep.subr.mxu0 0.0
        %893 = vmatpush1.msra.mxu0 %v778
        %894 = vmatprep.subr.mxu0 0.0
        %895 = vmatpush2.msra.mxu0 0.0
        %896 = vmatprep.subr.mxu0 0.0
        %897 = vmatpush2.msra.mxu0 0.0
        %898 = vmatprep.subr.mxu0 0.0
        %899 = vmatpush2.msra.mxu0 0.0
        %900 = vmatprep.subr.mxu0 0.0
        %901 = vmatpush2.msra.mxu0 0.0
        %902 = vmatprep.subr.mxu0 0.0
        %903 = vmatpush2.msra.mxu0 0.0
        %904 = vmatprep.subr.mxu0 0.0
        %905 = vmatpush2.msra.mxu0 0.0
        %906 = vmatprep.subr.mxu0 0.0
        %907 = vmatpush2.msra.mxu0 0.0
        %908 = vmatprep.subr.mxu0 0.0
        %909 = vmatpush2.msra.mxu0 0.0
        %910 = vmatprep.subr.mxu0 0.0
        %911 = vmatpush2.msra.mxu0 0.0
        %912 = vmatprep.subr.mxu0 0.0
        %913 = vmatpush2.msra.mxu0 0.0
        %914 = vmatprep.subr.mxu0 0.0
        %915 = vmatpush2.msra.mxu0 0.0
        %916 = vmatprep.subr.mxu0 0.0
        %917 = vmatpush2.msra.mxu0 0.0
        %918 = vmatprep.subr.mxu0 0.0
        %919 = vmatpush2.msra.mxu0 0.0
        %920 = vmatprep.subr.mxu0 0.0
        %921 = vmatpush2.msra.mxu0 0.0
        %922 = vmatprep.subr.mxu0 0.0
        %923 = vmatpush2.msra.mxu0 0.0
        %924 = vmatprep.subr.mxu0 0.0
        %925 = vmatpush2.msra.mxu0 0.0
        %926 = vmatprep.mubr.f32.mxu0 0.0
        %927 = vmatmul.mubr.f32.gmra.mxu0 %v860
        %v928 = vpop.f32.mrf.mxu0
        %v929 = vadd.f32 %v856, %v928
        %v930 = vpop.f32.mrf.mxu0
        %931 = vdwg.mxu0
        %v932 = vld [vmem:[%s9] sm:$0x1]
        %v934 = vlaneseq
        %v935 = vshrl.u32 %v934, 7
        %v936 = vsub.s32 0, %v935
        %v937 = vrot.slane %v932, %v936
        %v939 = vadd.f32 %v929, %v937
        %v940 = vmax.f32 %v939, 0.0
        %941 = vst.msk [vmem:[%s634] sm:$0xff] %vm703, %v940
        %v943 = vcombine.high %v682, %v682
        %v945 = vunpack.c.l.s4 1966171168
        %v946 = vunpack.c.0.s8 %v945
        %v947 = vlaneseq
        %v948 = vshrl.u32 %v947, 7
        %v949 = vsub.s32 %v946, %v948
        %v950 = vrot.slane %v682, %v949
        %v952 = vunpack.c.l.s4 1966171168
        %v953 = vunpack.c.0.s8 %v952
        %v954 = vlaneseq
        %v955 = vshrl.u32 %v954, 7
        %v956 = vsub.s32 %v953, %v955
        %v957 = vrot.slane %v943, %v956
        %v958 = vcombine.high %v950, %v950
        %v959 = vcombine.high %v957, %v957
        %v961 = vunpack.c.l.s4 1966171168
        %v962 = vunpack.c.0.s8 %v961
        %v963 = vlaneseq
        %v964 = vshrl.u32 %v963, 7
        %v965 = vsub.s32 %v962, %v964
        %v966 = vrot.slane %v950, %v965
        %v968 = vunpack.c.l.s4 1966171168
        %v969 = vunpack.c.0.s8 %v968
        %v970 = vlaneseq
        %v971 = vshrl.u32 %v970, 7
        %v972 = vsub.s32 %v969, %v971
        %v973 = vrot.slane %v957, %v972
        %v975 = vunpack.c.l.s4 1966171168
        %v976 = vunpack.c.0.s8 %v975
        %v977 = vlaneseq
        %v978 = vshrl.u32 %v977, 7
        %v979 = vsub.s32 %v976, %v978
        %v980 = vrot.slane %v958, %v979
        %v982 = vunpack.c.l.s4 1966171168
        %v983 = vunpack.c.0.s8 %v982
        %v984 = vlaneseq
        %v985 = vshrl.u32 %v984, 7
        %v986 = vsub.s32 %v983, %v985
        %v987 = vrot.slane %v959, %v986
        %v988 = vcombine.high %v966, %v966
        %v989 = vcombine.high %v973, %v973
        %v990 = vcombine.high %v980, %v980
        %v991 = vcombine.high %v987, %v987
        %v992 = vlaneseq
        %v993 = vshrl.u32 %v992, 7
        %v994 = vsub.s32 0, %v993
        %v995 = vrot.slane %v966, %v994
        %v996 = vlaneseq
        %v997 = vshrl.u32 %v996, 7
        %v998 = vsub.s32 0, %v997
        %v999 = vrot.slane %v980, %v998
        %v1000 = vlaneseq
        %v1001 = vshrl.u32 %v1000, 7
        %v1002 = vsub.s32 0, %v1001
        %v1003 = vrot.slane %v988, %v1002
        %v1004 = vlaneseq
        %v1005 = vshrl.u32 %v1004, 7
        %v1006 = vsub.s32 0, %v1005
        %v1007 = vrot.slane %v990, %v1006
        %v1008 = vlaneseq
        %v1009 = vshrl.u32 %v1008, 7
        %v1010 = vsub.s32 0, %v1009
        %v1011 = vrot.slane %v973, %v1010
        %v1012 = vlaneseq
        %v1013 = vshrl.u32 %v1012, 7
        %v1014 = vsub.s32 0, %v1013
        %v1015 = vrot.slane %v987, %v1014
        %v1016 = vlaneseq
        %v1017 = vshrl.u32 %v1016, 7
        %v1018 = vsub.s32 0, %v1017
        %v1019 = vrot.slane %v989, %v1018
        %v1020 = vlaneseq
        %v1021 = vshrl.u32 %v1020, 7
        %v1022 = vsub.s32 0, %v1021
        %v1023 = vrot.slane %v991, %v1022
        %v1032 = vadd.f32 %v995, %v683
        %v1033 = vadd.f32 %v999, %v683
        %v1034 = vadd.f32 %v1003, %v683
        %v1035 = vadd.f32 %v1007, %v683
        %v1036 = vadd.f32 %v1011, %v683
        %v1037 = vadd.f32 %v1015, %v683
        %v1038 = vadd.f32 %v1019, %v683
        %v1039 = vadd.f32 %v1023, %v683
        %v1040 = vmax.f32 %v1032, 0.0
        %v1041 = vmax.f32 %v1033, 0.0
        %v1042 = vmax.f32 %v1034, 0.0
        %v1043 = vmax.f32 %v1035, 0.0
        %v1044 = vmax.f32 %v1036, 0.0
        %v1045 = vmax.f32 %v1037, 0.0
        %v1046 = vmax.f32 %v1038, 0.0
        %v1047 = vmax.f32 %v1039, 0.0
        %v1048 = vld [vmem:[%s10] sm:$0xff]
        %v1049 = vld [vmem:[%s10 + $0x8] sm:$0xff]
        %v1050 = vld [vmem:[%s10 + $0x10] sm:$0xff]
        %v1051 = vld [vmem:[%s10 + $0x18] sm:$0xff]
        %v1052 = vld [vmem:[%s11] sm:$0x1]
        %v1054 = vlaneseq
        %v1055 = vshrl.u32 %v1054, 7
        %v1056 = vsub.s32 0, %v1055
        %v1057 = vrot.slane %v1052, %v1056
        %v1060 = vsel %vm703, %v684, 0
        %v1063 = vsel %vm703, %v685, 0
        %v1066 = vsel %vm703, %v686, 0
        %v1069 = vsel %vm703, %v687, 0
        %v1072 = vsel %vm703, %v688, 0
        %v1075 = vsel %vm703, %v689, 0
        %v1078 = vsel %vm703, %v690, 0
        %v1081 = vsel %vm703, %v691, 0
        %1083 = vmatprep.subr.mxu0 0.0
        %1084 = vmatpush1.msra.mxu0 0.0
        %1085 = vmatprep.subr.mxu0 0.0
        %1086 = vmatpush1.msra.mxu0 0.0
        %1087 = vmatprep.subr.mxu0 0.0
        %1088 = vmatpush1.msra.mxu0 0.0
        %1089 = vmatprep.subr.mxu0 0.0
        %1090 = vmatpush1.msra.mxu0 0.0
        %1091 = vmatprep.subr.mxu0 0.0
        %1092 = vmatpush1.msra.mxu0 0.0
        %1093 = vmatprep.subr.mxu0 0.0
        %1094 = vmatpush1.msra.mxu0 0.0
        %1095 = vmatprep.subr.mxu0 0.0
        %1096 = vmatpush1.msra.mxu0 0.0
        %1097 = vmatprep.subr.mxu0 0.0
        %1098 = vmatpush1.msra.mxu0 0.0
        %1099 = vmatprep.subr.mxu0 0.0
        %1100 = vmatpush1.msra.mxu0 0.0
        %1101 = vmatprep.subr.mxu0 0.0
        %1102 = vmatpush1.msra.mxu0 0.0
        %1103 = vmatprep.subr.mxu0 0.0
        %1104 = vmatpush1.msra.mxu0 0.0
        %1105 = vmatprep.subr.mxu0 0.0
        %1106 = vmatpush1.msra.mxu0 0.0
        %1107 = vmatprep.subr.mxu0 0.0
        %1108 = vmatpush1.msra.mxu0 %v1051
        %1109 = vmatprep.subr.mxu0 0.0
        %1110 = vmatpush1.msra.mxu0 %v1050
        %1111 = vmatprep.subr.mxu0 0.0
        %1112 = vmatpush1.msra.mxu0 %v1049
        %1113 = vmatprep.subr.mxu0 0.0
        %1114 = vmatpush1.msra.mxu0 %v1048
        %1115 = vmatprep.subr.mxu0 0.0
        %1116 = vmatpush2.msra.mxu0 0.0
        %1117 = vmatprep.subr.mxu0 0.0
        %1118 = vmatpush2.msra.mxu0 0.0
        %1119 = vmatprep.subr.mxu0 0.0
        %1120 = vmatpush2.msra.mxu0 0.0
        %1121 = vmatprep.subr.mxu0 0.0
        %1122 = vmatpush2.msra.mxu0 0.0
        %1123 = vmatprep.subr.mxu0 0.0
        %1124 = vmatpush2.msra.mxu0 0.0
        %1125 = vmatprep.subr.mxu0 0.0
        %1126 = vmatpush2.msra.mxu0 0.0
        %1127 = vmatprep.subr.mxu0 0.0
        %1128 = vmatpush2.msra.mxu0 0.0
        %1129 = vmatprep.subr.mxu0 0.0
        %1130 = vmatpush2.msra.mxu0 0.0
        %1131 = vmatprep.subr.mxu0 0.0
        %1132 = vmatpush2.msra.mxu0 0.0
        %1133 = vmatprep.subr.mxu0 0.0
        %1134 = vmatpush2.msra.mxu0 0.0
        %1135 = vmatprep.subr.mxu0 0.0
        %1136 = vmatpush2.msra.mxu0 0.0
        %1137 = vmatprep.subr.mxu0 0.0
        %1138 = vmatpush2.msra.mxu0 0.0
        %1139 = vmatprep.subr.mxu0 0.0
        %1140 = vmatpush2.msra.mxu0 0.0
        %1141 = vmatprep.subr.mxu0 0.0
        %1142 = vmatpush2.msra.mxu0 0.0
        %1143 = vmatprep.subr.mxu0 0.0
        %1144 = vmatpush2.msra.mxu0 0.0
        %1145 = vmatprep.subr.mxu0 0.0
        %1146 = vmatpush2.msra.mxu0 0.0
        %1147 = vmatprep.mubr.f32.mxu0 0.0
        %1148 = vmatmul.mubr.f32.gmra.mxu0 %v1060
        %v1149 = vpop.f32.mrf.mxu0
        %v1150 = vadd.f32 %v1057, %v1149
        %v1151 = vpop.f32.mrf.mxu0
        %1152 = vmatprep.mubr.f32.mxu0 0.0
        %1153 = vmatmul.mubr.f32.gmra.mxu0 %v1063
        %v1154 = vpop.f32.mrf.mxu0
        %v1155 = vadd.f32 %v1057, %v1154
        %v1156 = vpop.f32.mrf.mxu0
        %1157 = vmatprep.mubr.f32.mxu0 0.0
        %1158 = vmatmul.mubr.f32.gmra.mxu0 %v1066
        %v1159 = vpop.f32.mrf.mxu0
        %v1160 = vadd.f32 %v1057, %v1159
        %v1161 = vpop.f32.mrf.mxu0
        %1162 = vmatprep.mubr.f32.mxu0 0.0
        %1163 = vmatmul.mubr.f32.gmra.mxu0 %v1069
        %v1164 = vpop.f32.mrf.mxu0
        %v1165 = vadd.f32 %v1057, %v1164
        %v1166 = vpop.f32.mrf.mxu0
        %1167 = vmatprep.mubr.f32.mxu0 0.0
        %1168 = vmatmul.mubr.f32.gmra.mxu0 %v1072
        %v1169 = vpop.f32.mrf.mxu0
        %v1170 = vadd.f32 %v1057, %v1169
        %v1171 = vpop.f32.mrf.mxu0
        %1172 = vmatprep.mubr.f32.mxu0 0.0
        %1173 = vmatmul.mubr.f32.gmra.mxu0 %v1075
        %v1174 = vpop.f32.mrf.mxu0
        %v1175 = vadd.f32 %v1057, %v1174
        %v1176 = vpop.f32.mrf.mxu0
        %1177 = vmatprep.mubr.f32.mxu0 0.0
        %1178 = vmatmul.mubr.f32.gmra.mxu0 %v1078
        %v1179 = vpop.f32.mrf.mxu0
        %v1180 = vadd.f32 %v1057, %v1179
        %v1181 = vpop.f32.mrf.mxu0
        %1182 = vmatprep.mubr.f32.mxu0 0.0
        %1183 = vmatmul.mubr.f32.gmra.mxu0 %v1081
        %v1184 = vpop.f32.mrf.mxu0
        %v1185 = vadd.f32 %v1057, %v1184
        %v1186 = vpop.f32.mrf.mxu0
        %1187 = vdwg.mxu0
        %v1188 = vmax.f32 %v1150, 0.0
        %v1189 = vmax.f32 %v1155, 0.0
        %v1190 = vmax.f32 %v1160, 0.0
        %v1191 = vmax.f32 %v1165, 0.0
        %v1192 = vmax.f32 %v1170, 0.0
        %v1193 = vmax.f32 %v1175, 0.0
        %v1194 = vmax.f32 %v1180, 0.0
        %v1195 = vmax.f32 %v1185, 0.0
        %v1196 = vadd.f32 %v1188, %v1040
        %v1197 = vadd.f32 %v1189, %v1041
        %v1198 = vadd.f32 %v1190, %v1042
        %v1199 = vadd.f32 %v1191, %v1043
        %v1200 = vadd.f32 %v1192, %v1044
        %v1201 = vadd.f32 %v1193, %v1045
        %v1202 = vadd.f32 %v1194, %v1046
        %v1203 = vadd.f32 %v1195, %v1047
        %v1204 = vld [vmem:[%s12] sm:$0xff]
        %v1205 = vld [vmem:[%s12 + $0x8] sm:$0xff]
        %v1206 = vld [vmem:[%s12 + $0x10] sm:$0xff]
        %v1207 = vld [vmem:[%s12 + $0x18] sm:$0xff]
        %v1208 = vld [vmem:[%s13] sm:$0x1]
        %v1210 = vlaneseq
        %v1211 = vshrl.u32 %v1210, 7
        %v1212 = vsub.s32 0, %v1211
        %v1213 = vrot.slane %v1208, %v1212
        %v1216 = vsel %vm703, %v1196, 0
        %v1219 = vsel %vm703, %v1197, 0
        %v1222 = vsel %vm703, %v1198, 0
        %v1225 = vsel %vm703, %v1199, 0
        %v1228 = vsel %vm703, %v1200, 0
        %v1231 = vsel %vm703, %v1201, 0
        %v1234 = vsel %vm703, %v1202, 0
        %v1237 = vsel %vm703, %v1203, 0
        %1239 = vmatprep.subr.mxu0 0.0
        %1240 = vmatpush1.msra.mxu0 0.0
        %1241 = vmatprep.subr.mxu0 0.0
        %1242 = vmatpush1.msra.mxu0 0.0
        %1243 = vmatprep.subr.mxu0 0.0
        %1244 = vmatpush1.msra.mxu0 0.0
        %1245 = vmatprep.subr.mxu0 0.0
        %1246 = vmatpush1.msra.mxu0 0.0
        %1247 = vmatprep.subr.mxu0 0.0
        %1248 = vmatpush1.msra.mxu0 0.0
        %1249 = vmatprep.subr.mxu0 0.0
        %1250 = vmatpush1.msra.mxu0 0.0
        %1251 = vmatprep.subr.mxu0 0.0
        %1252 = vmatpush1.msra.mxu0 0.0
        %1253 = vmatprep.subr.mxu0 0.0
        %1254 = vmatpush1.msra.mxu0 0.0
        %1255 = vmatprep.subr.mxu0 0.0
        %1256 = vmatpush1.msra.mxu0 0.0
        %1257 = vmatprep.subr.mxu0 0.0
        %1258 = vmatpush1.msra.mxu0 0.0
        %1259 = vmatprep.subr.mxu0 0.0
        %1260 = vmatpush1.msra.mxu0 0.0
        %1261 = vmatprep.subr.mxu0 0.0
        %1262 = vmatpush1.msra.mxu0 0.0
        %1263 = vmatprep.subr.mxu0 0.0
        %1264 = vmatpush1.msra.mxu0 %v1207
        %1265 = vmatprep.subr.mxu0 0.0
        %1266 = vmatpush1.msra.mxu0 %v1206
        %1267 = vmatprep.subr.mxu0 0.0
        %1268 = vmatpush1.msra.mxu0 %v1205
        %1269 = vmatprep.subr.mxu0 0.0
        %1270 = vmatpush1.msra.mxu0 %v1204
        %1271 = vmatprep.subr.mxu0 0.0
        %1272 = vmatpush2.msra.mxu0 0.0
        %1273 = vmatprep.subr.mxu0 0.0
        %1274 = vmatpush2.msra.mxu0 0.0
        %1275 = vmatprep.subr.mxu0 0.0
        %1276 = vmatpush2.msra.mxu0 0.0
        %1277 = vmatprep.subr.mxu0 0.0
        %1278 = vmatpush2.msra.mxu0 0.0
        %1279 = vmatprep.subr.mxu0 0.0
        %1280 = vmatpush2.msra.mxu0 0.0
        %1281 = vmatprep.subr.mxu0 0.0
        %1282 = vmatpush2.msra.mxu0 0.0
        %1283 = vmatprep.subr.mxu0 0.0
        %1284 = vmatpush2.msra.mxu0 0.0
        %1285 = vmatprep.subr.mxu0 0.0
        %1286 = vmatpush2.msra.mxu0 0.0
        %1287 = vmatprep.subr.mxu0 0.0
        %1288 = vmatpush2.msra.mxu0 0.0
        %1289 = vmatprep.subr.mxu0 0.0
        %1290 = vmatpush2.msra.mxu0 0.0
        %1291 = vmatprep.subr.mxu0 0.0
        %1292 = vmatpush2.msra.mxu0 0.0
        %1293 = vmatprep.subr.mxu0 0.0
        %1294 = vmatpush2.msra.mxu0 0.0
        %1295 = vmatprep.subr.mxu0 0.0
        %1296 = vmatpush2.msra.mxu0 0.0
        %1297 = vmatprep.subr.mxu0 0.0
        %1298 = vmatpush2.msra.mxu0 0.0
        %1299 = vmatprep.subr.mxu0 0.0
        %1300 = vmatpush2.msra.mxu0 0.0
        %1301 = vmatprep.subr.mxu0 0.0
        %1302 = vmatpush2.msra.mxu0 0.0
        %1303 = vmatprep.mubr.f32.mxu0 0.0
        %1304 = vmatmul.mubr.f32.gmra.mxu0 %v1216
        %v1305 = vpop.f32.mrf.mxu0
        %v1306 = vadd.f32 %v1213, %v1305
        %v1307 = vpop.f32.mrf.mxu0
        %1308 = vmatprep.mubr.f32.mxu0 0.0
        %1309 = vmatmul.mubr.f32.gmra.mxu0 %v1219
        %v1310 = vpop.f32.mrf.mxu0
        %v1311 = vadd.f32 %v1213, %v1310
        %v1312 = vpop.f32.mrf.mxu0
        %1313 = vmatprep.mubr.f32.mxu0 0.0
        %1314 = vmatmul.mubr.f32.gmra.mxu0 %v1222
        %v1315 = vpop.f32.mrf.mxu0
        %v1316 = vadd.f32 %v1213, %v1315
        %v1317 = vpop.f32.mrf.mxu0
        %1318 = vmatprep.mubr.f32.mxu0 0.0
        %1319 = vmatmul.mubr.f32.gmra.mxu0 %v1225
        %v1320 = vpop.f32.mrf.mxu0
        %v1321 = vadd.f32 %v1213, %v1320
        %v1322 = vpop.f32.mrf.mxu0
        %1323 = vmatprep.mubr.f32.mxu0 0.0
        %1324 = vmatmul.mubr.f32.gmra.mxu0 %v1228
        %v1325 = vpop.f32.mrf.mxu0
        %v1326 = vadd.f32 %v1213, %v1325
        %v1327 = vpop.f32.mrf.mxu0
        %1328 = vmatprep.mubr.f32.mxu0 0.0
        %1329 = vmatmul.mubr.f32.gmra.mxu0 %v1231
        %v1330 = vpop.f32.mrf.mxu0
        %v1331 = vadd.f32 %v1213, %v1330
        %v1332 = vpop.f32.mrf.mxu0
        %1333 = vmatprep.mubr.f32.mxu0 0.0
        %1334 = vmatmul.mubr.f32.gmra.mxu0 %v1234
        %v1335 = vpop.f32.mrf.mxu0
        %v1336 = vadd.f32 %v1213, %v1335
        %v1337 = vpop.f32.mrf.mxu0
        %1338 = vmatprep.mubr.f32.mxu0 0.0
        %1339 = vmatmul.mubr.f32.gmra.mxu0 %v1237
        %v1340 = vpop.f32.mrf.mxu0
        %v1341 = vadd.f32 %v1213, %v1340
        %v1342 = vpop.f32.mrf.mxu0
        %1343 = vdwg.mxu0
        %v1344 = vmax.f32 %v1306, 0.0
        %v1345 = vmax.f32 %v1311, 0.0
        %v1346 = vmax.f32 %v1316, 0.0
        %v1347 = vmax.f32 %v1321, 0.0
        %v1348 = vmax.f32 %v1326, 0.0
        %v1349 = vmax.f32 %v1331, 0.0
        %v1350 = vmax.f32 %v1336, 0.0
        %v1351 = vmax.f32 %v1341, 0.0
        %1352 = vst.msk [vmem:[%s678] sm:$0xff] %vm703, %v1344
        %1353 = vst.msk [vmem:[%s678 + $0x8] sm:$0xff] %vm703, %v1345
        %1354 = vst.msk [vmem:[%s678 + $0x10] sm:$0xff] %vm703, %v1346
        %1355 = vst.msk [vmem:[%s678 + $0x18] sm:$0xff] %vm703, %v1347
        %1356 = vst.msk [vmem:[%s678 + $0x20] sm:$0xff] %vm703, %v1348
        %1357 = vst.msk [vmem:[%s678 + $0x28] sm:$0xff] %vm703, %v1349
        %1358 = vst.msk [vmem:[%s678 + $0x30] sm:$0xff] %vm703, %v1350
        %1359 = vst.msk [vmem:[%s678 + $0x38] sm:$0xff] %vm703, %v1351
        %s1360 = sand.u32 %s385, 1
        %s1361 = scalar_lea.sflag [#allocation4], %s1360
        %s1362 = sand.u32 %s385, 1
        %s1363 = smul.addr %s1362, 8
        %s1364 = scalar_lea.vmem [#allocation7], %s1363
        %s1365 = smul.u32 8, %s41
        %p1366 = scmp.lt.s32.totalorder %s40, 1
        %s1367 = scalar_select %p1366, %s40, 1
        %p1368 = scmp.lt.s32.totalorder %s1365, 7
        %s1369 = scalar_select %p1368, %s1365, 7
        %s1370 = smul.addr %s1367, 8
        %s1371 = sadd.s32 %s1369, %s1370
        %s1372 = smul.addr %s1371, 8
        %s1373 = scalar_lea.vmem %s15, %s1372
        // Predicated region
        $region85: #{tpu_custom_call.1} parent=75 // pred_check
          %p1374 = pneg %p395
        $region86: #{tpu_custom_call.1} parent=75 // pred_check_branch
          %1376 = sbr.rel (%p1374) target = $region88
        $region87: #{tpu_custom_call.1} parent=75 // pred_region
          %s1378 = ssub.s32 128, 128
          %1379 = vsyncadd %s1361, %s1378
          %s1380 = sadd.s32 %s41, %s40
          %s1381 = smul.addr %s1380, 128
          %s1382 = scalar_lea.hbm %s14, %s1381
          %s1384 = sshll.u32 %s1364, 4
          %s1385 = int_to_ptr.vmem [resolvable:$true] %s1384
          %1387 = dma.vmem_to_hbm [thread:$0]  %s1385, 128, %s1382, %s1361
        $region88: #{tpu_custom_call.1} parent=75 // pred_fallthru
          _
        // Predicated region
        $region89: #{tpu_custom_call.1} parent=75 // pred_check
          %p1388 = pneg %p423
        $region90: #{tpu_custom_call.1} parent=75 // pred_check_branch
          %1390 = sbr.rel (%p1388) target = $region92
        $region91: #{tpu_custom_call.1} parent=75 // pred_region
          %s1391 = smul.u32 8, %s41
        $region92: #{tpu_custom_call.1} parent=75 // pred_fallthru
          _
      $region76: #{tpu_custom_call.1} parent=5 // pred_fallthru
        _
      %p1392 = scmp.le.s32.totalorder 2, %s31
      // Predicated region
      $region93: #{tpu_custom_call.1} parent=5 // pred_check
        %p1393 = pneg %p1392
      $region94: #{tpu_custom_call.1} parent=5 // pred_check_branch
        %1395 = sbr.rel (%p1393) target = $region96
      $region95: #{tpu_custom_call.1} parent=5 // pred_region
        %s1396 = ssub.s32 %s31, 2
        // Predicated region
        $region97: #{tpu_custom_call.1} parent=95 // pred_check
          %p1397 = pneg %p401
        $region98: #{tpu_custom_call.1} parent=95 // pred_check_branch
          %1399 = sbr.rel (%p1397) target = $region100
        $region99: #{tpu_custom_call.1} parent=95 // pred_region
          %s1400 = sand.u32 %s386, 1
          %s1401 = scalar_lea.sflag [#allocation4], %s1400
          %s1402 = sand.u32 %s386, 1
          %s1403 = smul.addr %s1402, 8
          %s1404 = scalar_lea.vmem [#allocation7], %s1403
          %1405 = dma.done %s1401, 128
        $region100: #{tpu_custom_call.1} parent=95 // pred_fallthru
          _
        // Predicated region
        $region101: #{tpu_custom_call.1} parent=95 // pred_check
          %p1406 = pneg %p429
        $region102: #{tpu_custom_call.1} parent=95 // pred_check_branch
          %1408 = sbr.rel (%p1406) target = $region104
        $region103: #{tpu_custom_call.1} parent=95 // pred_region
          %s1409 = smul.u32 8, %s43
          %p1410 = scmp.lt.s32.totalorder %s42, 1
          %s1411 = scalar_select %p1410, %s42, 1
          %p1412 = scmp.lt.s32.totalorder %s1409, 7
          %s1413 = scalar_select %p1412, %s1409, 7
          %s1414 = smul.addr %s1411, 8
          %s1415 = sadd.s32 %s1413, %s1414
          %s1416 = smul.addr %s1415, 8
          %s1417 = scalar_lea.vmem %s15, %s1416
        $region104: #{tpu_custom_call.1} parent=95 // pred_fallthru
          _
      $region96: #{tpu_custom_call.1} parent=5 // pred_fallthru
        _
    $region6: #{tpu_custom_call.1} parent=1 // loop_footer
      %s35 = sadd.s32 1, %s31
    $region7: #{tpu_custom_call.1} parent=1 // loop_footer_branch
      %30 = sbr.rel target = $region3
    $region8: #{tpu_custom_call.1} parent=1 // loop_exit
      _
    %1418 = vsyncpa [#allocation3], 1
    %s1419 = scalar_lea.sflag [#allocation3], 1
    %1420 = vsyncpa %s1419, 1
    %1421 = vsyncpa [#allocation6], 1
    %s1422 = scalar_lea.sflag [#allocation6], 1
    %1423 = vsyncpa %s1422, 1
    %1424 = vsyncpa [#allocation4], 1
    %s1425 = scalar_lea.sflag [#allocation4], 1
    %1426 = vsyncpa %s1425, 1

</llo_original>
